<compile_context>
chip_gen: v5e
topology: v5e:2x2
jax: 0.10.0
libtpu: 0.0.40
codegen_flags: <defaults>
</compile_context>

<pallas_src>
import math
import functools

import jax
import jax.numpy as jnp
from jax import lax
from jax.experimental import pallas as pl
from jax.experimental.pallas import tpu as pltpu


# ---------------------------------------------------------------------------
# Generation-aware configuration
# ---------------------------------------------------------------------------

def _tpu_config():
    """Return (target_rows, vmem_cap_bytes, require_multi_step)."""
    kind = jax.devices()[0].device_kind.lower()
    if "v7" in kind:
        # 256-wide MXU, 64 MiB VMEM, 2 TensorCores -> want >=2 grid steps.
        return 256, 48 * 1024 * 1024, True
    if "v6" in kind:
        # 256-wide MXU, 128 MiB VMEM, single TC -> big tiles, no multi-step rule.
        return 256, 100 * 1024 * 1024, False
    if "v5" in kind:
        # 128-wide MXU, 128 MiB VMEM, single TC.
        return 128, 100 * 1024 * 1024, False
    # Unknown generation: conservative defaults.
    return 128, 48 * 1024 * 1024, False


def _pick_batch_tile(batch, seq_len, target_rows, require_multi_step):
    """Batch rows folded per grid step (Bt*L ~ target_rows), Bt | batch."""
    bt = max(1, min(batch, max(1, target_rows // max(seq_len, 1))))
    while bt > 1 and batch % bt != 0:
        bt -= 1
    if require_multi_step:
        # v7x megacore: keep at least 2 grid steps when the batch allows it.
        while bt > 1 and (batch % bt != 0 or batch // bt < 2):
            bt -= 1
    return max(bt, 1)


def _vmem_limit_bytes(bt, seq_len, d_model, cap):
    """Scoped-VMEM request: blocks + weights + in-kernel intermediates, x2
    headroom for compiler scratch, clamped to the per-generation cap."""
    m_rows = bt * seq_len
    io_blocks = 2 * 2 * bt * seq_len * d_model * 4          # x in + out, double-buffered f32
    weights = 2 * ((3 * d_model + d_model) * d_model * 2    # bf16 W_qkv + W_o (double-buffered)
                   + (3 * d_model + 3 * d_model) * 4)       # f32 biases + LN params
    inter = (m_rows * 3 * d_model * 6                       # qkv f32 + bf16
             + 2 * bt * seq_len * seq_len * 4               # live per-head score tiles
             + m_rows * d_model * 8)                        # x f32 + ctx/x bf16
    est = 2 * (io_blocks + weights + inter)
    return int(min(max(est, 32 * 1024 * 1024), cap))


# ---------------------------------------------------------------------------
# Fused encoder kernel: N self-attention layers + final LayerNorm
# ---------------------------------------------------------------------------

def encoder_kernel(x_ref, wqkv_ref, bqkv_ref, wo_ref, bo_ref, ln_a_ref, ln_b_ref,
                   out_ref, *, num_layers, num_heads, d_k, bt, seq_len, eps):
    d_model = num_heads * d_k
    m_rows = bt * seq_len
    inv_sqrt_dk = jnp.float32(1.0 / math.sqrt(d_k))

    # Grid-invariant operands, loaded once per grid step, reused by all layers.
    wqkv = wqkv_ref[...]          # (D, 3D) bf16
    bqkv = bqkv_ref[...]          # (1, 3D) f32
    wo = wo_ref[...]              # (D, D)  bf16
    bo = bo_ref[...]              # (1, D)  f32

    # Fold the batch tile into the matmul M dimension (leading-dim reshape).
    x = x_ref[...].reshape(m_rows, d_model)                  # f32

    for _ in range(num_layers):
        # TODO(synk): the SATRN EncoderLayer's residual/FFN sublayers are not
        # part of the provided module spec; each layer here is the multi-head
        # self-attention block only (parameters shared across layers, as
        # clones() deep-copies one initialized layer).

        # Fused Q/K/V projection: one bf16 MXU matmul, f32 accumulation.
        qkv = jnp.dot(x.astype(jnp.bfloat16), wqkv,
                      preferred_element_type=jnp.float32) + bqkv   # (m, 3D) f32
        qkv_b = qkv.astype(jnp.bfloat16)                           # cast once
        q = qkv_b[:, 0 * d_model:1 * d_model].reshape(bt, seq_len, d_model)
        k = qkv_b[:, 1 * d_model:2 * d_model].reshape(bt, seq_len, d_model)
        v = qkv_b[:, 2 * d_model:3 * d_model].reshape(bt, seq_len, d_model)

        # TODO(synk): for long sequences (large L), add a KV-tile grid axis
        # with online softmax (flash pattern) instead of whole-L scores.
        ctx_heads = []
        for h in range(num_heads):
            lo = h * d_k
            hi = lo + d_k
            qh = q[:, :, lo:hi]                                    # (bt, L, d_k) bf16
            kh = k[:, :, lo:hi]
            vh = v[:, :, lo:hi]

            # Batched Q @ K^T with the transpose folded into the contraction.
            scores = lax.dot_general(
                qh, kh,
                dimension_numbers=(((2,), (2,)), ((0,), (0,))),
                preferred_element_type=jnp.float32) * inv_sqrt_dk  # (bt, L, L)

            # Numerically-stable softmax, kept in f32.
            m_max = jnp.max(scores, axis=-1, keepdims=True)
            e = jnp.exp(scores - m_max)
            denom = jnp.sum(e, axis=-1, keepdims=True)
            p = e * pl.reciprocal(denom, approx=True)
            # TODO(synk): nn.Dropout(p=0.1) on p omitted (eval-mode identity).

            ctx_h = lax.dot_general(
                p.astype(jnp.bfloat16), vh,
                dimension_numbers=(((2,), (1,)), ((0,), (0,))),
                preferred_element_type=jnp.float32)                # (bt, L, d_k)
            ctx_heads.append(ctx_h.astype(jnp.bfloat16))

        # concat(heads) @ W_o with a single full-depth K=D contraction.
        ctx = jnp.concatenate(ctx_heads, axis=-1).reshape(m_rows, d_model)
        x = jnp.dot(ctx, wo, preferred_element_type=jnp.float32) + bo

    # Final LayerNorm (PyTorch semantics: unbiased std, eps added to std).
    a = ln_a_ref[...]                                              # (1, D) f32
    b = ln_b_ref[...]
    mean = jnp.mean(x, axis=-1, keepdims=True)
    centered = x - mean
    var = jnp.sum(centered * centered, axis=-1, keepdims=True) / (d_model - 1)
    inv = 1.0 / (jnp.sqrt(var) + eps)                              # one per-row recip
    out = centered * inv * a + b
    out_ref[...] = out.reshape(bt, seq_len, d_model).astype(out_ref.dtype)


def encoder_forward(x, layer_params, num_layers, num_heads, ln_a, ln_b, eps=1e-6):
    B, L, D = x.shape
    assert D % num_heads == 0
    d_k = D // num_heads
    wq, bq, wk, bk, wv, bv, wo, bo = layer_params

    # Fuse projection weights/biases; bf16 weights halve weight DMA and match
    # the bf16 MXU (accumulation stays f32 in-kernel).
    wqkv = jnp.concatenate([wq, wk, wv], axis=1).astype(jnp.bfloat16)  # (D, 3D)
    bqkv = jnp.concatenate([bq, bk, bv], axis=1).astype(jnp.float32)   # (1, 3D)
    wo_b = wo.astype(jnp.bfloat16)
    bo_f = bo.astype(jnp.float32)

    target_rows, vmem_cap, multi_step = _tpu_config()
    bt = _pick_batch_tile(B, L, target_rows, multi_step)

    kernel = functools.partial(
        encoder_kernel, num_layers=num_layers, num_heads=num_heads,
        d_k=d_k, bt=bt, seq_len=L, eps=eps)

    seq_spec = pl.BlockSpec((bt, L, D), lambda i: (i, 0, 0))

    def const_spec(shape):                       # grid-invariant operand
        return pl.BlockSpec(shape, lambda i: (0, 0))

    grid_spec = pltpu.PrefetchScalarGridSpec(
        num_scalar_prefetch=0,
        grid=(B // bt,),
        in_specs=[seq_spec,
                  const_spec((D, 3 * D)), const_spec((1, 3 * D)),
                  const_spec((D, D)), const_spec((1, D)),
                  const_spec((1, D)), const_spec((1, D))],
        out_specs=seq_spec,
    )

    return pl.pallas_call(
        kernel,
        out_shape=jax.ShapeDtypeStruct((B, L, D), jnp.float32),
        grid_spec=grid_spec,
        compiler_params=pltpu.CompilerParams(
            dimension_semantics=("parallel",),
            vmem_limit_bytes=_vmem_limit_bytes(bt, L, D, vmem_cap)),
    )(x, wqkv, bqkv, wo_b, bo_f, ln_a.astype(jnp.float32), ln_b.astype(jnp.float32))


# ---------------------------------------------------------------------------
# Pure-JAX f32 reference
# ---------------------------------------------------------------------------

def reference_mha(query, key, value, params, num_heads):
    B, L, D = query.shape
    d_k = D // num_heads
    wq, bq, wk, bk, wv, bv, wo, bo = params

    def proj(x, w, b):
        return x @ w + b[0]

    def split_heads(x):  # (B, L, D) -> (B, H, L, d_k)
        return x.reshape(B, L, num_heads, d_k).transpose(0, 2, 1, 3)

    q = split_heads(proj(query, wq, bq))
    k = split_heads(proj(key, wk, bk))
    v = split_heads(proj(value, wv, bv))

    scores = jnp.einsum('bhqd,bhkd->bhqk', q, k) / math.sqrt(d_k)
    p = jax.nn.softmax(scores, axis=-1)
    ctx = jnp.einsum('bhqk,bhkd->bhqd', p, v)
    ctx = ctx.transpose(0, 2, 1, 3).reshape(B, L, D)
    return ctx @ wo + bo[0]


def reference_encoder(x, params, num_layers, num_heads, ln_a, ln_b, eps=1e-6):
    for _ in range(num_layers):
        x = reference_mha(x, x, x, params, num_heads)
    mean = x.mean(-1, keepdims=True)
    std = jnp.std(x, -1, keepdims=True, ddof=1)          # torch .std() is unbiased
    return ln_a[0] * (x - mean) / (std + eps) + ln_b[0]


# ---------------------------------------------------------------------------
# Demo / self-test
# ---------------------------------------------------------------------------

if __name__ == "__main__":
    # d_model = 128 keeps the output block lane-dense (last dim multiple of
    # 128 -> no masked partial stores) while staying small.
    B, L, D, H, N_LAYERS = 4, 16, 128, 4, 2

    root = jax.random.PRNGKey(0)
    ks = jax.random.split(root, 9)

    x = jax.random.normal(ks[0], (B, L, D), jnp.float32)

    # Deterministic parameter init matching nn.Linear fan-in scaling.
    bound = 1.0 / math.sqrt(D)

    def uinit(k, shape):
        return jax.random.uniform(k, shape, jnp.float32, -bound, bound)

    wq, wk, wv, wo = (uinit(ks[1], (D, D)), uinit(ks[2], (D, D)),
                      uinit(ks[3], (D, D)), uinit(ks[4], (D, D)))
    bq, bk, bv, bo = (uinit(ks[5], (1, D)), uinit(ks[6], (1, D)),
                      uinit(ks[7], (1, D)), uinit(ks[8], (1, D)))
    params = (wq, bq, wk, bk, wv, bv, wo, bo)

    ln_a = jnp.ones((1, D), jnp.float32)    # LayerNorm a_2
    ln_b = jnp.zeros((1, D), jnp.float32)   # LayerNorm b_2

    out = encoder_forward(x, params, N_LAYERS, H, ln_a, ln_b)
    out = jax.block_until_ready(out)

    ref = reference_encoder(x, params, N_LAYERS, H, ln_a, ln_b)
    assert out.shape == (B, L, D)
    # bf16 MXU inputs + approx reciprocal in softmax -> relaxed tolerance vs
    # the pure-f32 reference.
    assert jnp.allclose(out, ref, atol=1e-1, rtol=1e-1), "mismatch vs reference"

    print("KERNEL_OK")
</pallas_src>

<mosaic_0001>
module attributes {stable_mosaic.version = 11 : i64} {
  func.func @encoder_kernel(%arg0: i32, %arg1: memref<4x16x128xf32, #tpu.memory_space<vmem>>, %arg2: memref<128x384xbf16, #tpu.memory_space<vmem>>, %arg3: memref<1x384xf32, #tpu.memory_space<vmem>>, %arg4: memref<128x128xbf16, #tpu.memory_space<vmem>>, %arg5: memref<1x128xf32, #tpu.memory_space<vmem>>, %arg6: memref<1x128xf32, #tpu.memory_space<vmem>>, %arg7: memref<1x128xf32, #tpu.memory_space<vmem>>, %arg8: memref<4x16x128xf32, #tpu.memory_space<vmem>>) attributes {dimension_semantics = [#tpu.dimension_semantics<parallel>], iteration_bounds = array<i64: 1>, scalar_prefetch = 0 : i64, scratch_operands = 0 : i64, tpu.core_type = #tpu.core_type<tc>, window_params = [{transform_indices = @transform_0, window_bounds = array<i64: 4, 16, 128>}, {pipeline_mode = #tpu.pipeline_mode<synchronous>, transform_indices = @transform_1, window_bounds = array<i64: 128, 384>}, {pipeline_mode = #tpu.pipeline_mode<synchronous>, transform_indices = @transform_2, window_bounds = array<i64: 1, 384>}, {pipeline_mode = #tpu.pipeline_mode<synchronous>, transform_indices = @transform_3, window_bounds = array<i64: 128, 128>}, {pipeline_mode = #tpu.pipeline_mode<synchronous>, transform_indices = @transform_4, window_bounds = array<i64: 1, 128>}, {pipeline_mode = #tpu.pipeline_mode<synchronous>, transform_indices = @transform_5, window_bounds = array<i64: 1, 128>}, {pipeline_mode = #tpu.pipeline_mode<synchronous>, transform_indices = @transform_6, window_bounds = array<i64: 1, 128>}, {transform_indices = @transform_7, window_bounds = array<i64: 4, 16, 128>}]} {
    %c0 = arith.constant 0 : index
    %c0_0 = arith.constant 0 : index
    %0 = vector.load %arg2[%c0, %c0_0] : memref<128x384xbf16, #tpu.memory_space<vmem>>, vector<128x384xbf16>
    %c0_1 = arith.constant 0 : index
    %c0_2 = arith.constant 0 : index
    %1 = vector.load %arg3[%c0_1, %c0_2] : memref<1x384xf32, #tpu.memory_space<vmem>>, vector<1x384xf32>
    %c0_3 = arith.constant 0 : index
    %c0_4 = arith.constant 0 : index
    %2 = vector.load %arg4[%c0_3, %c0_4] : memref<128x128xbf16, #tpu.memory_space<vmem>>, vector<128x128xbf16>
    %c0_5 = arith.constant 0 : index
    %c0_6 = arith.constant 0 : index
    %3 = vector.load %arg5[%c0_5, %c0_6] : memref<1x128xf32, #tpu.memory_space<vmem>>, vector<1x128xf32>
    %c0_7 = arith.constant 0 : index
    %c0_8 = arith.constant 0 : index
    %c0_9 = arith.constant 0 : index
    %4 = vector.load %arg1[%c0_7, %c0_8, %c0_9] : memref<4x16x128xf32, #tpu.memory_space<vmem>>, vector<4x16x128xf32>
    %5 = vector.shape_cast %4 : vector<4x16x128xf32> to vector<64x128xf32>
    %6 = arith.truncf %5 : vector<64x128xf32> to vector<64x128xbf16>
    %cst = arith.constant dense<0.000000e+00> : vector<64x384xf32>
    %7 = tpu.matmul %6, %0, %cst {dimension_numbers = #tpu.dot_dimension_numbers<[1], [0], [0], [1], [0, 0, 1, 1], [], []>} : vector<64x128xbf16>, vector<128x384xbf16>, vector<64x384xf32> -> vector<64x384xf32>
    %8 = vector.broadcast %1 : vector<1x384xf32> to vector<64x384xf32>
    %9 = arith.addf %7, %8 : vector<64x384xf32>
    %10 = arith.truncf %9 : vector<64x384xf32> to vector<64x384xbf16>
    %11 = vector.extract_strided_slice %10 {offsets = [0, 0], sizes = [64, 128], strides = [1, 1]} : vector<64x384xbf16> to vector<64x128xbf16>
    %12 = vector.shape_cast %11 : vector<64x128xbf16> to vector<4x16x128xbf16>
    %13 = vector.extract_strided_slice %10 {offsets = [0, 128], sizes = [64, 128], strides = [1, 1]} : vector<64x384xbf16> to vector<64x128xbf16>
    %14 = vector.shape_cast %13 : vector<64x128xbf16> to vector<4x16x128xbf16>
    %15 = vector.extract_strided_slice %10 {offsets = [0, 256], sizes = [64, 128], strides = [1, 1]} : vector<64x384xbf16> to vector<64x128xbf16>
    %16 = vector.shape_cast %15 : vector<64x128xbf16> to vector<4x16x128xbf16>
    %17 = vector.extract_strided_slice %12 {offsets = [0, 0, 0], sizes = [4, 16, 32], strides = [1, 1, 1]} : vector<4x16x128xbf16> to vector<4x16x32xbf16>
    %18 = vector.extract_strided_slice %14 {offsets = [0, 0, 0], sizes = [4, 16, 32], strides = [1, 1, 1]} : vector<4x16x128xbf16> to vector<4x16x32xbf16>
    %19 = vector.extract_strided_slice %16 {offsets = [0, 0, 0], sizes = [4, 16, 32], strides = [1, 1, 1]} : vector<4x16x128xbf16> to vector<4x16x32xbf16>
    %cst_10 = arith.constant dense<0.000000e+00> : vector<4x16x16xf32>
    %20 = tpu.matmul %17, %18, %cst_10 {dimension_numbers = #tpu.dot_dimension_numbers<[2], [2], [1], [1], [0, 0, 0, 1, 1, 1], [0], [0]>} : vector<4x16x32xbf16>, vector<4x16x32xbf16>, vector<4x16x16xf32> -> vector<4x16x16xf32>
    %cst_11 = arith.constant 0.176776692 : f32
    %21 = vector.broadcast %cst_11 : f32 to vector<4x16x16xf32>
    %22 = arith.mulf %20, %21 : vector<4x16x16xf32>
    %cst_12 = arith.constant dense<0xFF800000> : vector<4x16xf32>
    %23 = vector.multi_reduction <maximumf>, %22, %cst_12 [2] : vector<4x16x16xf32> to vector<4x16xf32>
    %24 = vector.shape_cast %23 : vector<4x16xf32> to vector<4x16x1xf32>
    %25 = vector.broadcast %24 : vector<4x16x1xf32> to vector<4x16x16xf32>
    %26 = arith.subf %22, %25 : vector<4x16x16xf32>
    %27 = math.exp %26 : vector<4x16x16xf32>
    %cst_13 = arith.constant dense<0.000000e+00> : vector<4x16xf32>
    %28 = vector.multi_reduction <add>, %27, %cst_13 [2] : vector<4x16x16xf32> to vector<4x16xf32>
    %29 = vector.shape_cast %28 : vector<4x16xf32> to vector<4x16x1xf32>
    %30 = tpu.reciprocal %29 {approx = true} : vector<4x16x1xf32> -> vector<4x16x1xf32>
    %31 = vector.broadcast %30 : vector<4x16x1xf32> to vector<4x16x16xf32>
    %32 = arith.mulf %27, %31 : vector<4x16x16xf32>
    %33 = arith.truncf %32 : vector<4x16x16xf32> to vector<4x16x16xbf16>
    %cst_14 = arith.constant dense<0.000000e+00> : vector<4x16x32xf32>
    %34 = tpu.matmul %33, %19, %cst_14 {dimension_numbers = #tpu.dot_dimension_numbers<[2], [1], [1], [2], [0, 0, 0, 1, 1, 2], [0], [0]>} : vector<4x16x16xbf16>, vector<4x16x32xbf16>, vector<4x16x32xf32> -> vector<4x16x32xf32>
    %35 = arith.truncf %34 : vector<4x16x32xf32> to vector<4x16x32xbf16>
    %36 = vector.extract_strided_slice %12 {offsets = [0, 0, 32], sizes = [4, 16, 32], strides = [1, 1, 1]} : vector<4x16x128xbf16> to vector<4x16x32xbf16>
    %37 = vector.extract_strided_slice %14 {offsets = [0, 0, 32], sizes = [4, 16, 32], strides = [1, 1, 1]} : vector<4x16x128xbf16> to vector<4x16x32xbf16>
    %38 = vector.extract_strided_slice %16 {offsets = [0, 0, 32], sizes = [4, 16, 32], strides = [1, 1, 1]} : vector<4x16x128xbf16> to vector<4x16x32xbf16>
    %cst_15 = arith.constant dense<0.000000e+00> : vector<4x16x16xf32>
    %39 = tpu.matmul %36, %37, %cst_15 {dimension_numbers = #tpu.dot_dimension_numbers<[2], [2], [1], [1], [0, 0, 0, 1, 1, 1], [0], [0]>} : vector<4x16x32xbf16>, vector<4x16x32xbf16>, vector<4x16x16xf32> -> vector<4x16x16xf32>
    %cst_16 = arith.constant 0.176776692 : f32
    %40 = vector.broadcast %cst_16 : f32 to vector<4x16x16xf32>
    %41 = arith.mulf %39, %40 : vector<4x16x16xf32>
    %cst_17 = arith.constant dense<0xFF800000> : vector<4x16xf32>
    %42 = vector.multi_reduction <maximumf>, %41, %cst_17 [2] : vector<4x16x16xf32> to vector<4x16xf32>
    %43 = vector.shape_cast %42 : vector<4x16xf32> to vector<4x16x1xf32>
    %44 = vector.broadcast %43 : vector<4x16x1xf32> to vector<4x16x16xf32>
    %45 = arith.subf %41, %44 : vector<4x16x16xf32>
    %46 = math.exp %45 : vector<4x16x16xf32>
    %cst_18 = arith.constant dense<0.000000e+00> : vector<4x16xf32>
    %47 = vector.multi_reduction <add>, %46, %cst_18 [2] : vector<4x16x16xf32> to vector<4x16xf32>
    %48 = vector.shape_cast %47 : vector<4x16xf32> to vector<4x16x1xf32>
    %49 = tpu.reciprocal %48 {approx = true} : vector<4x16x1xf32> -> vector<4x16x1xf32>
    %50 = vector.broadcast %49 : vector<4x16x1xf32> to vector<4x16x16xf32>
    %51 = arith.mulf %46, %50 : vector<4x16x16xf32>
    %52 = arith.truncf %51 : vector<4x16x16xf32> to vector<4x16x16xbf16>
    %cst_19 = arith.constant dense<0.000000e+00> : vector<4x16x32xf32>
    %53 = tpu.matmul %52, %38, %cst_19 {dimension_numbers = #tpu.dot_dimension_numbers<[2], [1], [1], [2], [0, 0, 0, 1, 1, 2], [0], [0]>} : vector<4x16x16xbf16>, vector<4x16x32xbf16>, vector<4x16x32xf32> -> vector<4x16x32xf32>
    %54 = arith.truncf %53 : vector<4x16x32xf32> to vector<4x16x32xbf16>
    %55 = vector.extract_strided_slice %12 {offsets = [0, 0, 64], sizes = [4, 16, 32], strides = [1, 1, 1]} : vector<4x16x128xbf16> to vector<4x16x32xbf16>
    %56 = vector.extract_strided_slice %14 {offsets = [0, 0, 64], sizes = [4, 16, 32], strides = [1, 1, 1]} : vector<4x16x128xbf16> to vector<4x16x32xbf16>
    %57 = vector.extract_strided_slice %16 {offsets = [0, 0, 64], sizes = [4, 16, 32], strides = [1, 1, 1]} : vector<4x16x128xbf16> to vector<4x16x32xbf16>
    %cst_20 = arith.constant dense<0.000000e+00> : vector<4x16x16xf32>
    %58 = tpu.matmul %55, %56, %cst_20 {dimension_numbers = #tpu.dot_dimension_numbers<[2], [2], [1], [1], [0, 0, 0, 1, 1, 1], [0], [0]>} : vector<4x16x32xbf16>, vector<4x16x32xbf16>, vector<4x16x16xf32> -> vector<4x16x16xf32>
    %cst_21 = arith.constant 0.176776692 : f32
    %59 = vector.broadcast %cst_21 : f32 to vector<4x16x16xf32>
    %60 = arith.mulf %58, %59 : vector<4x16x16xf32>
    %cst_22 = arith.constant dense<0xFF800000> : vector<4x16xf32>
    %61 = vector.multi_reduction <maximumf>, %60, %cst_22 [2] : vector<4x16x16xf32> to vector<4x16xf32>
    %62 = vector.shape_cast %61 : vector<4x16xf32> to vector<4x16x1xf32>
    %63 = vector.broadcast %62 : vector<4x16x1xf32> to vector<4x16x16xf32>
    %64 = arith.subf %60, %63 : vector<4x16x16xf32>
    %65 = math.exp %64 : vector<4x16x16xf32>
    %cst_23 = arith.constant dense<0.000000e+00> : vector<4x16xf32>
    %66 = vector.multi_reduction <add>, %65, %cst_23 [2] : vector<4x16x16xf32> to vector<4x16xf32>
    %67 = vector.shape_cast %66 : vector<4x16xf32> to vector<4x16x1xf32>
    %68 = tpu.reciprocal %67 {approx = true} : vector<4x16x1xf32> -> vector<4x16x1xf32>
    %69 = vector.broadcast %68 : vector<4x16x1xf32> to vector<4x16x16xf32>
    %70 = arith.mulf %65, %69 : vector<4x16x16xf32>
    %71 = arith.truncf %70 : vector<4x16x16xf32> to vector<4x16x16xbf16>
    %cst_24 = arith.constant dense<0.000000e+00> : vector<4x16x32xf32>
    %72 = tpu.matmul %71, %57, %cst_24 {dimension_numbers = #tpu.dot_dimension_numbers<[2], [1], [1], [2], [0, 0, 0, 1, 1, 2], [0], [0]>} : vector<4x16x16xbf16>, vector<4x16x32xbf16>, vector<4x16x32xf32> -> vector<4x16x32xf32>
    %73 = arith.truncf %72 : vector<4x16x32xf32> to vector<4x16x32xbf16>
    %74 = vector.extract_strided_slice %12 {offsets = [0, 0, 96], sizes = [4, 16, 32], strides = [1, 1, 1]} : vector<4x16x128xbf16> to vector<4x16x32xbf16>
    %75 = vector.extract_strided_slice %14 {offsets = [0, 0, 96], sizes = [4, 16, 32], strides = [1, 1, 1]} : vector<4x16x128xbf16> to vector<4x16x32xbf16>
    %76 = vector.extract_strided_slice %16 {offsets = [0, 0, 96], sizes = [4, 16, 32], strides = [1, 1, 1]} : vector<4x16x128xbf16> to vector<4x16x32xbf16>
    %cst_25 = arith.constant dense<0.000000e+00> : vector<4x16x16xf32>
    %77 = tpu.matmul %74, %75, %cst_25 {dimension_numbers = #tpu.dot_dimension_numbers<[2], [2], [1], [1], [0, 0, 0, 1, 1, 1], [0], [0]>} : vector<4x16x32xbf16>, vector<4x16x32xbf16>, vector<4x16x16xf32> -> vector<4x16x16xf32>
    %cst_26 = arith.constant 0.176776692 : f32
    %78 = vector.broadcast %cst_26 : f32 to vector<4x16x16xf32>
    %79 = arith.mulf %77, %78 : vector<4x16x16xf32>
    %cst_27 = arith.constant dense<0xFF800000> : vector<4x16xf32>
    %80 = vector.multi_reduction <maximumf>, %79, %cst_27 [2] : vector<4x16x16xf32> to vector<4x16xf32>
    %81 = vector.shape_cast %80 : vector<4x16xf32> to vector<4x16x1xf32>
    %82 = vector.broadcast %81 : vector<4x16x1xf32> to vector<4x16x16xf32>
    %83 = arith.subf %79, %82 : vector<4x16x16xf32>
    %84 = math.exp %83 : vector<4x16x16xf32>
    %cst_28 = arith.constant dense<0.000000e+00> : vector<4x16xf32>
    %85 = vector.multi_reduction <add>, %84, %cst_28 [2] : vector<4x16x16xf32> to vector<4x16xf32>
    %86 = vector.shape_cast %85 : vector<4x16xf32> to vector<4x16x1xf32>
    %87 = tpu.reciprocal %86 {approx = true} : vector<4x16x1xf32> -> vector<4x16x1xf32>
    %88 = vector.broadcast %87 : vector<4x16x1xf32> to vector<4x16x16xf32>
    %89 = arith.mulf %84, %88 : vector<4x16x16xf32>
    %90 = arith.truncf %89 : vector<4x16x16xf32> to vector<4x16x16xbf16>
    %cst_29 = arith.constant dense<0.000000e+00> : vector<4x16x32xf32>
    %91 = tpu.matmul %90, %76, %cst_29 {dimension_numbers = #tpu.dot_dimension_numbers<[2], [1], [1], [2], [0, 0, 0, 1, 1, 2], [0], [0]>} : vector<4x16x16xbf16>, vector<4x16x32xbf16>, vector<4x16x32xf32> -> vector<4x16x32xf32>
    %92 = arith.truncf %91 : vector<4x16x32xf32> to vector<4x16x32xbf16>
    %93 = tpu.concatenate %35, %54, %73, %92 in 2 : vector<4x16x32xbf16>, vector<4x16x32xbf16>, vector<4x16x32xbf16>, vector<4x16x32xbf16> -> vector<4x16x128xbf16>
    %94 = vector.shape_cast %93 : vector<4x16x128xbf16> to vector<64x128xbf16>
    %cst_30 = arith.constant dense<0.000000e+00> : vector<64x128xf32>
    %95 = tpu.matmul %94, %2, %cst_30 {dimension_numbers = #tpu.dot_dimension_numbers<[1], [0], [0], [1], [0, 0, 1, 1], [], []>} : vector<64x128xbf16>, vector<128x128xbf16>, vector<64x128xf32> -> vector<64x128xf32>
    %96 = vector.broadcast %3 : vector<1x128xf32> to vector<64x128xf32>
    %97 = arith.addf %95, %96 : vector<64x128xf32>
    %98 = arith.truncf %97 : vector<64x128xf32> to vector<64x128xbf16>
    %cst_31 = arith.constant dense<0.000000e+00> : vector<64x384xf32>
    %99 = tpu.matmul %98, %0, %cst_31 {dimension_numbers = #tpu.dot_dimension_numbers<[1], [0], [0], [1], [0, 0, 1, 1], [], []>} : vector<64x128xbf16>, vector<128x384xbf16>, vector<64x384xf32> -> vector<64x384xf32>
    %100 = vector.broadcast %1 : vector<1x384xf32> to vector<64x384xf32>
    %101 = arith.addf %99, %100 : vector<64x384xf32>
    %102 = arith.truncf %101 : vector<64x384xf32> to vector<64x384xbf16>
    %103 = vector.extract_strided_slice %102 {offsets = [0, 0], sizes = [64, 128], strides = [1, 1]} : vector<64x384xbf16> to vector<64x128xbf16>
    %104 = vector.shape_cast %103 : vector<64x128xbf16> to vector<4x16x128xbf16>
    %105 = vector.extract_strided_slice %102 {offsets = [0, 128], sizes = [64, 128], strides = [1, 1]} : vector<64x384xbf16> to vector<64x128xbf16>
    %106 = vector.shape_cast %105 : vector<64x128xbf16> to vector<4x16x128xbf16>
    %107 = vector.extract_strided_slice %102 {offsets = [0, 256], sizes = [64, 128], strides = [1, 1]} : vector<64x384xbf16> to vector<64x128xbf16>
    %108 = vector.shape_cast %107 : vector<64x128xbf16> to vector<4x16x128xbf16>
    %109 = vector.extract_strided_slice %104 {offsets = [0, 0, 0], sizes = [4, 16, 32], strides = [1, 1, 1]} : vector<4x16x128xbf16> to vector<4x16x32xbf16>
    %110 = vector.extract_strided_slice %106 {offsets = [0, 0, 0], sizes = [4, 16, 32], strides = [1, 1, 1]} : vector<4x16x128xbf16> to vector<4x16x32xbf16>
    %111 = vector.extract_strided_slice %108 {offsets = [0, 0, 0], sizes = [4, 16, 32], strides = [1, 1, 1]} : vector<4x16x128xbf16> to vector<4x16x32xbf16>
    %cst_32 = arith.constant dense<0.000000e+00> : vector<4x16x16xf32>
    %112 = tpu.matmul %109, %110, %cst_32 {dimension_numbers = #tpu.dot_dimension_numbers<[2], [2], [1], [1], [0, 0, 0, 1, 1, 1], [0], [0]>} : vector<4x16x32xbf16>, vector<4x16x32xbf16>, vector<4x16x16xf32> -> vector<4x16x16xf32>
    %cst_33 = arith.constant 0.176776692 : f32
    %113 = vector.broadcast %cst_33 : f32 to vector<4x16x16xf32>
    %114 = arith.mulf %112, %113 : vector<4x16x16xf32>
    %cst_34 = arith.constant dense<0xFF800000> : vector<4x16xf32>
    %115 = vector.multi_reduction <maximumf>, %114, %cst_34 [2] : vector<4x16x16xf32> to vector<4x16xf32>
    %116 = vector.shape_cast %115 : vector<4x16xf32> to vector<4x16x1xf32>
    %117 = vector.broadcast %116 : vector<4x16x1xf32> to vector<4x16x16xf32>
    %118 = arith.subf %114, %117 : vector<4x16x16xf32>
    %119 = math.exp %118 : vector<4x16x16xf32>
    %cst_35 = arith.constant dense<0.000000e+00> : vector<4x16xf32>
    %120 = vector.multi_reduction <add>, %119, %cst_35 [2] : vector<4x16x16xf32> to vector<4x16xf32>
    %121 = vector.shape_cast %120 : vector<4x16xf32> to vector<4x16x1xf32>
    %122 = tpu.reciprocal %121 {approx = true} : vector<4x16x1xf32> -> vector<4x16x1xf32>
    %123 = vector.broadcast %122 : vector<4x16x1xf32> to vector<4x16x16xf32>
    %124 = arith.mulf %119, %123 : vector<4x16x16xf32>
    %125 = arith.truncf %124 : vector<4x16x16xf32> to vector<4x16x16xbf16>
    %cst_36 = arith.constant dense<0.000000e+00> : vector<4x16x32xf32>
    %126 = tpu.matmul %125, %111, %cst_36 {dimension_numbers = #tpu.dot_dimension_numbers<[2], [1], [1], [2], [0, 0, 0, 1, 1, 2], [0], [0]>} : vector<4x16x16xbf16>, vector<4x16x32xbf16>, vector<4x16x32xf32> -> vector<4x16x32xf32>
    %127 = arith.truncf %126 : vector<4x16x32xf32> to vector<4x16x32xbf16>
    %128 = vector.extract_strided_slice %104 {offsets = [0, 0, 32], sizes = [4, 16, 32], strides = [1, 1, 1]} : vector<4x16x128xbf16> to vector<4x16x32xbf16>
    %129 = vector.extract_strided_slice %106 {offsets = [0, 0, 32], sizes = [4, 16, 32], strides = [1, 1, 1]} : vector<4x16x128xbf16> to vector<4x16x32xbf16>
    %130 = vector.extract_strided_slice %108 {offsets = [0, 0, 32], sizes = [4, 16, 32], strides = [1, 1, 1]} : vector<4x16x128xbf16> to vector<4x16x32xbf16>
    %cst_37 = arith.constant dense<0.000000e+00> : vector<4x16x16xf32>
    %131 = tpu.matmul %128, %129, %cst_37 {dimension_numbers = #tpu.dot_dimension_numbers<[2], [2], [1], [1], [0, 0, 0, 1, 1, 1], [0], [0]>} : vector<4x16x32xbf16>, vector<4x16x32xbf16>, vector<4x16x16xf32> -> vector<4x16x16xf32>
    %cst_38 = arith.constant 0.176776692 : f32
    %132 = vector.broadcast %cst_38 : f32 to vector<4x16x16xf32>
    %133 = arith.mulf %131, %132 : vector<4x16x16xf32>
    %cst_39 = arith.constant dense<0xFF800000> : vector<4x16xf32>
    %134 = vector.multi_reduction <maximumf>, %133, %cst_39 [2] : vector<4x16x16xf32> to vector<4x16xf32>
    %135 = vector.shape_cast %134 : vector<4x16xf32> to vector<4x16x1xf32>
    %136 = vector.broadcast %135 : vector<4x16x1xf32> to vector<4x16x16xf32>
    %137 = arith.subf %133, %136 : vector<4x16x16xf32>
    %138 = math.exp %137 : vector<4x16x16xf32>
    %cst_40 = arith.constant dense<0.000000e+00> : vector<4x16xf32>
    %139 = vector.multi_reduction <add>, %138, %cst_40 [2] : vector<4x16x16xf32> to vector<4x16xf32>
    %140 = vector.shape_cast %139 : vector<4x16xf32> to vector<4x16x1xf32>
    %141 = tpu.reciprocal %140 {approx = true} : vector<4x16x1xf32> -> vector<4x16x1xf32>
    %142 = vector.broadcast %141 : vector<4x16x1xf32> to vector<4x16x16xf32>
    %143 = arith.mulf %138, %142 : vector<4x16x16xf32>
    %144 = arith.truncf %143 : vector<4x16x16xf32> to vector<4x16x16xbf16>
    %cst_41 = arith.constant dense<0.000000e+00> : vector<4x16x32xf32>
    %145 = tpu.matmul %144, %130, %cst_41 {dimension_numbers = #tpu.dot_dimension_numbers<[2], [1], [1], [2], [0, 0, 0, 1, 1, 2], [0], [0]>} : vector<4x16x16xbf16>, vector<4x16x32xbf16>, vector<4x16x32xf32> -> vector<4x16x32xf32>
    %146 = arith.truncf %145 : vector<4x16x32xf32> to vector<4x16x32xbf16>
    %147 = vector.extract_strided_slice %104 {offsets = [0, 0, 64], sizes = [4, 16, 32], strides = [1, 1, 1]} : vector<4x16x128xbf16> to vector<4x16x32xbf16>
    %148 = vector.extract_strided_slice %106 {offsets = [0, 0, 64], sizes = [4, 16, 32], strides = [1, 1, 1]} : vector<4x16x128xbf16> to vector<4x16x32xbf16>
    %149 = vector.extract_strided_slice %108 {offsets = [0, 0, 64], sizes = [4, 16, 32], strides = [1, 1, 1]} : vector<4x16x128xbf16> to vector<4x16x32xbf16>
    %cst_42 = arith.constant dense<0.000000e+00> : vector<4x16x16xf32>
    %150 = tpu.matmul %147, %148, %cst_42 {dimension_numbers = #tpu.dot_dimension_numbers<[2], [2], [1], [1], [0, 0, 0, 1, 1, 1], [0], [0]>} : vector<4x16x32xbf16>, vector<4x16x32xbf16>, vector<4x16x16xf32> -> vector<4x16x16xf32>
    %cst_43 = arith.constant 0.176776692 : f32
    %151 = vector.broadcast %cst_43 : f32 to vector<4x16x16xf32>
    %152 = arith.mulf %150, %151 : vector<4x16x16xf32>
    %cst_44 = arith.constant dense<0xFF800000> : vector<4x16xf32>
    %153 = vector.multi_reduction <maximumf>, %152, %cst_44 [2] : vector<4x16x16xf32> to vector<4x16xf32>
    %154 = vector.shape_cast %153 : vector<4x16xf32> to vector<4x16x1xf32>
    %155 = vector.broadcast %154 : vector<4x16x1xf32> to vector<4x16x16xf32>
    %156 = arith.subf %152, %155 : vector<4x16x16xf32>
    %157 = math.exp %156 : vector<4x16x16xf32>
    %cst_45 = arith.constant dense<0.000000e+00> : vector<4x16xf32>
    %158 = vector.multi_reduction <add>, %157, %cst_45 [2] : vector<4x16x16xf32> to vector<4x16xf32>
    %159 = vector.shape_cast %158 : vector<4x16xf32> to vector<4x16x1xf32>
    %160 = tpu.reciprocal %159 {approx = true} : vector<4x16x1xf32> -> vector<4x16x1xf32>
    %161 = vector.broadcast %160 : vector<4x16x1xf32> to vector<4x16x16xf32>
    %162 = arith.mulf %157, %161 : vector<4x16x16xf32>
    %163 = arith.truncf %162 : vector<4x16x16xf32> to vector<4x16x16xbf16>
    %cst_46 = arith.constant dense<0.000000e+00> : vector<4x16x32xf32>
    %164 = tpu.matmul %163, %149, %cst_46 {dimension_numbers = #tpu.dot_dimension_numbers<[2], [1], [1], [2], [0, 0, 0, 1, 1, 2], [0], [0]>} : vector<4x16x16xbf16>, vector<4x16x32xbf16>, vector<4x16x32xf32> -> vector<4x16x32xf32>
    %165 = arith.truncf %164 : vector<4x16x32xf32> to vector<4x16x32xbf16>
    %166 = vector.extract_strided_slice %104 {offsets = [0, 0, 96], sizes = [4, 16, 32], strides = [1, 1, 1]} : vector<4x16x128xbf16> to vector<4x16x32xbf16>
    %167 = vector.extract_strided_slice %106 {offsets = [0, 0, 96], sizes = [4, 16, 32], strides = [1, 1, 1]} : vector<4x16x128xbf16> to vector<4x16x32xbf16>
    %168 = vector.extract_strided_slice %108 {offsets = [0, 0, 96], sizes = [4, 16, 32], strides = [1, 1, 1]} : vector<4x16x128xbf16> to vector<4x16x32xbf16>
    %cst_47 = arith.constant dense<0.000000e+00> : vector<4x16x16xf32>
    %169 = tpu.matmul %166, %167, %cst_47 {dimension_numbers = #tpu.dot_dimension_numbers<[2], [2], [1], [1], [0, 0, 0, 1, 1, 1], [0], [0]>} : vector<4x16x32xbf16>, vector<4x16x32xbf16>, vector<4x16x16xf32> -> vector<4x16x16xf32>
    %cst_48 = arith.constant 0.176776692 : f32
    %170 = vector.broadcast %cst_48 : f32 to vector<4x16x16xf32>
    %171 = arith.mulf %169, %170 : vector<4x16x16xf32>
    %cst_49 = arith.constant dense<0xFF800000> : vector<4x16xf32>
    %172 = vector.multi_reduction <maximumf>, %171, %cst_49 [2] : vector<4x16x16xf32> to vector<4x16xf32>
    %173 = vector.shape_cast %172 : vector<4x16xf32> to vector<4x16x1xf32>
    %174 = vector.broadcast %173 : vector<4x16x1xf32> to vector<4x16x16xf32>
    %175 = arith.subf %171, %174 : vector<4x16x16xf32>
    %176 = math.exp %175 : vector<4x16x16xf32>
    %cst_50 = arith.constant dense<0.000000e+00> : vector<4x16xf32>
    %177 = vector.multi_reduction <add>, %176, %cst_50 [2] : vector<4x16x16xf32> to vector<4x16xf32>
    %178 = vector.shape_cast %177 : vector<4x16xf32> to vector<4x16x1xf32>
    %179 = tpu.reciprocal %178 {approx = true} : vector<4x16x1xf32> -> vector<4x16x1xf32>
    %180 = vector.broadcast %179 : vector<4x16x1xf32> to vector<4x16x16xf32>
    %181 = arith.mulf %176, %180 : vector<4x16x16xf32>
    %182 = arith.truncf %181 : vector<4x16x16xf32> to vector<4x16x16xbf16>
    %cst_51 = arith.constant dense<0.000000e+00> : vector<4x16x32xf32>
    %183 = tpu.matmul %182, %168, %cst_51 {dimension_numbers = #tpu.dot_dimension_numbers<[2], [1], [1], [2], [0, 0, 0, 1, 1, 2], [0], [0]>} : vector<4x16x16xbf16>, vector<4x16x32xbf16>, vector<4x16x32xf32> -> vector<4x16x32xf32>
    %184 = arith.truncf %183 : vector<4x16x32xf32> to vector<4x16x32xbf16>
    %185 = tpu.concatenate %127, %146, %165, %184 in 2 : vector<4x16x32xbf16>, vector<4x16x32xbf16>, vector<4x16x32xbf16>, vector<4x16x32xbf16> -> vector<4x16x128xbf16>
    %186 = vector.shape_cast %185 : vector<4x16x128xbf16> to vector<64x128xbf16>
    %cst_52 = arith.constant dense<0.000000e+00> : vector<64x128xf32>
    %187 = tpu.matmul %186, %2, %cst_52 {dimension_numbers = #tpu.dot_dimension_numbers<[1], [0], [0], [1], [0, 0, 1, 1], [], []>} : vector<64x128xbf16>, vector<128x128xbf16>, vector<64x128xf32> -> vector<64x128xf32>
    %188 = vector.broadcast %3 : vector<1x128xf32> to vector<64x128xf32>
    %189 = arith.addf %187, %188 : vector<64x128xf32>
    %c0_53 = arith.constant 0 : index
    %c0_54 = arith.constant 0 : index
    %190 = vector.load %arg6[%c0_53, %c0_54] : memref<1x128xf32, #tpu.memory_space<vmem>>, vector<1x128xf32>
    %c0_55 = arith.constant 0 : index
    %c0_56 = arith.constant 0 : index
    %191 = vector.load %arg7[%c0_55, %c0_56] : memref<1x128xf32, #tpu.memory_space<vmem>>, vector<1x128xf32>
    %cst_57 = arith.constant dense<0.000000e+00> : vector<64xf32>
    %192 = vector.multi_reduction <add>, %189, %cst_57 [1] : vector<64x128xf32> to vector<64xf32>
    %193 = vector.shape_cast %192 : vector<64xf32> to vector<64x1xf32>
    %cst_58 = arith.constant 1.280000e+02 : f32
    %194 = vector.broadcast %cst_58 : f32 to vector<64x1xf32>
    %195 = arith.divf %193, %194 : vector<64x1xf32>
    %196 = vector.broadcast %195 : vector<64x1xf32> to vector<64x128xf32>
    %197 = arith.subf %189, %196 : vector<64x128xf32>
    %198 = arith.mulf %197, %197 : vector<64x128xf32>
    %cst_59 = arith.constant dense<0.000000e+00> : vector<64xf32>
    %199 = vector.multi_reduction <add>, %198, %cst_59 [1] : vector<64x128xf32> to vector<64xf32>
    %200 = vector.shape_cast %199 : vector<64xf32> to vector<64x1xf32>
    %cst_60 = arith.constant 1.270000e+02 : f32
    %201 = vector.broadcast %cst_60 : f32 to vector<64x1xf32>
    %202 = arith.divf %200, %201 : vector<64x1xf32>
    %203 = math.sqrt %202 : vector<64x1xf32>
    %cst_61 = arith.constant 9.99999997E-7 : f32
    %204 = vector.broadcast %cst_61 : f32 to vector<64x1xf32>
    %205 = arith.addf %203, %204 : vector<64x1xf32>
    %cst_62 = arith.constant 1.000000e+00 : f32
    %206 = vector.broadcast %cst_62 : f32 to vector<64x1xf32>
    %207 = arith.divf %206, %205 : vector<64x1xf32>
    %208 = vector.broadcast %207 : vector<64x1xf32> to vector<64x128xf32>
    %209 = arith.mulf %197, %208 : vector<64x128xf32>
    %210 = vector.broadcast %190 : vector<1x128xf32> to vector<64x128xf32>
    %211 = arith.mulf %209, %210 : vector<64x128xf32>
    %212 = vector.broadcast %191 : vector<1x128xf32> to vector<64x128xf32>
    %213 = arith.addf %211, %212 : vector<64x128xf32>
    %214 = vector.shape_cast %213 : vector<64x128xf32> to vector<4x16x128xf32>
    %c0_63 = arith.constant 0 : index
    %c0_64 = arith.constant 0 : index
    %c0_65 = arith.constant 0 : index
    %215 = vector.load %arg8[%c0_63, %c0_64, %c0_65] : memref<4x16x128xf32, #tpu.memory_space<vmem>>, vector<4x16x128xf32>
    tpu.vector_store %arg8[%c0_63, %c0_64, %c0_65], %214 {strides = array<i32>} : memref<4x16x128xf32, #tpu.memory_space<vmem>>, vector<4x16x128xf32>,
    return
  }
  func.func @transform_0(%arg0: i32) -> (i32, i32, i32) {
    %c0_i32 = arith.constant 0 : i32
    %c0_i32_0 = arith.constant 0 : i32
    %c0_i32_1 = arith.constant 0 : i32
    return %arg0, %c0_i32, %c0_i32_0 : i32, i32, i32
  }
  func.func @transform_1(%arg0: i32) -> (i32, i32) {
    %c0_i32 = arith.constant 0 : i32
    %c0_i32_0 = arith.constant 0 : i32
    %c0_i32_1 = arith.constant 0 : i32
    return %c0_i32, %c0_i32_0 : i32, i32
  }
  func.func @transform_2(%arg0: i32) -> (i32, i32) {
    %c0_i32 = arith.constant 0 : i32
    %c0_i32_0 = arith.constant 0 : i32
    %c0_i32_1 = arith.constant 0 : i32
    return %c0_i32, %c0_i32_0 : i32, i32
  }
  func.func @transform_3(%arg0: i32) -> (i32, i32) {
    %c0_i32 = arith.constant 0 : i32
    %c0_i32_0 = arith.constant 0 : i32
    %c0_i32_1 = arith.constant 0 : i32
    return %c0_i32, %c0_i32_0 : i32, i32
  }
  func.func @transform_4(%arg0: i32) -> (i32, i32) {
    %c0_i32 = arith.constant 0 : i32
    %c0_i32_0 = arith.constant 0 : i32
    %c0_i32_1 = arith.constant 0 : i32
    return %c0_i32, %c0_i32_0 : i32, i32
  }
  func.func @transform_5(%arg0: i32) -> (i32, i32) {
    %c0_i32 = arith.constant 0 : i32
    %c0_i32_0 = arith.constant 0 : i32
    %c0_i32_1 = arith.constant 0 : i32
    return %c0_i32, %c0_i32_0 : i32, i32
  }
  func.func @transform_6(%arg0: i32) -> (i32, i32) {
    %c0_i32 = arith.constant 0 : i32
    %c0_i32_0 = arith.constant 0 : i32
    %c0_i32_1 = arith.constant 0 : i32
    return %c0_i32, %c0_i32_0 : i32, i32
  }
  func.func @transform_7(%arg0: i32) -> (i32, i32, i32) {
    %c0_i32 = arith.constant 0 : i32
    %c0_i32_0 = arith.constant 0 : i32
    %c0_i32_1 = arith.constant 0 : i32
    return %arg0, %c0_i32, %c0_i32_0 : i32, i32, i32
  }
}

</mosaic_0001>

<llo_original>
// kernel: tpu_custom_call.1
$region0: #{tpu_custom_call.1}
  #allocation0 [shape = 'u32[]', space=smem, size = 0x4, offset = 0x4, fixed_abs, tag = 'smem constant byte address 0x4 - core index']
  #allocation1 [shape = 'u32[72,128]{1,0:T(1,128)}', space=vmem, size = 0x9000, scoped, tag = 'internal scratch']
  %s0 = inlined_call_operand.hbm [shape: f32[4,16,128], index: 0, kind: input, shape index: {}]
  %s1 = inlined_call_operand.hbm [shape: bf16[128,384], index: 1, kind: input, shape index: {}]
  %s2 = inlined_call_operand.hbm [shape: f32[1,384], index: 2, kind: input, shape index: {}]
  %s3 = inlined_call_operand.hbm [shape: bf16[128,128], index: 3, kind: input, shape index: {}]
  %s4 = inlined_call_operand.vmem [shape: f32[1,128], index: 4, kind: input, shape index: {}]
  %s5 = inlined_call_operand.vmem [shape: f32[1,128], index: 5, kind: input, shape index: {}]
  %s6 = inlined_call_operand.vmem [shape: f32[1,128], index: 6, kind: input, shape index: {}]
  %s7 = inlined_call_operand.hbm [shape: f32[4,16,128], index: 7, kind: output, shape index: {}]
  %s8 = sld [smem:[#allocation0]]
  $region54: #{tpu_custom_call.1} parent=0
    _
  %s10 = ssub.s32 1, %s8
  %s11 = scalar_select 0, %s10, %s8
  $region1: #{tpu_custom_call.1} parent=0
    #allocation2 [shape = 'u8[32768]{0}', space=vmem, size = 0x8000, scoped, tag = 'input window, operand 0, single buffered']
    #allocation3 [shape = 's32[1]{0}', space=sflag, size = 0x4, scoped, tag = 'scoped memory for tpu_custom_call.1']
    #allocation4 [shape = 's32[1]{0}', space=sflag, size = 0x4, scoped, tag = 'scoped memory for tpu_custom_call.1']
    #allocation5 [shape = 'u8[98304]{0}', space=vmem, size = 0x18000, scoped, tag = 'input window, operand 1, single buffered']
    #allocation6 [shape = 's32[1]{0}', space=sflag, size = 0x4, scoped, tag = 'scoped memory for tpu_custom_call.1']
    #allocation7 [shape = 'u8[1536]{0}', space=vmem, size = 0x800, scoped, tag = 'input window, operand 2, single buffered']
    #allocation8 [shape = 'u8[32768]{0}', space=vmem, size = 0x8000, scoped, tag = 'input window, operand 3, single buffered']
    #allocation9 [shape = 's32[1]{0}', space=sflag, size = 0x4, scoped, tag = 'scoped memory for tpu_custom_call.1']
    #allocation10 [shape = 'u8[32768]{0}', space=vmem, size = 0x8000, scoped, tag = 'output window, operand 0, single buffered']
    %12 = vsyncpa [#allocation3], 0
    %13 = vsyncpa [#allocation6], 0
    %14 = vsyncpa [#allocation9], 0
    %15 = vsyncpa [#allocation4], 0
    // Predicated region
    $region2: #{tpu_custom_call.1} parent=1 // pred_check
      _
    $region3: #{tpu_custom_call.1} parent=1 // pred_check_branch
      %17 = sbr.rel (0) target = $region5
    $region4: #{tpu_custom_call.1} parent=1 // pred_region
      %19 = vsyncadd [#allocation3], 0
      %s20 = sshll.u32 %s0, 4
      %s21 = int_to_ptr.hbm [resolvable:$true] %s20
      %s22 = sshll.u32 [#allocation2], 4
      %s23 = int_to_ptr.vmem [resolvable:$true] %s22
      %28 = dma.hbm_to_vmem [thread:$0]  %s21, 1024, %s23, [#allocation3], 128, 128, 8
    $region5: #{tpu_custom_call.1} parent=1 // pred_fallthru
      _
    // Predicated region
    $region6: #{tpu_custom_call.1} parent=1 // pred_check
      _
    $region7: #{tpu_custom_call.1} parent=1 // pred_check_branch
      %30 = sbr.rel (0) target = $region9
    $region8: #{tpu_custom_call.1} parent=1 // pred_region
      %32 = vsyncadd [#allocation6], 0
      %s33 = sshll.u32 %s1, 4
      %s34 = int_to_ptr.hbm [resolvable:$true] %s33
      %s35 = sshll.u32 [#allocation5], 4
      %s36 = int_to_ptr.vmem [resolvable:$true] %s35
      %41 = dma.hbm_to_vmem [thread:$0]  %s34, 3072, %s36, [#allocation6], 192, 192, 12
    $region9: #{tpu_custom_call.1} parent=1 // pred_fallthru
      _
    // Predicated region
    $region10: #{tpu_custom_call.1} parent=1 // pred_check
      _
    $region11: #{tpu_custom_call.1} parent=1 // pred_check_branch
      %43 = sbr.rel (0) target = $region13
    $region12: #{tpu_custom_call.1} parent=1 // pred_region
      %45 = vsyncadd [#allocation6], 0
      %s47 = sshll.u32 %s2, 4
      %s48 = int_to_ptr.hbm [resolvable:$true] %s47
      %s49 = sshll.u32 [#allocation7], 4
      %s50 = int_to_ptr.vmem [resolvable:$true] %s49
      %52 = dma.hbm_to_vmem [thread:$0]  %s48, 48, %s50, [#allocation6]
    $region13: #{tpu_custom_call.1} parent=1 // pred_fallthru
      _
    // Predicated region
    $region14: #{tpu_custom_call.1} parent=1 // pred_check
      _
    $region15: #{tpu_custom_call.1} parent=1 // pred_check_branch
      %54 = sbr.rel (0) target = $region17
    $region16: #{tpu_custom_call.1} parent=1 // pred_region
      %56 = vsyncadd [#allocation9], 0
      %s57 = sshll.u32 %s3, 4
      %s58 = int_to_ptr.hbm [resolvable:$true] %s57
      %s59 = sshll.u32 [#allocation8], 4
      %s60 = int_to_ptr.vmem [resolvable:$true] %s59
      %65 = dma.hbm_to_vmem [thread:$0]  %s58, 1024, %s60, [#allocation9], 64, 64, 4
    $region17: #{tpu_custom_call.1} parent=1 // pred_fallthru
      _
    // Predicated region
    $region18: #{tpu_custom_call.1} parent=1 // pred_check
      _
    $region19: #{tpu_custom_call.1} parent=1 // pred_check_branch
      %67 = sbr.rel (0) target = $region21
    $region20: #{tpu_custom_call.1} parent=1 // pred_region
      _
    $region21: #{tpu_custom_call.1} parent=1 // pred_fallthru
      _
    // Predicated region
    $region22: #{tpu_custom_call.1} parent=1 // pred_check
      _
    $region23: #{tpu_custom_call.1} parent=1 // pred_check_branch
      %69 = sbr.rel (0) target = $region25
    $region24: #{tpu_custom_call.1} parent=1 // pred_region
      _
    $region25: #{tpu_custom_call.1} parent=1 // pred_fallthru
      _
    // Predicated region
    $region26: #{tpu_custom_call.1} parent=1 // pred_check
      _
    $region27: #{tpu_custom_call.1} parent=1 // pred_check_branch
      %71 = sbr.rel (0) target = $region29
    $region28: #{tpu_custom_call.1} parent=1 // pred_region
      _
    $region29: #{tpu_custom_call.1} parent=1 // pred_fallthru
      _
    // Predicated region
    $region30: #{tpu_custom_call.1} parent=1 // pred_check
      _
    $region31: #{tpu_custom_call.1} parent=1 // pred_check_branch
      %73 = sbr.rel (0) target = $region33
    $region32: #{tpu_custom_call.1} parent=1 // pred_region
      %75 = dma.done [#allocation3], 1024
    $region33: #{tpu_custom_call.1} parent=1 // pred_fallthru
      _
    // Predicated region
    $region34: #{tpu_custom_call.1} parent=1 // pred_check
      _
    $region35: #{tpu_custom_call.1} parent=1 // pred_check_branch
      %77 = sbr.rel (0) target = $region37
    $region36: #{tpu_custom_call.1} parent=1 // pred_region
      %79 = dma.done [#allocation6], 3072
    $region37: #{tpu_custom_call.1} parent=1 // pred_fallthru
      _
    // Predicated region
    $region38: #{tpu_custom_call.1} parent=1 // pred_check
      _
    $region39: #{tpu_custom_call.1} parent=1 // pred_check_branch
      %81 = sbr.rel (0) target = $region41
    $region40: #{tpu_custom_call.1} parent=1 // pred_region
      %83 = dma.done [#allocation6], 48
    $region41: #{tpu_custom_call.1} parent=1 // pred_fallthru
      _
    // Predicated region
    $region42: #{tpu_custom_call.1} parent=1 // pred_check
      _
    $region43: #{tpu_custom_call.1} parent=1 // pred_check_branch
      %85 = sbr.rel (0) target = $region45
    $region44: #{tpu_custom_call.1} parent=1 // pred_region
      %87 = dma.done [#allocation9], 1024
    $region45: #{tpu_custom_call.1} parent=1 // pred_fallthru
      _
    %v89 = vld [vmem:[#allocation5] sm:$0xff]
    %v90 = vld [vmem:[#allocation5 + $0x8] sm:$0xf]
    %v91 = vld [vmem:[#allocation5 + $0xc] sm:$0xff]
    %v92 = vld [vmem:[#allocation5 + $0x14] sm:$0xf]
    %v93 = vld [vmem:[#allocation5 + $0x18] sm:$0xff]
    %v94 = vld [vmem:[#allocation5 + $0x20] sm:$0xf]
    %v95 = vld [vmem:[#allocation5 + $0x24] sm:$0xff]
    %v96 = vld [vmem:[#allocation5 + $0x2c] sm:$0xf]
    %v97 = vld [vmem:[#allocation5 + $0x30] sm:$0xff]
    %v98 = vld [vmem:[#allocation5 + $0x38] sm:$0xf]
    %v99 = vld [vmem:[#allocation5 + $0x3c] sm:$0xff]
    %v100 = vld [vmem:[#allocation5 + $0x44] sm:$0xf]
    %v101 = vld [vmem:[#allocation5 + $0x48] sm:$0xff]
    %v102 = vld [vmem:[#allocation5 + $0x50] sm:$0xf]
    %v103 = vld [vmem:[#allocation5 + $0x54] sm:$0xff]
    %v104 = vld [vmem:[#allocation5 + $0x5c] sm:$0xf]
    %v105 = vld [vmem:[#allocation5 + $0x60] sm:$0xff]
    %v106 = vld [vmem:[#allocation5 + $0x68] sm:$0xf]
    %v107 = vld [vmem:[#allocation5 + $0x6c] sm:$0xff]
    %v108 = vld [vmem:[#allocation5 + $0x74] sm:$0xf]
    %v109 = vld [vmem:[#allocation5 + $0x78] sm:$0xff]
    %v110 = vld [vmem:[#allocation5 + $0x80] sm:$0xf]
    %v111 = vld [vmem:[#allocation5 + $0x84] sm:$0xff]
    %v112 = vld [vmem:[#allocation5 + $0x8c] sm:$0xf]
    %v113 = vld [vmem:[#allocation5 + $0x90] sm:$0xff]
    %v114 = vld [vmem:[#allocation5 + $0x98] sm:$0xf]
    %v115 = vld [vmem:[#allocation5 + $0x9c] sm:$0xff]
    %v116 = vld [vmem:[#allocation5 + $0xa4] sm:$0xf]
    %v117 = vld [vmem:[#allocation5 + $0xa8] sm:$0xff]
    %v118 = vld [vmem:[#allocation5 + $0xb0] sm:$0xf]
    %v119 = vld [vmem:[#allocation5 + $0xb4] sm:$0xff]
    %v120 = vld [vmem:[#allocation5 + $0xbc] sm:$0xf]
    %v121 = vld [vmem:[#allocation7] sm:$0x7]
    %v122 = vld [vmem:[#allocation8] sm:$0xf]
    %v123 = vld [vmem:[#allocation8 + $0x4] sm:$0xf]
    %v124 = vld [vmem:[#allocation8 + $0x8] sm:$0xf]
    %v125 = vld [vmem:[#allocation8 + $0xc] sm:$0xf]
    %v126 = vld [vmem:[#allocation8 + $0x10] sm:$0xf]
    %v127 = vld [vmem:[#allocation8 + $0x14] sm:$0xf]
    %v128 = vld [vmem:[#allocation8 + $0x18] sm:$0xf]
    %v129 = vld [vmem:[#allocation8 + $0x1c] sm:$0xf]
    %v130 = vld [vmem:[#allocation8 + $0x20] sm:$0xf]
    %v131 = vld [vmem:[#allocation8 + $0x24] sm:$0xf]
    %v132 = vld [vmem:[#allocation8 + $0x28] sm:$0xf]
    %v133 = vld [vmem:[#allocation8 + $0x2c] sm:$0xf]
    %v134 = vld [vmem:[#allocation8 + $0x30] sm:$0xf]
    %v135 = vld [vmem:[#allocation8 + $0x34] sm:$0xf]
    %v136 = vld [vmem:[#allocation8 + $0x38] sm:$0xf]
    %v137 = vld [vmem:[#allocation8 + $0x3c] sm:$0xf]
    %v138 = vld [vmem:[%s4] sm:$0x1]
    %v139 = vld [vmem:[#allocation2] sm:$0xff]
    %v140 = vld [vmem:[#allocation2 + $0x8] sm:$0xff]
    %v141 = vld [vmem:[#allocation2 + $0x10] sm:$0xff]
    %v142 = vld [vmem:[#allocation2 + $0x18] sm:$0xff]
    %v143 = vld [vmem:[#allocation2 + $0x20] sm:$0xff]
    %v144 = vld [vmem:[#allocation2 + $0x28] sm:$0xff]
    %v145 = vld [vmem:[#allocation2 + $0x30] sm:$0xff]
    %v146 = vld [vmem:[#allocation2 + $0x38] sm:$0xff]
    %v147 = vpack.c.bf16 %v140, %v139
    %v148 = vpack.c.bf16 %v142, %v141
    %v149 = vpack.c.bf16 %v144, %v143
    %v150 = vpack.c.bf16 %v146, %v145
    %v152 = vperm.slane %v121, 0
    %v153 = vperm.slane %v121, 1
    %v154 = vperm.slane %v121, 2
    %v190 = vunpack.c.l.b16 %v89
    %v191 = vunpack.c.h.b16 %v89
    %v192 = vunpack.c.l.b16 %v90
    %v193 = vunpack.c.l.b16 %v91
    %v194 = vunpack.c.h.b16 %v91
    %v195 = vunpack.c.l.b16 %v92
    %v196 = vunpack.c.l.b16 %v93
    %v197 = vunpack.c.h.b16 %v93
    %v198 = vunpack.c.l.b16 %v94
    %v199 = vunpack.c.l.b16 %v95
    %v200 = vunpack.c.h.b16 %v95
    %v201 = vunpack.c.l.b16 %v96
    %v202 = vunpack.c.l.b16 %v97
    %v203 = vunpack.c.h.b16 %v97
    %v204 = vunpack.c.l.b16 %v98
    %v205 = vunpack.c.l.b16 %v99
    %v206 = vunpack.c.h.b16 %v99
    %v207 = vunpack.c.l.b16 %v100
    %v208 = vunpack.c.l.b16 %v101
    %v209 = vunpack.c.h.b16 %v101
    %v210 = vunpack.c.l.b16 %v102
    %v211 = vunpack.c.l.b16 %v103
    %v212 = vunpack.c.h.b16 %v103
    %v213 = vunpack.c.l.b16 %v104
    %v214 = vunpack.c.l.b16 %v105
    %v215 = vunpack.c.h.b16 %v105
    %v216 = vunpack.c.l.b16 %v106
    %v217 = vunpack.c.l.b16 %v107
    %v218 = vunpack.c.h.b16 %v107
    %v219 = vunpack.c.l.b16 %v108
    %v220 = vunpack.c.l.b16 %v109
    %v221 = vunpack.c.h.b16 %v109
    %v222 = vunpack.c.l.b16 %v110
    %v223 = vunpack.c.l.b16 %v111
    %v224 = vunpack.c.h.b16 %v111
    %v225 = vunpack.c.l.b16 %v112
    %v226 = vunpack.c.l.b16 %v113
    %v227 = vunpack.c.h.b16 %v113
    %v228 = vunpack.c.l.b16 %v114
    %v229 = vunpack.c.l.b16 %v115
    %v230 = vunpack.c.h.b16 %v115
    %v231 = vunpack.c.l.b16 %v116
    %v232 = vunpack.c.l.b16 %v117
    %v233 = vunpack.c.h.b16 %v117
    %v234 = vunpack.c.l.b16 %v118
    %v235 = vunpack.c.l.b16 %v119
    %v236 = vunpack.c.h.b16 %v119
    %v237 = vunpack.c.l.b16 %v120
    %v238 = vpack.c.b16 %v193, %v190
    %v239 = vpack.c.b16 %v194, %v191
    %v240 = vpack.c.b16 %v195, %v192
    %v241 = vpack.c.b16 %v199, %v196
    %v242 = vpack.c.b16 %v200, %v197
    %v243 = vpack.c.b16 %v201, %v198
    %v244 = vpack.c.b16 %v205, %v202
    %v245 = vpack.c.b16 %v206, %v203
    %v246 = vpack.c.b16 %v207, %v204
    %v247 = vpack.c.b16 %v211, %v208
    %v248 = vpack.c.b16 %v212, %v209
    %v249 = vpack.c.b16 %v213, %v210
    %v250 = vpack.c.b16 %v217, %v214
    %v251 = vpack.c.b16 %v218, %v215
    %v252 = vpack.c.b16 %v219, %v216
    %v253 = vpack.c.b16 %v223, %v220
    %v254 = vpack.c.b16 %v224, %v221
    %v255 = vpack.c.b16 %v225, %v222
    %v256 = vpack.c.b16 %v229, %v226
    %v257 = vpack.c.b16 %v230, %v227
    %v258 = vpack.c.b16 %v231, %v228
    %v259 = vpack.c.b16 %v235, %v232
    %v260 = vpack.c.b16 %v236, %v233
    %v261 = vpack.c.b16 %v237, %v234
    %286 = vmatpush.bf16.msra.mxu0 %v259
    %287 = vmatpush.bf16.msra.mxu0 %v256
    %288 = vmatpush.bf16.msra.mxu0 %v253
    %289 = vmatpush.bf16.msra.mxu0 %v250
    %290 = vmatpush.bf16.msra.mxu0 %v247
    %291 = vmatpush.bf16.msra.mxu0 %v244
    %292 = vmatpush.bf16.msra.mxu0 %v241
    %293 = vmatpush.bf16.msra.mxu0 %v238
    %294 = vmatmul.bf16.gmra.mxu0 %v147
    %v295 = vpop.f32.mrf.mxu0
    %v296 = vadd.f32 %v152, %v295
    %v297 = vpop.f32.mrf.mxu0
    %v298 = vadd.f32 %v152, %v297
    %299 = vmatmul.bf16.gmra.mxu0 %v148
    %v300 = vpop.f32.mrf.mxu0
    %v301 = vadd.f32 %v152, %v300
    %v302 = vpop.f32.mrf.mxu0
    %v303 = vadd.f32 %v152, %v302
    %304 = vmatmul.bf16.gmra.mxu0 %v149
    %v305 = vpop.f32.mrf.mxu0
    %v306 = vadd.f32 %v152, %v305
    %v307 = vpop.f32.mrf.mxu0
    %v308 = vadd.f32 %v152, %v307
    %309 = vmatmul.bf16.gmra.mxu0 %v150
    %v310 = vpop.f32.mrf.mxu0
    %v311 = vadd.f32 %v152, %v310
    %v312 = vpop.f32.mrf.mxu0
    %v313 = vadd.f32 %v152, %v312
    %314 = vdwg.mxu0
    %315 = vmatpush.bf16.msra.mxu0 %v260
    %316 = vmatpush.bf16.msra.mxu0 %v257
    %317 = vmatpush.bf16.msra.mxu0 %v254
    %318 = vmatpush.bf16.msra.mxu0 %v251
    %319 = vmatpush.bf16.msra.mxu0 %v248
    %320 = vmatpush.bf16.msra.mxu0 %v245
    %321 = vmatpush.bf16.msra.mxu0 %v242
    %322 = vmatpush.bf16.msra.mxu0 %v239
    %323 = vmatmul.bf16.gmra.mxu0 %v147
    %v324 = vpop.f32.mrf.mxu0
    %v325 = vadd.f32 %v153, %v324
    %v326 = vpop.f32.mrf.mxu0
    %v327 = vadd.f32 %v153, %v326
    %328 = vmatmul.bf16.gmra.mxu0 %v148
    %v329 = vpop.f32.mrf.mxu0
    %v330 = vadd.f32 %v153, %v329
    %v331 = vpop.f32.mrf.mxu0
    %v332 = vadd.f32 %v153, %v331
    %333 = vmatmul.bf16.gmra.mxu0 %v149
    %v334 = vpop.f32.mrf.mxu0
    %v335 = vadd.f32 %v153, %v334
    %v336 = vpop.f32.mrf.mxu0
    %v337 = vadd.f32 %v153, %v336
    %338 = vmatmul.bf16.gmra.mxu0 %v150
    %v339 = vpop.f32.mrf.mxu0
    %v340 = vadd.f32 %v153, %v339
    %v341 = vpop.f32.mrf.mxu0
    %v342 = vadd.f32 %v153, %v341
    %343 = vdwg.mxu0
    %344 = vmatpush.bf16.msra.mxu0 %v261
    %345 = vmatpush.bf16.msra.mxu0 %v258
    %346 = vmatpush.bf16.msra.mxu0 %v255
    %347 = vmatpush.bf16.msra.mxu0 %v252
    %348 = vmatpush.bf16.msra.mxu0 %v249
    %349 = vmatpush.bf16.msra.mxu0 %v246
    %350 = vmatpush.bf16.msra.mxu0 %v243
    %351 = vmatpush.bf16.msra.mxu0 %v240
    %352 = vmatmul.bf16.gmra.mxu0 %v147
    %v353 = vpop.f32.mrf.mxu0
    %v354 = vadd.f32 %v154, %v353
    %v355 = vpop.f32.mrf.mxu0
    %v356 = vadd.f32 %v154, %v355
    %357 = vmatmul.bf16.gmra.mxu0 %v148
    %v358 = vpop.f32.mrf.mxu0
    %v359 = vadd.f32 %v154, %v358
    %v360 = vpop.f32.mrf.mxu0
    %v361 = vadd.f32 %v154, %v360
    %362 = vmatmul.bf16.gmra.mxu0 %v149
    %v363 = vpop.f32.mrf.mxu0
    %v364 = vadd.f32 %v154, %v363
    %v365 = vpop.f32.mrf.mxu0
    %v366 = vadd.f32 %v154, %v365
    %367 = vmatmul.bf16.gmra.mxu0 %v150
    %v368 = vpop.f32.mrf.mxu0
    %v369 = vadd.f32 %v154, %v368
    %v370 = vpop.f32.mrf.mxu0
    %v371 = vadd.f32 %v154, %v370
    %372 = vdwg.mxu0
    %v373 = vpack.c.bf16 %v325, %v296
    %v374 = vpack.c.bf16 %v354, %v354
    %v375 = vpack.c.bf16 %v327, %v298
    %v376 = vpack.c.bf16 %v356, %v356
    %v377 = vpack.c.bf16 %v330, %v301
    %v378 = vpack.c.bf16 %v359, %v359
    %v379 = vpack.c.bf16 %v332, %v303
    %v380 = vpack.c.bf16 %v361, %v361
    %v381 = vpack.c.bf16 %v335, %v306
    %v382 = vpack.c.bf16 %v364, %v364
    %v383 = vpack.c.bf16 %v337, %v308
    %v384 = vpack.c.bf16 %v366, %v366
    %v385 = vpack.c.bf16 %v340, %v311
    %v386 = vpack.c.bf16 %v369, %v369
    %v387 = vpack.c.bf16 %v342, %v313
    %v388 = vpack.c.bf16 %v371, %v371
    %v397 = vrot.slane %v373, 4
    %v398 = vrot.slane %v375, 4
    %v399 = vrot.slane %v377, 4
    %v400 = vrot.slane %v379, 4
    %v401 = vrot.slane %v381, 4
    %v402 = vrot.slane %v383, 4
    %v403 = vrot.slane %v385, 4
    %v404 = vrot.slane %v387, 4
    %v405 = vunpack.c.l.b16 %v373
    %v406 = vunpack.c.l.b16 %v375
    %v407 = vpack.c.b16 %v406, %v405
    %v408 = vunpack.c.l.b16 %v397
    %v409 = vunpack.c.l.b16 %v398
    %v410 = vpack.c.b16 %v409, %v408
    %vm411 = vcmask 261120
    %v413 = vsel %vm411, %v407, 0
    %v416 = vsel %vm411, %v410, 0
    %418 = vmatpush.bf16.xpose.msra.mxu0 0
    %419 = vmatpush.bf16.xpose.msra.mxu0 0
    %420 = vmatpush.bf16.xpose.msra.mxu0 0
    %421 = vmatpush.bf16.xpose.msra.mxu0 0
    %422 = vmatpush.bf16.xpose.msra.mxu0 0
    %423 = vmatpush.bf16.xpose.msra.mxu0 0
    %424 = vmatpush.bf16.xpose.msra.mxu0 0
    %425 = vmatpush.bf16.xpose.msra.mxu0 %v416
    %426 = vmatmul.bf16.gmra.mxu0 %v413
    %v427 = vpop.f32.mrf.mxu0
    %v428 = vadd.f32 0.0, %v427
    %v429 = vpop.f32.mrf.mxu0
    %v430 = vadd.f32 0.0, %v429
    %431 = vdwg.mxu0
    %v432 = vunpack.c.l.b16 %v377
    %v433 = vunpack.c.l.b16 %v379
    %v434 = vpack.c.b16 %v433, %v432
    %v435 = vunpack.c.l.b16 %v399
    %v436 = vunpack.c.l.b16 %v400
    %v437 = vpack.c.b16 %v436, %v435
    %v439 = vsel %vm411, %v434, 0
    %v442 = vsel %vm411, %v437, 0
    %444 = vmatpush.bf16.xpose.msra.mxu0 0
    %445 = vmatpush.bf16.xpose.msra.mxu0 0
    %446 = vmatpush.bf16.xpose.msra.mxu0 0
    %447 = vmatpush.bf16.xpose.msra.mxu0 0
    %448 = vmatpush.bf16.xpose.msra.mxu0 0
    %449 = vmatpush.bf16.xpose.msra.mxu0 0
    %450 = vmatpush.bf16.xpose.msra.mxu0 0
    %451 = vmatpush.bf16.xpose.msra.mxu0 %v442
    %452 = vmatmul.bf16.gmra.mxu0 %v439
    %v453 = vpop.f32.mrf.mxu0
    %v454 = vadd.f32 0.0, %v453
    %v455 = vpop.f32.mrf.mxu0
    %v456 = vadd.f32 0.0, %v455
    %457 = vdwg.mxu0
    %v458 = vunpack.c.l.b16 %v381
    %v459 = vunpack.c.l.b16 %v383
    %v460 = vpack.c.b16 %v459, %v458
    %v461 = vunpack.c.l.b16 %v401
    %v462 = vunpack.c.l.b16 %v402
    %v463 = vpack.c.b16 %v462, %v461
    %v465 = vsel %vm411, %v460, 0
    %v468 = vsel %vm411, %v463, 0
    %470 = vmatpush.bf16.xpose.msra.mxu0 0
    %471 = vmatpush.bf16.xpose.msra.mxu0 0
    %472 = vmatpush.bf16.xpose.msra.mxu0 0
    %473 = vmatpush.bf16.xpose.msra.mxu0 0
    %474 = vmatpush.bf16.xpose.msra.mxu0 0
    %475 = vmatpush.bf16.xpose.msra.mxu0 0
    %476 = vmatpush.bf16.xpose.msra.mxu0 0
    %477 = vmatpush.bf16.xpose.msra.mxu0 %v468
    %478 = vmatmul.bf16.gmra.mxu0 %v465
    %v479 = vpop.f32.mrf.mxu0
    %v480 = vadd.f32 0.0, %v479
    %v481 = vpop.f32.mrf.mxu0
    %v482 = vadd.f32 0.0, %v481
    %483 = vdwg.mxu0
    %v484 = vunpack.c.l.b16 %v385
    %v485 = vunpack.c.l.b16 %v387
    %v486 = vpack.c.b16 %v485, %v484
    %v487 = vunpack.c.l.b16 %v403
    %v488 = vunpack.c.l.b16 %v404
    %v489 = vpack.c.b16 %v488, %v487
    %v491 = vsel %vm411, %v486, 0
    %v494 = vsel %vm411, %v489, 0
    %496 = vmatpush.bf16.xpose.msra.mxu0 0
    %497 = vmatpush.bf16.xpose.msra.mxu0 0
    %498 = vmatpush.bf16.xpose.msra.mxu0 0
    %499 = vmatpush.bf16.xpose.msra.mxu0 0
    %500 = vmatpush.bf16.xpose.msra.mxu0 0
    %501 = vmatpush.bf16.xpose.msra.mxu0 0
    %502 = vmatpush.bf16.xpose.msra.mxu0 0
    %503 = vmatpush.bf16.xpose.msra.mxu0 %v494
    %504 = vmatmul.bf16.gmra.mxu0 %v491
    %v505 = vpop.f32.mrf.mxu0
    %v506 = vadd.f32 0.0, %v505
    %v507 = vpop.f32.mrf.mxu0
    %v508 = vadd.f32 0.0, %v507
    %509 = vdwg.mxu0
    %v510 = vmul.f32 %v428, 0.17677669
    %v511 = vmul.f32 %v430, 0.17677669
    %v512 = vmul.f32 %v454, 0.17677669
    %v513 = vmul.f32 %v456, 0.17677669
    %v514 = vmul.f32 %v480, 0.17677669
    %v515 = vmul.f32 %v482, 0.17677669
    %v516 = vmul.f32 %v506, 0.17677669
    %v517 = vmul.f32 %v508, 0.17677669
    %vm518 = vcmask 130048
    %v519 = vsel %vm518, %v510, -inf
    %520 = vmax.xlane.f32.xlu0 %v519
    %v521 = vpop.xlane.xlu0 %520
    %v522 = vsel %vm518, %v511, -inf
    %523 = vmax.xlane.f32.xlu0 %v522
    %v524 = vpop.xlane.xlu0 %523
    %v525 = vsel %vm518, %v512, -inf
    %526 = vmax.xlane.f32.xlu0 %v525
    %v527 = vpop.xlane.xlu0 %526
    %v528 = vsel %vm518, %v513, -inf
    %529 = vmax.xlane.f32.xlu0 %v528
    %v530 = vpop.xlane.xlu0 %529
    %v531 = vsel %vm518, %v514, -inf
    %532 = vmax.xlane.f32.xlu0 %v531
    %v533 = vpop.xlane.xlu0 %532
    %v534 = vsel %vm518, %v515, -inf
    %535 = vmax.xlane.f32.xlu0 %v534
    %v536 = vpop.xlane.xlu0 %535
    %v537 = vsel %vm518, %v516, -inf
    %538 = vmax.xlane.f32.xlu0 %v537
    %v539 = vpop.xlane.xlu0 %538
    %v540 = vsel %vm518, %v517, -inf
    %541 = vmax.xlane.f32.xlu0 %v540
    %v542 = vpop.xlane.xlu0 %541
    %v543 = vsub.f32 %v510, %v521
    %v544 = vsub.f32 %v511, %v524
    %v545 = vsub.f32 %v512, %v527
    %v546 = vsub.f32 %v513, %v530
    %v547 = vsub.f32 %v514, %v533
    %v548 = vsub.f32 %v515, %v536
    %v549 = vsub.f32 %v516, %v539
    %v550 = vsub.f32 %v517, %v542
    %v551 = vmul.f32 %v543, 1.442695
    %v552 = vpow.pop %v551
    %v553 = vmul.f32 %v544, 1.442695
    %v554 = vpow.pop %v553
    %v555 = vmul.f32 %v545, 1.442695
    %v556 = vpow.pop %v555
    %v557 = vmul.f32 %v546, 1.442695
    %v558 = vpow.pop %v557
    %v559 = vmul.f32 %v547, 1.442695
    %v560 = vpow.pop %v559
    %v561 = vmul.f32 %v548, 1.442695
    %v562 = vpow.pop %v561
    %v563 = vmul.f32 %v549, 1.442695
    %v564 = vpow.pop %v563
    %v565 = vmul.f32 %v550, 1.442695
    %v566 = vpow.pop %v565
    %v567 = vsel %vm518, %v552, 0.0
    %568 = vadd.xlane.f32.xlu0 %v567
    %v569 = vpop.xlane.xlu0 %568
    %v570 = vsel %vm518, %v554, 0.0
    %571 = vadd.xlane.f32.xlu0 %v570
    %v572 = vpop.xlane.xlu0 %571
    %v573 = vsel %vm518, %v556, 0.0
    %574 = vadd.xlane.f32.xlu0 %v573
    %v575 = vpop.xlane.xlu0 %574
    %v576 = vsel %vm518, %v558, 0.0
    %577 = vadd.xlane.f32.xlu0 %v576
    %v578 = vpop.xlane.xlu0 %577
    %v579 = vsel %vm518, %v560, 0.0
    %580 = vadd.xlane.f32.xlu0 %v579
    %v581 = vpop.xlane.xlu0 %580
    %v582 = vsel %vm518, %v562, 0.0
    %583 = vadd.xlane.f32.xlu0 %v582
    %v584 = vpop.xlane.xlu0 %583
    %v585 = vsel %vm518, %v564, 0.0
    %586 = vadd.xlane.f32.xlu0 %v585
    %v587 = vpop.xlane.xlu0 %586
    %v588 = vsel %vm518, %v566, 0.0
    %589 = vadd.xlane.f32.xlu0 %v588
    %v590 = vpop.xlane.xlu0 %589
    %v591 = vrcp.pop %v569
    %v592 = vrcp.pop %v572
    %v593 = vrcp.pop %v575
    %v594 = vrcp.pop %v578
    %v595 = vrcp.pop %v581
    %v596 = vrcp.pop %v584
    %v597 = vrcp.pop %v587
    %v598 = vrcp.pop %v590
    %v599 = vmul.f32 %v552, %v591
    %v600 = vmul.f32 %v554, %v592
    %v601 = vmul.f32 %v556, %v593
    %v602 = vmul.f32 %v558, %v594
    %v603 = vmul.f32 %v560, %v595
    %v604 = vmul.f32 %v562, %v596
    %v605 = vmul.f32 %v564, %v597
    %v606 = vmul.f32 %v566, %v598
    %v607 = vpack.c.bf16 %v599, %v599
    %v608 = vpack.c.bf16 %v600, %v600
    %v609 = vpack.c.bf16 %v601, %v601
    %v610 = vpack.c.bf16 %v602, %v602
    %v611 = vpack.c.bf16 %v603, %v603
    %v612 = vpack.c.bf16 %v604, %v604
    %v613 = vpack.c.bf16 %v605, %v605
    %v614 = vpack.c.bf16 %v606, %v606
    %v617 = vunpack.c.l.b16 %v607
    %v618 = vunpack.c.l.b16 %v608
    %v619 = vpack.c.b16 %v618, %v617
    %v622 = vunpack.c.l.b16 %v374
    %v623 = vunpack.c.l.b16 %v376
    %v624 = vpack.c.b16 %v623, %v622
    %v627 = vsel %vm518, %v619, 0
    %629 = vmatpush.bf16.msra.mxu0 0
    %630 = vmatpush.bf16.msra.mxu0 0
    %631 = vmatpush.bf16.msra.mxu0 0
    %632 = vmatpush.bf16.msra.mxu0 0
    %633 = vmatpush.bf16.msra.mxu0 0
    %634 = vmatpush.bf16.msra.mxu0 0
    %635 = vmatpush.bf16.msra.mxu0 0
    %636 = vmatpush.bf16.msra.mxu0 %v624
    %637 = vmatmul.bf16.gmra.mxu0 %v627
    %v638 = vpop.f32.mrf.mxu0
    %v639 = vadd.f32 0.0, %v638
    %v640 = vpop.f32.mrf.mxu0
    %v641 = vadd.f32 0.0, %v640
    %642 = vdwg.mxu0
    %v645 = vunpack.c.l.b16 %v609
    %v646 = vunpack.c.l.b16 %v610
    %v647 = vpack.c.b16 %v646, %v645
    %v650 = vunpack.c.l.b16 %v378
    %v651 = vunpack.c.l.b16 %v380
    %v652 = vpack.c.b16 %v651, %v650
    %v655 = vsel %vm518, %v647, 0
    %657 = vmatpush.bf16.msra.mxu0 0
    %658 = vmatpush.bf16.msra.mxu0 0
    %659 = vmatpush.bf16.msra.mxu0 0
    %660 = vmatpush.bf16.msra.mxu0 0
    %661 = vmatpush.bf16.msra.mxu0 0
    %662 = vmatpush.bf16.msra.mxu0 0
    %663 = vmatpush.bf16.msra.mxu0 0
    %664 = vmatpush.bf16.msra.mxu0 %v652
    %665 = vmatmul.bf16.gmra.mxu0 %v655
    %v666 = vpop.f32.mrf.mxu0
    %v667 = vadd.f32 0.0, %v666
    %v668 = vpop.f32.mrf.mxu0
    %v669 = vadd.f32 0.0, %v668
    %670 = vdwg.mxu0
    %v673 = vunpack.c.l.b16 %v611
    %v674 = vunpack.c.l.b16 %v612
    %v675 = vpack.c.b16 %v674, %v673
    %v678 = vunpack.c.l.b16 %v382
    %v679 = vunpack.c.l.b16 %v384
    %v680 = vpack.c.b16 %v679, %v678
    %v683 = vsel %vm518, %v675, 0
    %685 = vmatpush.bf16.msra.mxu0 0
    %686 = vmatpush.bf16.msra.mxu0 0
    %687 = vmatpush.bf16.msra.mxu0 0
    %688 = vmatpush.bf16.msra.mxu0 0
    %689 = vmatpush.bf16.msra.mxu0 0
    %690 = vmatpush.bf16.msra.mxu0 0
    %691 = vmatpush.bf16.msra.mxu0 0
    %692 = vmatpush.bf16.msra.mxu0 %v680
    %693 = vmatmul.bf16.gmra.mxu0 %v683
    %v694 = vpop.f32.mrf.mxu0
    %v695 = vadd.f32 0.0, %v694
    %v696 = vpop.f32.mrf.mxu0
    %v697 = vadd.f32 0.0, %v696
    %698 = vdwg.mxu0
    %v701 = vunpack.c.l.b16 %v613
    %v702 = vunpack.c.l.b16 %v614
    %v703 = vpack.c.b16 %v702, %v701
    %v706 = vunpack.c.l.b16 %v386
    %v707 = vunpack.c.l.b16 %v388
    %v708 = vpack.c.b16 %v707, %v706
    %v711 = vsel %vm518, %v703, 0
    %713 = vmatpush.bf16.msra.mxu0 0
    %714 = vmatpush.bf16.msra.mxu0 0
    %715 = vmatpush.bf16.msra.mxu0 0
    %716 = vmatpush.bf16.msra.mxu0 0
    %717 = vmatpush.bf16.msra.mxu0 0
    %718 = vmatpush.bf16.msra.mxu0 0
    %719 = vmatpush.bf16.msra.mxu0 0
    %720 = vmatpush.bf16.msra.mxu0 %v708
    %721 = vmatmul.bf16.gmra.mxu0 %v711
    %v722 = vpop.f32.mrf.mxu0
    %v723 = vadd.f32 0.0, %v722
    %v724 = vpop.f32.mrf.mxu0
    %v725 = vadd.f32 0.0, %v724
    %726 = vdwg.mxu0
    %v727 = vpack.c.bf16 %v639, %v639
    %v728 = vpack.c.bf16 %v641, %v641
    %v729 = vpack.c.bf16 %v667, %v667
    %v730 = vpack.c.bf16 %v669, %v669
    %v731 = vpack.c.bf16 %v695, %v695
    %v732 = vpack.c.bf16 %v697, %v697
    %v733 = vpack.c.bf16 %v723, %v723
    %v734 = vpack.c.bf16 %v725, %v725
    %735 = vrot.lane.b32.xlu0 %v407, 96
    %v736 = vpop.permute.xlu0 %735
    %737 = vrot.lane.b32.xlu0 %v410, 96
    %v738 = vpop.permute.xlu0 %737
    %v740 = vsel %vm411, %v736, 0
    %v743 = vsel %vm411, %v738, 0
    %745 = vmatpush.bf16.xpose.msra.mxu0 0
    %746 = vmatpush.bf16.xpose.msra.mxu0 0
    %747 = vmatpush.bf16.xpose.msra.mxu0 0
    %748 = vmatpush.bf16.xpose.msra.mxu0 0
    %749 = vmatpush.bf16.xpose.msra.mxu0 0
    %750 = vmatpush.bf16.xpose.msra.mxu0 0
    %751 = vmatpush.bf16.xpose.msra.mxu0 0
    %752 = vmatpush.bf16.xpose.msra.mxu0 %v743
    %753 = vmatmul.bf16.gmra.mxu0 %v740
    %v754 = vpop.f32.mrf.mxu0
    %v755 = vadd.f32 0.0, %v754
    %v756 = vpop.f32.mrf.mxu0
    %v757 = vadd.f32 0.0, %v756
    %758 = vdwg.mxu0
    %759 = vrot.lane.b32.xlu0 %v434, 96
    %v760 = vpop.permute.xlu0 %759
    %761 = vrot.lane.b32.xlu0 %v437, 96
    %v762 = vpop.permute.xlu0 %761
    %v764 = vsel %vm411, %v760, 0
    %v767 = vsel %vm411, %v762, 0
    %769 = vmatpush.bf16.xpose.msra.mxu0 0
    %770 = vmatpush.bf16.xpose.msra.mxu0 0
    %771 = vmatpush.bf16.xpose.msra.mxu0 0
    %772 = vmatpush.bf16.xpose.msra.mxu0 0
    %773 = vmatpush.bf16.xpose.msra.mxu0 0
    %774 = vmatpush.bf16.xpose.msra.mxu0 0
    %775 = vmatpush.bf16.xpose.msra.mxu0 0
    %776 = vmatpush.bf16.xpose.msra.mxu0 %v767
    %777 = vmatmul.bf16.gmra.mxu0 %v764
    %v778 = vpop.f32.mrf.mxu0
    %v779 = vadd.f32 0.0, %v778
    %v780 = vpop.f32.mrf.mxu0
    %v781 = vadd.f32 0.0, %v780
    %782 = vdwg.mxu0
    %783 = vrot.lane.b32.xlu0 %v460, 96
    %v784 = vpop.permute.xlu0 %783
    %785 = vrot.lane.b32.xlu0 %v463, 96
    %v786 = vpop.permute.xlu0 %785
    %v788 = vsel %vm411, %v784, 0
    %v791 = vsel %vm411, %v786, 0
    %793 = vmatpush.bf16.xpose.msra.mxu0 0
    %794 = vmatpush.bf16.xpose.msra.mxu0 0
    %795 = vmatpush.bf16.xpose.msra.mxu0 0
    %796 = vmatpush.bf16.xpose.msra.mxu0 0
    %797 = vmatpush.bf16.xpose.msra.mxu0 0
    %798 = vmatpush.bf16.xpose.msra.mxu0 0
    %799 = vmatpush.bf16.xpose.msra.mxu0 0
    %800 = vmatpush.bf16.xpose.msra.mxu0 %v791
    %801 = vmatmul.bf16.gmra.mxu0 %v788
    %v802 = vpop.f32.mrf.mxu0
    %v803 = vadd.f32 0.0, %v802
    %v804 = vpop.f32.mrf.mxu0
    %v805 = vadd.f32 0.0, %v804
    %806 = vdwg.mxu0
    %807 = vrot.lane.b32.xlu0 %v486, 96
    %v808 = vpop.permute.xlu0 %807
    %809 = vrot.lane.b32.xlu0 %v489, 96
    %v810 = vpop.permute.xlu0 %809
    %v812 = vsel %vm411, %v808, 0
    %v815 = vsel %vm411, %v810, 0
    %817 = vmatpush.bf16.xpose.msra.mxu0 0
    %818 = vmatpush.bf16.xpose.msra.mxu0 0
    %819 = vmatpush.bf16.xpose.msra.mxu0 0
    %820 = vmatpush.bf16.xpose.msra.mxu0 0
    %821 = vmatpush.bf16.xpose.msra.mxu0 0
    %822 = vmatpush.bf16.xpose.msra.mxu0 0
    %823 = vmatpush.bf16.xpose.msra.mxu0 0
    %824 = vmatpush.bf16.xpose.msra.mxu0 %v815
    %825 = vmatmul.bf16.gmra.mxu0 %v812
    %v826 = vpop.f32.mrf.mxu0
    %v827 = vadd.f32 0.0, %v826
    %v828 = vpop.f32.mrf.mxu0
    %v829 = vadd.f32 0.0, %v828
    %830 = vdwg.mxu0
    %v831 = vmul.f32 %v755, 0.17677669
    %v832 = vmul.f32 %v757, 0.17677669
    %v833 = vmul.f32 %v779, 0.17677669
    %v834 = vmul.f32 %v781, 0.17677669
    %v835 = vmul.f32 %v803, 0.17677669
    %v836 = vmul.f32 %v805, 0.17677669
    %v837 = vmul.f32 %v827, 0.17677669
    %v838 = vmul.f32 %v829, 0.17677669
    %v839 = vsel %vm518, %v831, -inf
    %840 = vmax.xlane.f32.xlu0 %v839
    %v841 = vpop.xlane.xlu0 %840
    %v842 = vsel %vm518, %v832, -inf
    %843 = vmax.xlane.f32.xlu0 %v842
    %v844 = vpop.xlane.xlu0 %843
    %v845 = vsel %vm518, %v833, -inf
    %846 = vmax.xlane.f32.xlu0 %v845
    %v847 = vpop.xlane.xlu0 %846
    %v848 = vsel %vm518, %v834, -inf
    %849 = vmax.xlane.f32.xlu0 %v848
    %v850 = vpop.xlane.xlu0 %849
    %v851 = vsel %vm518, %v835, -inf
    %852 = vmax.xlane.f32.xlu0 %v851
    %v853 = vpop.xlane.xlu0 %852
    %v854 = vsel %vm518, %v836, -inf
    %855 = vmax.xlane.f32.xlu0 %v854
    %v856 = vpop.xlane.xlu0 %855
    %v857 = vsel %vm518, %v837, -inf
    %858 = vmax.xlane.f32.xlu0 %v857
    %v859 = vpop.xlane.xlu0 %858
    %v860 = vsel %vm518, %v838, -inf
    %861 = vmax.xlane.f32.xlu0 %v860
    %v862 = vpop.xlane.xlu0 %861
    %v863 = vsub.f32 %v831, %v841
    %v864 = vsub.f32 %v832, %v844
    %v865 = vsub.f32 %v833, %v847
    %v866 = vsub.f32 %v834, %v850
    %v867 = vsub.f32 %v835, %v853
    %v868 = vsub.f32 %v836, %v856
    %v869 = vsub.f32 %v837, %v859
    %v870 = vsub.f32 %v838, %v862
    %v871 = vmul.f32 %v863, 1.442695
    %v872 = vpow.pop %v871
    %v873 = vmul.f32 %v864, 1.442695
    %v874 = vpow.pop %v873
    %v875 = vmul.f32 %v865, 1.442695
    %v876 = vpow.pop %v875
    %v877 = vmul.f32 %v866, 1.442695
    %v878 = vpow.pop %v877
    %v879 = vmul.f32 %v867, 1.442695
    %v880 = vpow.pop %v879
    %v881 = vmul.f32 %v868, 1.442695
    %v882 = vpow.pop %v881
    %v883 = vmul.f32 %v869, 1.442695
    %v884 = vpow.pop %v883
    %v885 = vmul.f32 %v870, 1.442695
    %v886 = vpow.pop %v885
    %v887 = vsel %vm518, %v872, 0.0
    %888 = vadd.xlane.f32.xlu0 %v887
    %v889 = vpop.xlane.xlu0 %888
    %v890 = vsel %vm518, %v874, 0.0
    %891 = vadd.xlane.f32.xlu0 %v890
    %v892 = vpop.xlane.xlu0 %891
    %v893 = vsel %vm518, %v876, 0.0
    %894 = vadd.xlane.f32.xlu0 %v893
    %v895 = vpop.xlane.xlu0 %894
    %v896 = vsel %vm518, %v878, 0.0
    %897 = vadd.xlane.f32.xlu0 %v896
    %v898 = vpop.xlane.xlu0 %897
    %v899 = vsel %vm518, %v880, 0.0
    %900 = vadd.xlane.f32.xlu0 %v899
    %v901 = vpop.xlane.xlu0 %900
    %v902 = vsel %vm518, %v882, 0.0
    %903 = vadd.xlane.f32.xlu0 %v902
    %v904 = vpop.xlane.xlu0 %903
    %v905 = vsel %vm518, %v884, 0.0
    %906 = vadd.xlane.f32.xlu0 %v905
    %v907 = vpop.xlane.xlu0 %906
    %v908 = vsel %vm518, %v886, 0.0
    %909 = vadd.xlane.f32.xlu0 %v908
    %v910 = vpop.xlane.xlu0 %909
    %v911 = vrcp.pop %v889
    %v912 = vrcp.pop %v892
    %v913 = vrcp.pop %v895
    %v914 = vrcp.pop %v898
    %v915 = vrcp.pop %v901
    %v916 = vrcp.pop %v904
    %v917 = vrcp.pop %v907
    %v918 = vrcp.pop %v910
    %v919 = vmul.f32 %v872, %v911
    %v920 = vmul.f32 %v874, %v912
    %v921 = vmul.f32 %v876, %v913
    %v922 = vmul.f32 %v878, %v914
    %v923 = vmul.f32 %v880, %v915
    %v924 = vmul.f32 %v882, %v916
    %v925 = vmul.f32 %v884, %v917
    %v926 = vmul.f32 %v886, %v918
    %v927 = vpack.c.bf16 %v919, %v919
    %v928 = vpack.c.bf16 %v920, %v920
    %v929 = vpack.c.bf16 %v921, %v921
    %v930 = vpack.c.bf16 %v922, %v922
    %v931 = vpack.c.bf16 %v923, %v923
    %v932 = vpack.c.bf16 %v924, %v924
    %v933 = vpack.c.bf16 %v925, %v925
    %v934 = vpack.c.bf16 %v926, %v926
    %v937 = vunpack.c.l.b16 %v927
    %v938 = vunpack.c.l.b16 %v928
    %v939 = vpack.c.b16 %v938, %v937
    %940 = vrot.lane.b32.xlu0 %v624, 96
    %v941 = vpop.permute.xlu0 %940
    %v944 = vsel %vm518, %v939, 0
    %946 = vmatpush.bf16.msra.mxu0 0
    %947 = vmatpush.bf16.msra.mxu0 0
    %948 = vmatpush.bf16.msra.mxu0 0
    %949 = vmatpush.bf16.msra.mxu0 0
    %950 = vmatpush.bf16.msra.mxu0 0
    %951 = vmatpush.bf16.msra.mxu0 0
    %952 = vmatpush.bf16.msra.mxu0 0
    %953 = vmatpush.bf16.msra.mxu0 %v941
    %954 = vmatmul.bf16.gmra.mxu0 %v944
    %v955 = vpop.f32.mrf.mxu0
    %v956 = vadd.f32 0.0, %v955
    %v957 = vpop.f32.mrf.mxu0
    %v958 = vadd.f32 0.0, %v957
    %959 = vdwg.mxu0
    %v962 = vunpack.c.l.b16 %v929
    %v963 = vunpack.c.l.b16 %v930
    %v964 = vpack.c.b16 %v963, %v962
    %965 = vrot.lane.b32.xlu0 %v652, 96
    %v966 = vpop.permute.xlu0 %965
    %v969 = vsel %vm518, %v964, 0
    %971 = vmatpush.bf16.msra.mxu0 0
    %972 = vmatpush.bf16.msra.mxu0 0
    %973 = vmatpush.bf16.msra.mxu0 0
    %974 = vmatpush.bf16.msra.mxu0 0
    %975 = vmatpush.bf16.msra.mxu0 0
    %976 = vmatpush.bf16.msra.mxu0 0
    %977 = vmatpush.bf16.msra.mxu0 0
    %978 = vmatpush.bf16.msra.mxu0 %v966
    %979 = vmatmul.bf16.gmra.mxu0 %v969
    %v980 = vpop.f32.mrf.mxu0
    %v981 = vadd.f32 0.0, %v980
    %v982 = vpop.f32.mrf.mxu0
    %v983 = vadd.f32 0.0, %v982
    %984 = vdwg.mxu0
    %v987 = vunpack.c.l.b16 %v931
    %v988 = vunpack.c.l.b16 %v932
    %v989 = vpack.c.b16 %v988, %v987
    %990 = vrot.lane.b32.xlu0 %v680, 96
    %v991 = vpop.permute.xlu0 %990
    %v994 = vsel %vm518, %v989, 0
    %996 = vmatpush.bf16.msra.mxu0 0
    %997 = vmatpush.bf16.msra.mxu0 0
    %998 = vmatpush.bf16.msra.mxu0 0
    %999 = vmatpush.bf16.msra.mxu0 0
    %1000 = vmatpush.bf16.msra.mxu0 0
    %1001 = vmatpush.bf16.msra.mxu0 0
    %1002 = vmatpush.bf16.msra.mxu0 0
    %1003 = vmatpush.bf16.msra.mxu0 %v991
    %1004 = vmatmul.bf16.gmra.mxu0 %v994
    %v1005 = vpop.f32.mrf.mxu0
    %v1006 = vadd.f32 0.0, %v1005
    %v1007 = vpop.f32.mrf.mxu0
    %v1008 = vadd.f32 0.0, %v1007
    %1009 = vdwg.mxu0
    %v1012 = vunpack.c.l.b16 %v933
    %v1013 = vunpack.c.l.b16 %v934
    %v1014 = vpack.c.b16 %v1013, %v1012
    %1015 = vrot.lane.b32.xlu0 %v708, 96
    %v1016 = vpop.permute.xlu0 %1015
    %v1019 = vsel %vm518, %v1014, 0
    %1021 = vmatpush.bf16.msra.mxu0 0
    %1022 = vmatpush.bf16.msra.mxu0 0
    %1023 = vmatpush.bf16.msra.mxu0 0
    %1024 = vmatpush.bf16.msra.mxu0 0
    %1025 = vmatpush.bf16.msra.mxu0 0
    %1026 = vmatpush.bf16.msra.mxu0 0
    %1027 = vmatpush.bf16.msra.mxu0 0
    %1028 = vmatpush.bf16.msra.mxu0 %v1016
    %1029 = vmatmul.bf16.gmra.mxu0 %v1019
    %v1030 = vpop.f32.mrf.mxu0
    %v1031 = vadd.f32 0.0, %v1030
    %v1032 = vpop.f32.mrf.mxu0
    %v1033 = vadd.f32 0.0, %v1032
    %1034 = vdwg.mxu0
    %v1035 = vpack.c.bf16 %v956, %v956
    %v1036 = vpack.c.bf16 %v958, %v958
    %v1037 = vpack.c.bf16 %v981, %v981
    %v1038 = vpack.c.bf16 %v983, %v983
    %v1039 = vpack.c.bf16 %v1006, %v1006
    %v1040 = vpack.c.bf16 %v1008, %v1008
    %v1041 = vpack.c.bf16 %v1031, %v1031
    %v1042 = vpack.c.bf16 %v1033, %v1033
    %1043 = vrot.lane.b32.xlu0 %v407, 64
    %v1044 = vpop.permute.xlu0 %1043
    %1045 = vrot.lane.b32.xlu0 %v410, 64
    %v1046 = vpop.permute.xlu0 %1045
    %v1048 = vsel %vm411, %v1044, 0
    %v1051 = vsel %vm411, %v1046, 0
    %1053 = vmatpush.bf16.xpose.msra.mxu0 0
    %1054 = vmatpush.bf16.xpose.msra.mxu0 0
    %1055 = vmatpush.bf16.xpose.msra.mxu0 0
    %1056 = vmatpush.bf16.xpose.msra.mxu0 0
    %1057 = vmatpush.bf16.xpose.msra.mxu0 0
    %1058 = vmatpush.bf16.xpose.msra.mxu0 0
    %1059 = vmatpush.bf16.xpose.msra.mxu0 0
    %1060 = vmatpush.bf16.xpose.msra.mxu0 %v1051
    %1061 = vmatmul.bf16.gmra.mxu0 %v1048
    %v1062 = vpop.f32.mrf.mxu0
    %v1063 = vadd.f32 0.0, %v1062
    %v1064 = vpop.f32.mrf.mxu0
    %v1065 = vadd.f32 0.0, %v1064
    %1066 = vdwg.mxu0
    %1067 = vrot.lane.b32.xlu0 %v434, 64
    %v1068 = vpop.permute.xlu0 %1067
    %1069 = vrot.lane.b32.xlu0 %v437, 64
    %v1070 = vpop.permute.xlu0 %1069
    %v1072 = vsel %vm411, %v1068, 0
    %v1075 = vsel %vm411, %v1070, 0
    %1077 = vmatpush.bf16.xpose.msra.mxu0 0
    %1078 = vmatpush.bf16.xpose.msra.mxu0 0
    %1079 = vmatpush.bf16.xpose.msra.mxu0 0
    %1080 = vmatpush.bf16.xpose.msra.mxu0 0
    %1081 = vmatpush.bf16.xpose.msra.mxu0 0
    %1082 = vmatpush.bf16.xpose.msra.mxu0 0
    %1083 = vmatpush.bf16.xpose.msra.mxu0 0
    %1084 = vmatpush.bf16.xpose.msra.mxu0 %v1075
    %1085 = vmatmul.bf16.gmra.mxu0 %v1072
    %v1086 = vpop.f32.mrf.mxu0
    %v1087 = vadd.f32 0.0, %v1086
    %v1088 = vpop.f32.mrf.mxu0
    %v1089 = vadd.f32 0.0, %v1088
    %1090 = vdwg.mxu0
    %1091 = vrot.lane.b32.xlu0 %v460, 64
    %v1092 = vpop.permute.xlu0 %1091
    %1093 = vrot.lane.b32.xlu0 %v463, 64
    %v1094 = vpop.permute.xlu0 %1093
    %v1096 = vsel %vm411, %v1092, 0
    %v1099 = vsel %vm411, %v1094, 0
    %1101 = vmatpush.bf16.xpose.msra.mxu0 0
    %1102 = vmatpush.bf16.xpose.msra.mxu0 0
    %1103 = vmatpush.bf16.xpose.msra.mxu0 0
    %1104 = vmatpush.bf16.xpose.msra.mxu0 0
    %1105 = vmatpush.bf16.xpose.msra.mxu0 0
    %1106 = vmatpush.bf16.xpose.msra.mxu0 0
    %1107 = vmatpush.bf16.xpose.msra.mxu0 0
    %1108 = vmatpush.bf16.xpose.msra.mxu0 %v1099
    %1109 = vmatmul.bf16.gmra.mxu0 %v1096
    %v1110 = vpop.f32.mrf.mxu0
    %v1111 = vadd.f32 0.0, %v1110
    %v1112 = vpop.f32.mrf.mxu0
    %v1113 = vadd.f32 0.0, %v1112
    %1114 = vdwg.mxu0
    %1115 = vrot.lane.b32.xlu0 %v486, 64
    %v1116 = vpop.permute.xlu0 %1115
    %1117 = vrot.lane.b32.xlu0 %v489, 64
    %v1118 = vpop.permute.xlu0 %1117
    %v1120 = vsel %vm411, %v1116, 0
    %v1123 = vsel %vm411, %v1118, 0
    %1125 = vmatpush.bf16.xpose.msra.mxu0 0
    %1126 = vmatpush.bf16.xpose.msra.mxu0 0
    %1127 = vmatpush.bf16.xpose.msra.mxu0 0
    %1128 = vmatpush.bf16.xpose.msra.mxu0 0
    %1129 = vmatpush.bf16.xpose.msra.mxu0 0
    %1130 = vmatpush.bf16.xpose.msra.mxu0 0
    %1131 = vmatpush.bf16.xpose.msra.mxu0 0
    %1132 = vmatpush.bf16.xpose.msra.mxu0 %v1123
    %1133 = vmatmul.bf16.gmra.mxu0 %v1120
    %v1134 = vpop.f32.mrf.mxu0
    %v1135 = vadd.f32 0.0, %v1134
    %v1136 = vpop.f32.mrf.mxu0
    %v1137 = vadd.f32 0.0, %v1136
    %1138 = vdwg.mxu0
    %v1139 = vmul.f32 %v1063, 0.17677669
    %v1140 = vmul.f32 %v1065, 0.17677669
    %v1141 = vmul.f32 %v1087, 0.17677669
    %v1142 = vmul.f32 %v1089, 0.17677669
    %v1143 = vmul.f32 %v1111, 0.17677669
    %v1144 = vmul.f32 %v1113, 0.17677669
    %v1145 = vmul.f32 %v1135, 0.17677669
    %v1146 = vmul.f32 %v1137, 0.17677669
    %v1147 = vsel %vm518, %v1139, -inf
    %1148 = vmax.xlane.f32.xlu0 %v1147
    %v1149 = vpop.xlane.xlu0 %1148
    %v1150 = vsel %vm518, %v1140, -inf
    %1151 = vmax.xlane.f32.xlu0 %v1150
    %v1152 = vpop.xlane.xlu0 %1151
    %v1153 = vsel %vm518, %v1141, -inf
    %1154 = vmax.xlane.f32.xlu0 %v1153
    %v1155 = vpop.xlane.xlu0 %1154
    %v1156 = vsel %vm518, %v1142, -inf
    %1157 = vmax.xlane.f32.xlu0 %v1156
    %v1158 = vpop.xlane.xlu0 %1157
    %v1159 = vsel %vm518, %v1143, -inf
    %1160 = vmax.xlane.f32.xlu0 %v1159
    %v1161 = vpop.xlane.xlu0 %1160
    %v1162 = vsel %vm518, %v1144, -inf
    %1163 = vmax.xlane.f32.xlu0 %v1162
    %v1164 = vpop.xlane.xlu0 %1163
    %v1165 = vsel %vm518, %v1145, -inf
    %1166 = vmax.xlane.f32.xlu0 %v1165
    %v1167 = vpop.xlane.xlu0 %1166
    %v1168 = vsel %vm518, %v1146, -inf
    %1169 = vmax.xlane.f32.xlu0 %v1168
    %v1170 = vpop.xlane.xlu0 %1169
    %v1171 = vsub.f32 %v1139, %v1149
    %v1172 = vsub.f32 %v1140, %v1152
    %v1173 = vsub.f32 %v1141, %v1155
    %v1174 = vsub.f32 %v1142, %v1158
    %v1175 = vsub.f32 %v1143, %v1161
    %v1176 = vsub.f32 %v1144, %v1164
    %v1177 = vsub.f32 %v1145, %v1167
    %v1178 = vsub.f32 %v1146, %v1170
    %v1179 = vmul.f32 %v1171, 1.442695
    %v1180 = vpow.pop %v1179
    %v1181 = vmul.f32 %v1172, 1.442695
    %v1182 = vpow.pop %v1181
    %v1183 = vmul.f32 %v1173, 1.442695
    %v1184 = vpow.pop %v1183
    %v1185 = vmul.f32 %v1174, 1.442695
    %v1186 = vpow.pop %v1185
    %v1187 = vmul.f32 %v1175, 1.442695
    %v1188 = vpow.pop %v1187
    %v1189 = vmul.f32 %v1176, 1.442695
    %v1190 = vpow.pop %v1189
    %v1191 = vmul.f32 %v1177, 1.442695
    %v1192 = vpow.pop %v1191
    %v1193 = vmul.f32 %v1178, 1.442695
    %v1194 = vpow.pop %v1193
    %v1195 = vsel %vm518, %v1180, 0.0
    %1196 = vadd.xlane.f32.xlu0 %v1195
    %v1197 = vpop.xlane.xlu0 %1196
    %v1198 = vsel %vm518, %v1182, 0.0
    %1199 = vadd.xlane.f32.xlu0 %v1198
    %v1200 = vpop.xlane.xlu0 %1199
    %v1201 = vsel %vm518, %v1184, 0.0
    %1202 = vadd.xlane.f32.xlu0 %v1201
    %v1203 = vpop.xlane.xlu0 %1202
    %v1204 = vsel %vm518, %v1186, 0.0
    %1205 = vadd.xlane.f32.xlu0 %v1204
    %v1206 = vpop.xlane.xlu0 %1205
    %v1207 = vsel %vm518, %v1188, 0.0
    %1208 = vadd.xlane.f32.xlu0 %v1207
    %v1209 = vpop.xlane.xlu0 %1208
    %v1210 = vsel %vm518, %v1190, 0.0
    %1211 = vadd.xlane.f32.xlu0 %v1210
    %v1212 = vpop.xlane.xlu0 %1211
    %v1213 = vsel %vm518, %v1192, 0.0
    %1214 = vadd.xlane.f32.xlu0 %v1213
    %v1215 = vpop.xlane.xlu0 %1214
    %v1216 = vsel %vm518, %v1194, 0.0
    %1217 = vadd.xlane.f32.xlu0 %v1216
    %v1218 = vpop.xlane.xlu0 %1217
    %v1219 = vrcp.pop %v1197
    %v1220 = vrcp.pop %v1200
    %v1221 = vrcp.pop %v1203
    %v1222 = vrcp.pop %v1206
    %v1223 = vrcp.pop %v1209
    %v1224 = vrcp.pop %v1212
    %v1225 = vrcp.pop %v1215
    %v1226 = vrcp.pop %v1218
    %v1227 = vmul.f32 %v1180, %v1219
    %v1228 = vmul.f32 %v1182, %v1220
    %v1229 = vmul.f32 %v1184, %v1221
    %v1230 = vmul.f32 %v1186, %v1222
    %v1231 = vmul.f32 %v1188, %v1223
    %v1232 = vmul.f32 %v1190, %v1224
    %v1233 = vmul.f32 %v1192, %v1225
    %v1234 = vmul.f32 %v1194, %v1226
    %v1235 = vpack.c.bf16 %v1227, %v1227
    %v1236 = vpack.c.bf16 %v1228, %v1228
    %v1237 = vpack.c.bf16 %v1229, %v1229
    %v1238 = vpack.c.bf16 %v1230, %v1230
    %v1239 = vpack.c.bf16 %v1231, %v1231
    %v1240 = vpack.c.bf16 %v1232, %v1232
    %v1241 = vpack.c.bf16 %v1233, %v1233
    %v1242 = vpack.c.bf16 %v1234, %v1234
    %v1245 = vunpack.c.l.b16 %v1235
    %v1246 = vunpack.c.l.b16 %v1236
    %v1247 = vpack.c.b16 %v1246, %v1245
    %1248 = vrot.lane.b32.xlu0 %v624, 64
    %v1249 = vpop.permute.xlu0 %1248
    %v1252 = vsel %vm518, %v1247, 0
    %1254 = vmatpush.bf16.msra.mxu0 0
    %1255 = vmatpush.bf16.msra.mxu0 0
    %1256 = vmatpush.bf16.msra.mxu0 0
    %1257 = vmatpush.bf16.msra.mxu0 0
    %1258 = vmatpush.bf16.msra.mxu0 0
    %1259 = vmatpush.bf16.msra.mxu0 0
    %1260 = vmatpush.bf16.msra.mxu0 0
    %1261 = vmatpush.bf16.msra.mxu0 %v1249
    %1262 = vmatmul.bf16.gmra.mxu0 %v1252
    %v1263 = vpop.f32.mrf.mxu0
    %v1264 = vadd.f32 0.0, %v1263
    %v1265 = vpop.f32.mrf.mxu0
    %v1266 = vadd.f32 0.0, %v1265
    %1267 = vdwg.mxu0
    %v1270 = vunpack.c.l.b16 %v1237
    %v1271 = vunpack.c.l.b16 %v1238
    %v1272 = vpack.c.b16 %v1271, %v1270
    %1273 = vrot.lane.b32.xlu0 %v652, 64
    %v1274 = vpop.permute.xlu0 %1273
    %v1277 = vsel %vm518, %v1272, 0
    %1279 = vmatpush.bf16.msra.mxu0 0
    %1280 = vmatpush.bf16.msra.mxu0 0
    %1281 = vmatpush.bf16.msra.mxu0 0
    %1282 = vmatpush.bf16.msra.mxu0 0
    %1283 = vmatpush.bf16.msra.mxu0 0
    %1284 = vmatpush.bf16.msra.mxu0 0
    %1285 = vmatpush.bf16.msra.mxu0 0
    %1286 = vmatpush.bf16.msra.mxu0 %v1274
    %1287 = vmatmul.bf16.gmra.mxu0 %v1277
    %v1288 = vpop.f32.mrf.mxu0
    %v1289 = vadd.f32 0.0, %v1288
    %v1290 = vpop.f32.mrf.mxu0
    %v1291 = vadd.f32 0.0, %v1290
    %1292 = vdwg.mxu0
    %v1295 = vunpack.c.l.b16 %v1239
    %v1296 = vunpack.c.l.b16 %v1240
    %v1297 = vpack.c.b16 %v1296, %v1295
    %1298 = vrot.lane.b32.xlu0 %v680, 64
    %v1299 = vpop.permute.xlu0 %1298
    %v1302 = vsel %vm518, %v1297, 0
    %1304 = vmatpush.bf16.msra.mxu0 0
    %1305 = vmatpush.bf16.msra.mxu0 0
    %1306 = vmatpush.bf16.msra.mxu0 0
    %1307 = vmatpush.bf16.msra.mxu0 0
    %1308 = vmatpush.bf16.msra.mxu0 0
    %1309 = vmatpush.bf16.msra.mxu0 0
    %1310 = vmatpush.bf16.msra.mxu0 0
    %1311 = vmatpush.bf16.msra.mxu0 %v1299
    %1312 = vmatmul.bf16.gmra.mxu0 %v1302
    %v1313 = vpop.f32.mrf.mxu0
    %v1314 = vadd.f32 0.0, %v1313
    %v1315 = vpop.f32.mrf.mxu0
    %v1316 = vadd.f32 0.0, %v1315
    %1317 = vdwg.mxu0
    %v1320 = vunpack.c.l.b16 %v1241
    %v1321 = vunpack.c.l.b16 %v1242
    %v1322 = vpack.c.b16 %v1321, %v1320
    %1323 = vrot.lane.b32.xlu0 %v708, 64
    %v1324 = vpop.permute.xlu0 %1323
    %v1327 = vsel %vm518, %v1322, 0
    %1329 = vmatpush.bf16.msra.mxu0 0
    %1330 = vmatpush.bf16.msra.mxu0 0
    %1331 = vmatpush.bf16.msra.mxu0 0
    %1332 = vmatpush.bf16.msra.mxu0 0
    %1333 = vmatpush.bf16.msra.mxu0 0
    %1334 = vmatpush.bf16.msra.mxu0 0
    %1335 = vmatpush.bf16.msra.mxu0 0
    %1336 = vmatpush.bf16.msra.mxu0 %v1324
    %1337 = vmatmul.bf16.gmra.mxu0 %v1327
    %v1338 = vpop.f32.mrf.mxu0
    %v1339 = vadd.f32 0.0, %v1338
    %v1340 = vpop.f32.mrf.mxu0
    %v1341 = vadd.f32 0.0, %v1340
    %1342 = vdwg.mxu0
    %v1343 = vpack.c.bf16 %v1264, %v1264
    %v1344 = vpack.c.bf16 %v1266, %v1266
    %v1345 = vpack.c.bf16 %v1289, %v1289
    %v1346 = vpack.c.bf16 %v1291, %v1291
    %v1347 = vpack.c.bf16 %v1314, %v1314
    %v1348 = vpack.c.bf16 %v1316, %v1316
    %v1349 = vpack.c.bf16 %v1339, %v1339
    %v1350 = vpack.c.bf16 %v1341, %v1341
    %1351 = vrot.lane.b32.xlu0 %v407, 32
    %v1352 = vpop.permute.xlu0 %1351
    %1353 = vrot.lane.b32.xlu0 %v410, 32
    %v1354 = vpop.permute.xlu0 %1353
    %v1356 = vsel %vm411, %v1352, 0
    %v1359 = vsel %vm411, %v1354, 0
    %1361 = vmatpush.bf16.xpose.msra.mxu0 0
    %1362 = vmatpush.bf16.xpose.msra.mxu0 0
    %1363 = vmatpush.bf16.xpose.msra.mxu0 0
    %1364 = vmatpush.bf16.xpose.msra.mxu0 0
    %1365 = vmatpush.bf16.xpose.msra.mxu0 0
    %1366 = vmatpush.bf16.xpose.msra.mxu0 0
    %1367 = vmatpush.bf16.xpose.msra.mxu0 0
    %1368 = vmatpush.bf16.xpose.msra.mxu0 %v1359
    %1369 = vmatmul.bf16.gmra.mxu0 %v1356
    %v1370 = vpop.f32.mrf.mxu0
    %v1371 = vadd.f32 0.0, %v1370
    %v1372 = vpop.f32.mrf.mxu0
    %v1373 = vadd.f32 0.0, %v1372
    %1374 = vdwg.mxu0
    %1375 = vrot.lane.b32.xlu0 %v434, 32
    %v1376 = vpop.permute.xlu0 %1375
    %1377 = vrot.lane.b32.xlu0 %v437, 32
    %v1378 = vpop.permute.xlu0 %1377
    %v1380 = vsel %vm411, %v1376, 0
    %v1383 = vsel %vm411, %v1378, 0
    %1385 = vmatpush.bf16.xpose.msra.mxu0 0
    %1386 = vmatpush.bf16.xpose.msra.mxu0 0
    %1387 = vmatpush.bf16.xpose.msra.mxu0 0
    %1388 = vmatpush.bf16.xpose.msra.mxu0 0
    %1389 = vmatpush.bf16.xpose.msra.mxu0 0
    %1390 = vmatpush.bf16.xpose.msra.mxu0 0
    %1391 = vmatpush.bf16.xpose.msra.mxu0 0
    %1392 = vmatpush.bf16.xpose.msra.mxu0 %v1383
    %1393 = vmatmul.bf16.gmra.mxu0 %v1380
    %v1394 = vpop.f32.mrf.mxu0
    %v1395 = vadd.f32 0.0, %v1394
    %v1396 = vpop.f32.mrf.mxu0
    %v1397 = vadd.f32 0.0, %v1396
    %1398 = vdwg.mxu0
    %1399 = vrot.lane.b32.xlu0 %v460, 32
    %v1400 = vpop.permute.xlu0 %1399
    %1401 = vrot.lane.b32.xlu0 %v463, 32
    %v1402 = vpop.permute.xlu0 %1401
    %v1404 = vsel %vm411, %v1400, 0
    %v1407 = vsel %vm411, %v1402, 0
    %1409 = vmatpush.bf16.xpose.msra.mxu0 0
    %1410 = vmatpush.bf16.xpose.msra.mxu0 0
    %1411 = vmatpush.bf16.xpose.msra.mxu0 0
    %1412 = vmatpush.bf16.xpose.msra.mxu0 0
    %1413 = vmatpush.bf16.xpose.msra.mxu0 0
    %1414 = vmatpush.bf16.xpose.msra.mxu0 0
    %1415 = vmatpush.bf16.xpose.msra.mxu0 0
    %1416 = vmatpush.bf16.xpose.msra.mxu0 %v1407
    %1417 = vmatmul.bf16.gmra.mxu0 %v1404
    %v1418 = vpop.f32.mrf.mxu0
    %v1419 = vadd.f32 0.0, %v1418
    %v1420 = vpop.f32.mrf.mxu0
    %v1421 = vadd.f32 0.0, %v1420
    %1422 = vdwg.mxu0
    %1423 = vrot.lane.b32.xlu0 %v486, 32
    %v1424 = vpop.permute.xlu0 %1423
    %1425 = vrot.lane.b32.xlu0 %v489, 32
    %v1426 = vpop.permute.xlu0 %1425
    %v1428 = vsel %vm411, %v1424, 0
    %v1431 = vsel %vm411, %v1426, 0
    %1433 = vmatpush.bf16.xpose.msra.mxu0 0
    %1434 = vmatpush.bf16.xpose.msra.mxu0 0
    %1435 = vmatpush.bf16.xpose.msra.mxu0 0
    %1436 = vmatpush.bf16.xpose.msra.mxu0 0
    %1437 = vmatpush.bf16.xpose.msra.mxu0 0
    %1438 = vmatpush.bf16.xpose.msra.mxu0 0
    %1439 = vmatpush.bf16.xpose.msra.mxu0 0
    %1440 = vmatpush.bf16.xpose.msra.mxu0 %v1431
    %1441 = vmatmul.bf16.gmra.mxu0 %v1428
    %v1442 = vpop.f32.mrf.mxu0
    %v1443 = vadd.f32 0.0, %v1442
    %v1444 = vpop.f32.mrf.mxu0
    %v1445 = vadd.f32 0.0, %v1444
    %1446 = vdwg.mxu0
    %v1447 = vmul.f32 %v1371, 0.17677669
    %v1448 = vmul.f32 %v1373, 0.17677669
    %v1449 = vmul.f32 %v1395, 0.17677669
    %v1450 = vmul.f32 %v1397, 0.17677669
    %v1451 = vmul.f32 %v1419, 0.17677669
    %v1452 = vmul.f32 %v1421, 0.17677669
    %v1453 = vmul.f32 %v1443, 0.17677669
    %v1454 = vmul.f32 %v1445, 0.17677669
    %v1455 = vsel %vm518, %v1447, -inf
    %1456 = vmax.xlane.f32.xlu0 %v1455
    %v1457 = vpop.xlane.xlu0 %1456
    %v1458 = vsel %vm518, %v1448, -inf
    %1459 = vmax.xlane.f32.xlu0 %v1458
    %v1460 = vpop.xlane.xlu0 %1459
    %v1461 = vsel %vm518, %v1449, -inf
    %1462 = vmax.xlane.f32.xlu0 %v1461
    %v1463 = vpop.xlane.xlu0 %1462
    %v1464 = vsel %vm518, %v1450, -inf
    %1465 = vmax.xlane.f32.xlu0 %v1464
    %v1466 = vpop.xlane.xlu0 %1465
    %v1467 = vsel %vm518, %v1451, -inf
    %1468 = vmax.xlane.f32.xlu0 %v1467
    %v1469 = vpop.xlane.xlu0 %1468
    %v1470 = vsel %vm518, %v1452, -inf
    %1471 = vmax.xlane.f32.xlu0 %v1470
    %v1472 = vpop.xlane.xlu0 %1471
    %v1473 = vsel %vm518, %v1453, -inf
    %1474 = vmax.xlane.f32.xlu0 %v1473
    %v1475 = vpop.xlane.xlu0 %1474
    %v1476 = vsel %vm518, %v1454, -inf
    %1477 = vmax.xlane.f32.xlu0 %v1476
    %v1478 = vpop.xlane.xlu0 %1477
    %v1479 = vsub.f32 %v1447, %v1457
    %v1480 = vsub.f32 %v1448, %v1460
    %v1481 = vsub.f32 %v1449, %v1463
    %v1482 = vsub.f32 %v1450, %v1466
    %v1483 = vsub.f32 %v1451, %v1469
    %v1484 = vsub.f32 %v1452, %v1472
    %v1485 = vsub.f32 %v1453, %v1475
    %v1486 = vsub.f32 %v1454, %v1478
    %v1487 = vmul.f32 %v1479, 1.442695
    %v1488 = vpow.pop %v1487
    %v1489 = vmul.f32 %v1480, 1.442695
    %v1490 = vpow.pop %v1489
    %v1491 = vmul.f32 %v1481, 1.442695
    %v1492 = vpow.pop %v1491
    %v1493 = vmul.f32 %v1482, 1.442695
    %v1494 = vpow.pop %v1493
    %v1495 = vmul.f32 %v1483, 1.442695
    %v1496 = vpow.pop %v1495
    %v1497 = vmul.f32 %v1484, 1.442695
    %v1498 = vpow.pop %v1497
    %v1499 = vmul.f32 %v1485, 1.442695
    %v1500 = vpow.pop %v1499
    %v1501 = vmul.f32 %v1486, 1.442695
    %v1502 = vpow.pop %v1501
    %v1503 = vsel %vm518, %v1488, 0.0
    %1504 = vadd.xlane.f32.xlu0 %v1503
    %v1505 = vpop.xlane.xlu0 %1504
    %v1506 = vsel %vm518, %v1490, 0.0
    %1507 = vadd.xlane.f32.xlu0 %v1506
    %v1508 = vpop.xlane.xlu0 %1507
    %v1509 = vsel %vm518, %v1492, 0.0
    %1510 = vadd.xlane.f32.xlu0 %v1509
    %v1511 = vpop.xlane.xlu0 %1510
    %v1512 = vsel %vm518, %v1494, 0.0
    %1513 = vadd.xlane.f32.xlu0 %v1512
    %v1514 = vpop.xlane.xlu0 %1513
    %v1515 = vsel %vm518, %v1496, 0.0
    %1516 = vadd.xlane.f32.xlu0 %v1515
    %v1517 = vpop.xlane.xlu0 %1516
    %v1518 = vsel %vm518, %v1498, 0.0
    %1519 = vadd.xlane.f32.xlu0 %v1518
    %v1520 = vpop.xlane.xlu0 %1519
    %v1521 = vsel %vm518, %v1500, 0.0
    %1522 = vadd.xlane.f32.xlu0 %v1521
    %v1523 = vpop.xlane.xlu0 %1522
    %v1524 = vsel %vm518, %v1502, 0.0
    %1525 = vadd.xlane.f32.xlu0 %v1524
    %v1526 = vpop.xlane.xlu0 %1525
    %v1527 = vrcp.pop %v1505
    %v1528 = vrcp.pop %v1508
    %v1529 = vrcp.pop %v1511
    %v1530 = vrcp.pop %v1514
    %v1531 = vrcp.pop %v1517
    %v1532 = vrcp.pop %v1520
    %v1533 = vrcp.pop %v1523
    %v1534 = vrcp.pop %v1526
    %v1535 = vmul.f32 %v1488, %v1527
    %v1536 = vmul.f32 %v1490, %v1528
    %v1537 = vmul.f32 %v1492, %v1529
    %v1538 = vmul.f32 %v1494, %v1530
    %v1539 = vmul.f32 %v1496, %v1531
    %v1540 = vmul.f32 %v1498, %v1532
    %v1541 = vmul.f32 %v1500, %v1533
    %v1542 = vmul.f32 %v1502, %v1534
    %v1543 = vpack.c.bf16 %v1535, %v1535
    %v1544 = vpack.c.bf16 %v1536, %v1536
    %v1545 = vpack.c.bf16 %v1537, %v1537
    %v1546 = vpack.c.bf16 %v1538, %v1538
    %v1547 = vpack.c.bf16 %v1539, %v1539
    %v1548 = vpack.c.bf16 %v1540, %v1540
    %v1549 = vpack.c.bf16 %v1541, %v1541
    %v1550 = vpack.c.bf16 %v1542, %v1542
    %v1553 = vunpack.c.l.b16 %v1543
    %v1554 = vunpack.c.l.b16 %v1544
    %v1555 = vpack.c.b16 %v1554, %v1553
    %1556 = vrot.lane.b32.xlu0 %v624, 32
    %v1557 = vpop.permute.xlu0 %1556
    %v1560 = vsel %vm518, %v1555, 0
    %1562 = vmatpush.bf16.msra.mxu0 0
    %1563 = vmatpush.bf16.msra.mxu0 0
    %1564 = vmatpush.bf16.msra.mxu0 0
    %1565 = vmatpush.bf16.msra.mxu0 0
    %1566 = vmatpush.bf16.msra.mxu0 0
    %1567 = vmatpush.bf16.msra.mxu0 0
    %1568 = vmatpush.bf16.msra.mxu0 0
    %1569 = vmatpush.bf16.msra.mxu0 %v1557
    %1570 = vmatmul.bf16.gmra.mxu0 %v1560
    %v1571 = vpop.f32.mrf.mxu0
    %v1572 = vadd.f32 0.0, %v1571
    %v1573 = vpop.f32.mrf.mxu0
    %v1574 = vadd.f32 0.0, %v1573
    %1575 = vdwg.mxu0
    %v1578 = vunpack.c.l.b16 %v1545
    %v1579 = vunpack.c.l.b16 %v1546
    %v1580 = vpack.c.b16 %v1579, %v1578
    %1581 = vrot.lane.b32.xlu0 %v652, 32
    %v1582 = vpop.permute.xlu0 %1581
    %v1585 = vsel %vm518, %v1580, 0
    %1587 = vmatpush.bf16.msra.mxu0 0
    %1588 = vmatpush.bf16.msra.mxu0 0
    %1589 = vmatpush.bf16.msra.mxu0 0
    %1590 = vmatpush.bf16.msra.mxu0 0
    %1591 = vmatpush.bf16.msra.mxu0 0
    %1592 = vmatpush.bf16.msra.mxu0 0
    %1593 = vmatpush.bf16.msra.mxu0 0
    %1594 = vmatpush.bf16.msra.mxu0 %v1582
    %1595 = vmatmul.bf16.gmra.mxu0 %v1585
    %v1596 = vpop.f32.mrf.mxu0
    %v1597 = vadd.f32 0.0, %v1596
    %v1598 = vpop.f32.mrf.mxu0
    %v1599 = vadd.f32 0.0, %v1598
    %1600 = vdwg.mxu0
    %v1603 = vunpack.c.l.b16 %v1547
    %v1604 = vunpack.c.l.b16 %v1548
    %v1605 = vpack.c.b16 %v1604, %v1603
    %1606 = vrot.lane.b32.xlu0 %v680, 32
    %v1607 = vpop.permute.xlu0 %1606
    %v1610 = vsel %vm518, %v1605, 0
    %1612 = vmatpush.bf16.msra.mxu0 0
    %1613 = vmatpush.bf16.msra.mxu0 0
    %1614 = vmatpush.bf16.msra.mxu0 0
    %1615 = vmatpush.bf16.msra.mxu0 0
    %1616 = vmatpush.bf16.msra.mxu0 0
    %1617 = vmatpush.bf16.msra.mxu0 0
    %1618 = vmatpush.bf16.msra.mxu0 0
    %1619 = vmatpush.bf16.msra.mxu0 %v1607
    %1620 = vmatmul.bf16.gmra.mxu0 %v1610
    %v1621 = vpop.f32.mrf.mxu0
    %v1622 = vadd.f32 0.0, %v1621
    %v1623 = vpop.f32.mrf.mxu0
    %v1624 = vadd.f32 0.0, %v1623
    %1625 = vdwg.mxu0
    %v1628 = vunpack.c.l.b16 %v1549
    %v1629 = vunpack.c.l.b16 %v1550
    %v1630 = vpack.c.b16 %v1629, %v1628
    %1631 = vrot.lane.b32.xlu0 %v708, 32
    %v1632 = vpop.permute.xlu0 %1631
    %v1635 = vsel %vm518, %v1630, 0
    %1637 = vmatpush.bf16.msra.mxu0 0
    %1638 = vmatpush.bf16.msra.mxu0 0
    %1639 = vmatpush.bf16.msra.mxu0 0
    %1640 = vmatpush.bf16.msra.mxu0 0
    %1641 = vmatpush.bf16.msra.mxu0 0
    %1642 = vmatpush.bf16.msra.mxu0 0
    %1643 = vmatpush.bf16.msra.mxu0 0
    %1644 = vmatpush.bf16.msra.mxu0 %v1632
    %1645 = vmatmul.bf16.gmra.mxu0 %v1635
    %v1646 = vpop.f32.mrf.mxu0
    %v1647 = vadd.f32 0.0, %v1646
    %v1648 = vpop.f32.mrf.mxu0
    %v1649 = vadd.f32 0.0, %v1648
    %1650 = vdwg.mxu0
    %v1651 = vpack.c.bf16 %v1572, %v1572
    %v1652 = vpack.c.bf16 %v1574, %v1574
    %v1653 = vpack.c.bf16 %v1597, %v1597
    %v1654 = vpack.c.bf16 %v1599, %v1599
    %v1655 = vpack.c.bf16 %v1622, %v1622
    %v1656 = vpack.c.bf16 %v1624, %v1624
    %v1657 = vpack.c.bf16 %v1647, %v1647
    %v1658 = vpack.c.bf16 %v1649, %v1649
    %v1667 = vunpack.c.l.b16 %v727
    %v1668 = vunpack.c.l.b16 %v728
    %v1669 = vunpack.c.l.b16 %v729
    %v1670 = vunpack.c.l.b16 %v730
    %v1671 = vunpack.c.l.b16 %v731
    %v1672 = vunpack.c.l.b16 %v732
    %v1673 = vunpack.c.l.b16 %v733
    %v1674 = vunpack.c.l.b16 %v734
    %v1675 = vpack.c.b16 %v1668, %v1667
    %v1676 = vpack.c.b16 %v1670, %v1669
    %v1677 = vpack.c.b16 %v1672, %v1671
    %v1678 = vpack.c.b16 %v1674, %v1673
    %v1687 = vunpack.c.l.b16 %v1035
    %v1688 = vunpack.c.l.b16 %v1036
    %v1689 = vunpack.c.l.b16 %v1037
    %v1690 = vunpack.c.l.b16 %v1038
    %v1691 = vunpack.c.l.b16 %v1039
    %v1692 = vunpack.c.l.b16 %v1040
    %v1693 = vunpack.c.l.b16 %v1041
    %v1694 = vunpack.c.l.b16 %v1042
    %v1695 = vpack.c.b16 %v1688, %v1687
    %v1696 = vpack.c.b16 %v1690, %v1689
    %v1697 = vpack.c.b16 %v1692, %v1691
    %v1698 = vpack.c.b16 %v1694, %v1693
    %1699 = vrot.lane.b32.xlu0 %v1695, 32
    %v1700 = vpop.permute.xlu0 %1699
    %1701 = vrot.lane.b32.xlu0 %v1696, 32
    %v1702 = vpop.permute.xlu0 %1701
    %1703 = vrot.lane.b32.xlu0 %v1697, 32
    %v1704 = vpop.permute.xlu0 %1703
    %1705 = vrot.lane.b32.xlu0 %v1698, 32
    %v1706 = vpop.permute.xlu0 %1705
    %v1715 = vunpack.c.l.b16 %v1343
    %v1716 = vunpack.c.l.b16 %v1344
    %v1717 = vunpack.c.l.b16 %v1345
    %v1718 = vunpack.c.l.b16 %v1346
    %v1719 = vunpack.c.l.b16 %v1347
    %v1720 = vunpack.c.l.b16 %v1348
    %v1721 = vunpack.c.l.b16 %v1349
    %v1722 = vunpack.c.l.b16 %v1350
    %v1723 = vpack.c.b16 %v1716, %v1715
    %v1724 = vpack.c.b16 %v1718, %v1717
    %v1725 = vpack.c.b16 %v1720, %v1719
    %v1726 = vpack.c.b16 %v1722, %v1721
    %1727 = vrot.lane.b32.xlu0 %v1723, 64
    %v1728 = vpop.permute.xlu0 %1727
    %1729 = vrot.lane.b32.xlu0 %v1724, 64
    %v1730 = vpop.permute.xlu0 %1729
    %1731 = vrot.lane.b32.xlu0 %v1725, 64
    %v1732 = vpop.permute.xlu0 %1731
    %1733 = vrot.lane.b32.xlu0 %v1726, 64
    %v1734 = vpop.permute.xlu0 %1733
    %v1743 = vunpack.c.l.b16 %v1651
    %v1744 = vunpack.c.l.b16 %v1652
    %v1745 = vunpack.c.l.b16 %v1653
    %v1746 = vunpack.c.l.b16 %v1654
    %v1747 = vunpack.c.l.b16 %v1655
    %v1748 = vunpack.c.l.b16 %v1656
    %v1749 = vunpack.c.l.b16 %v1657
    %v1750 = vunpack.c.l.b16 %v1658
    %v1751 = vpack.c.b16 %v1744, %v1743
    %v1752 = vpack.c.b16 %v1746, %v1745
    %v1753 = vpack.c.b16 %v1748, %v1747
    %v1754 = vpack.c.b16 %v1750, %v1749
    %1755 = vrot.lane.b32.xlu0 %v1751, 96
    %v1756 = vpop.permute.xlu0 %1755
    %1757 = vrot.lane.b32.xlu0 %v1752, 96
    %v1758 = vpop.permute.xlu0 %1757
    %1759 = vrot.lane.b32.xlu0 %v1753, 96
    %v1760 = vpop.permute.xlu0 %1759
    %1761 = vrot.lane.b32.xlu0 %v1754, 96
    %v1762 = vpop.permute.xlu0 %1761
    %v1765 = vsel %vm411, %v1675, %v1700
    %v1768 = vsel %vm411, %v1676, %v1702
    %v1771 = vsel %vm411, %v1677, %v1704
    %v1774 = vsel %vm411, %v1678, %v1706
    %vm1775 = vcmask 523264
    %v1777 = vsel %vm1775, %v1765, %v1728
    %v1779 = vsel %vm1775, %v1768, %v1730
    %v1781 = vsel %vm1775, %v1771, %v1732
    %v1783 = vsel %vm1775, %v1774, %v1734
    %vm1784 = vcmask 785408
    %v1786 = vsel %vm1784, %v1777, %v1756
    %v1789 = vsel %vm1784, %v1779, %v1758
    %v1792 = vsel %vm1784, %v1781, %v1760
    %v1795 = vsel %vm1784, %v1783, %v1762
    %v1798 = vperm.slane %v138, 0
    %v1816 = vunpack.c.l.b16 %v122
    %v1817 = vunpack.c.l.b16 %v123
    %v1818 = vunpack.c.l.b16 %v124
    %v1819 = vunpack.c.l.b16 %v125
    %v1820 = vunpack.c.l.b16 %v126
    %v1821 = vunpack.c.l.b16 %v127
    %v1822 = vunpack.c.l.b16 %v128
    %v1823 = vunpack.c.l.b16 %v129
    %v1824 = vunpack.c.l.b16 %v130
    %v1825 = vunpack.c.l.b16 %v131
    %v1826 = vunpack.c.l.b16 %v132
    %v1827 = vunpack.c.l.b16 %v133
    %v1828 = vunpack.c.l.b16 %v134
    %v1829 = vunpack.c.l.b16 %v135
    %v1830 = vunpack.c.l.b16 %v136
    %v1831 = vunpack.c.l.b16 %v137
    %v1832 = vpack.c.b16 %v1817, %v1816
    %v1833 = vpack.c.b16 %v1819, %v1818
    %v1834 = vpack.c.b16 %v1821, %v1820
    %v1835 = vpack.c.b16 %v1823, %v1822
    %v1836 = vpack.c.b16 %v1825, %v1824
    %v1837 = vpack.c.b16 %v1827, %v1826
    %v1838 = vpack.c.b16 %v1829, %v1828
    %v1839 = vpack.c.b16 %v1831, %v1830
    %1848 = vmatpush.bf16.msra.mxu0 %v1839
    %1849 = vmatpush.bf16.msra.mxu0 %v1838
    %1850 = vmatpush.bf16.msra.mxu0 %v1837
    %1851 = vmatpush.bf16.msra.mxu0 %v1836
    %1852 = vmatpush.bf16.msra.mxu0 %v1835
    %1853 = vmatpush.bf16.msra.mxu0 %v1834
    %1854 = vmatpush.bf16.msra.mxu0 %v1833
    %1855 = vmatpush.bf16.msra.mxu0 %v1832
    %1856 = vmatmul.bf16.gmra.mxu0 %v1786
    %v1857 = vpop.f32.mrf.mxu0
    %v1858 = vadd.f32 %v1798, %v1857
    %v1859 = vpop.f32.mrf.mxu0
    %v1860 = vadd.f32 %v1798, %v1859
    %1861 = vmatmul.bf16.gmra.mxu0 %v1789
    %v1862 = vpop.f32.mrf.mxu0
    %v1863 = vadd.f32 %v1798, %v1862
    %v1864 = vpop.f32.mrf.mxu0
    %v1865 = vadd.f32 %v1798, %v1864
    %1866 = vmatmul.bf16.gmra.mxu0 %v1792
    %v1867 = vpop.f32.mrf.mxu0
    %v1868 = vadd.f32 %v1798, %v1867
    %v1869 = vpop.f32.mrf.mxu0
    %v1870 = vadd.f32 %v1798, %v1869
    %1871 = vmatmul.bf16.gmra.mxu0 %v1795
    %v1872 = vpop.f32.mrf.mxu0
    %v1873 = vadd.f32 %v1798, %v1872
    %v1874 = vpop.f32.mrf.mxu0
    %v1875 = vadd.f32 %v1798, %v1874
    %1876 = vdwg.mxu0
    %v1877 = vpack.c.bf16 %v1860, %v1858
    %v1878 = vpack.c.bf16 %v1865, %v1863
    %v1879 = vpack.c.bf16 %v1870, %v1868
    %v1880 = vpack.c.bf16 %v1875, %v1873
    %1881 = vmatpush.bf16.msra.mxu0 %v259
    %1882 = vmatpush.bf16.msra.mxu0 %v256
    %1883 = vmatpush.bf16.msra.mxu0 %v253
    %1884 = vmatpush.bf16.msra.mxu0 %v250
    %1885 = vmatpush.bf16.msra.mxu0 %v247
    %1886 = vmatpush.bf16.msra.mxu0 %v244
    %1887 = vmatpush.bf16.msra.mxu0 %v241
    %1888 = vmatpush.bf16.msra.mxu0 %v238
    %1889 = vmatmul.bf16.gmra.mxu0 %v1877
    %v1890 = vpop.f32.mrf.mxu0
    %v1891 = vadd.f32 %v152, %v1890
    %v1892 = vpop.f32.mrf.mxu0
    %v1893 = vadd.f32 %v152, %v1892
    %1894 = vmatmul.bf16.gmra.mxu0 %v1878
    %v1895 = vpop.f32.mrf.mxu0
    %v1896 = vadd.f32 %v152, %v1895
    %v1897 = vpop.f32.mrf.mxu0
    %v1898 = vadd.f32 %v152, %v1897
    %1899 = vmatmul.bf16.gmra.mxu0 %v1879
    %v1900 = vpop.f32.mrf.mxu0
    %v1901 = vadd.f32 %v152, %v1900
    %v1902 = vpop.f32.mrf.mxu0
    %v1903 = vadd.f32 %v152, %v1902
    %1904 = vmatmul.bf16.gmra.mxu0 %v1880
    %v1905 = vpop.f32.mrf.mxu0
    %v1906 = vadd.f32 %v152, %v1905
    %v1907 = vpop.f32.mrf.mxu0
    %v1908 = vadd.f32 %v152, %v1907
    %1909 = vdwg.mxu0
    %1910 = vmatpush.bf16.msra.mxu0 %v260
    %1911 = vmatpush.bf16.msra.mxu0 %v257
    %1912 = vmatpush.bf16.msra.mxu0 %v254
    %1913 = vmatpush.bf16.msra.mxu0 %v251
    %1914 = vmatpush.bf16.msra.mxu0 %v248
    %1915 = vmatpush.bf16.msra.mxu0 %v245
    %1916 = vmatpush.bf16.msra.mxu0 %v242
    %1917 = vmatpush.bf16.msra.mxu0 %v239
    %1918 = vmatmul.bf16.gmra.mxu0 %v1877
    %v1919 = vpop.f32.mrf.mxu0
    %v1920 = vadd.f32 %v153, %v1919
    %v1921 = vpop.f32.mrf.mxu0
    %v1922 = vadd.f32 %v153, %v1921
    %1923 = vmatmul.bf16.gmra.mxu0 %v1878
    %v1924 = vpop.f32.mrf.mxu0
    %v1925 = vadd.f32 %v153, %v1924
    %v1926 = vpop.f32.mrf.mxu0
    %v1927 = vadd.f32 %v153, %v1926
    %1928 = vmatmul.bf16.gmra.mxu0 %v1879
    %v1929 = vpop.f32.mrf.mxu0
    %v1930 = vadd.f32 %v153, %v1929
    %v1931 = vpop.f32.mrf.mxu0
    %v1932 = vadd.f32 %v153, %v1931
    %1933 = vmatmul.bf16.gmra.mxu0 %v1880
    %v1934 = vpop.f32.mrf.mxu0
    %v1935 = vadd.f32 %v153, %v1934
    %v1936 = vpop.f32.mrf.mxu0
    %v1937 = vadd.f32 %v153, %v1936
    %1938 = vdwg.mxu0
    %1939 = vmatpush.bf16.msra.mxu0 %v261
    %1940 = vmatpush.bf16.msra.mxu0 %v258
    %1941 = vmatpush.bf16.msra.mxu0 %v255
    %1942 = vmatpush.bf16.msra.mxu0 %v252
    %1943 = vmatpush.bf16.msra.mxu0 %v249
    %1944 = vmatpush.bf16.msra.mxu0 %v246
    %1945 = vmatpush.bf16.msra.mxu0 %v243
    %1946 = vmatpush.bf16.msra.mxu0 %v240
    %1947 = vmatmul.bf16.gmra.mxu0 %v1877
    %v1948 = vpop.f32.mrf.mxu0
    %v1949 = vadd.f32 %v154, %v1948
    %v1950 = vpop.f32.mrf.mxu0
    %v1951 = vadd.f32 %v154, %v1950
    %1952 = vmatmul.bf16.gmra.mxu0 %v1878
    %v1953 = vpop.f32.mrf.mxu0
    %v1954 = vadd.f32 %v154, %v1953
    %v1955 = vpop.f32.mrf.mxu0
    %v1956 = vadd.f32 %v154, %v1955
    %1957 = vmatmul.bf16.gmra.mxu0 %v1879
    %v1958 = vpop.f32.mrf.mxu0
    %v1959 = vadd.f32 %v154, %v1958
    %v1960 = vpop.f32.mrf.mxu0
    %v1961 = vadd.f32 %v154, %v1960
    %1962 = vmatmul.bf16.gmra.mxu0 %v1880
    %v1963 = vpop.f32.mrf.mxu0
    %v1964 = vadd.f32 %v154, %v1963
    %v1965 = vpop.f32.mrf.mxu0
    %v1966 = vadd.f32 %v154, %v1965
    %1967 = vdwg.mxu0
    %v1968 = vpack.c.bf16 %v1920, %v1891
    %v1969 = vpack.c.bf16 %v1949, %v1949
    %v1970 = vpack.c.bf16 %v1922, %v1893
    %v1971 = vpack.c.bf16 %v1951, %v1951
    %v1972 = vpack.c.bf16 %v1925, %v1896
    %v1973 = vpack.c.bf16 %v1954, %v1954
    %v1974 = vpack.c.bf16 %v1927, %v1898
    %v1975 = vpack.c.bf16 %v1956, %v1956
    %v1976 = vpack.c.bf16 %v1930, %v1901
    %v1977 = vpack.c.bf16 %v1959, %v1959
    %v1978 = vpack.c.bf16 %v1932, %v1903
    %v1979 = vpack.c.bf16 %v1961, %v1961
    %v1980 = vpack.c.bf16 %v1935, %v1906
    %v1981 = vpack.c.bf16 %v1964, %v1964
    %v1982 = vpack.c.bf16 %v1937, %v1908
    %v1983 = vpack.c.bf16 %v1966, %v1966
    %v1992 = vrot.slane %v1968, 4
    %v1993 = vrot.slane %v1970, 4
    %v1994 = vrot.slane %v1972, 4
    %v1995 = vrot.slane %v1974, 4
    %v1996 = vrot.slane %v1976, 4
    %v1997 = vrot.slane %v1978, 4
    %v1998 = vrot.slane %v1980, 4
    %v1999 = vrot.slane %v1982, 4
    %v2000 = vunpack.c.l.b16 %v1968
    %v2001 = vunpack.c.l.b16 %v1970
    %v2002 = vpack.c.b16 %v2001, %v2000
    %v2003 = vunpack.c.l.b16 %v1992
    %v2004 = vunpack.c.l.b16 %v1993
    %v2005 = vpack.c.b16 %v2004, %v2003
    %v2007 = vsel %vm411, %v2002, 0
    %v2010 = vsel %vm411, %v2005, 0
    %2012 = vmatpush.bf16.xpose.msra.mxu0 0
    %2013 = vmatpush.bf16.xpose.msra.mxu0 0
    %2014 = vmatpush.bf16.xpose.msra.mxu0 0
    %2015 = vmatpush.bf16.xpose.msra.mxu0 0
    %2016 = vmatpush.bf16.xpose.msra.mxu0 0
    %2017 = vmatpush.bf16.xpose.msra.mxu0 0
    %2018 = vmatpush.bf16.xpose.msra.mxu0 0
    %2019 = vmatpush.bf16.xpose.msra.mxu0 %v2010
    %2020 = vmatmul.bf16.gmra.mxu0 %v2007
    %v2021 = vpop.f32.mrf.mxu0
    %v2022 = vadd.f32 0.0, %v2021
    %v2023 = vpop.f32.mrf.mxu0
    %v2024 = vadd.f32 0.0, %v2023
    %2025 = vdwg.mxu0
    %v2026 = vunpack.c.l.b16 %v1972
    %v2027 = vunpack.c.l.b16 %v1974
    %v2028 = vpack.c.b16 %v2027, %v2026
    %v2029 = vunpack.c.l.b16 %v1994
    %v2030 = vunpack.c.l.b16 %v1995
    %v2031 = vpack.c.b16 %v2030, %v2029
    %v2033 = vsel %vm411, %v2028, 0
    %v2036 = vsel %vm411, %v2031, 0
    %2038 = vmatpush.bf16.xpose.msra.mxu0 0
    %2039 = vmatpush.bf16.xpose.msra.mxu0 0
    %2040 = vmatpush.bf16.xpose.msra.mxu0 0
    %2041 = vmatpush.bf16.xpose.msra.mxu0 0
    %2042 = vmatpush.bf16.xpose.msra.mxu0 0
    %2043 = vmatpush.bf16.xpose.msra.mxu0 0
    %2044 = vmatpush.bf16.xpose.msra.mxu0 0
    %2045 = vmatpush.bf16.xpose.msra.mxu0 %v2036
    %2046 = vmatmul.bf16.gmra.mxu0 %v2033
    %v2047 = vpop.f32.mrf.mxu0
    %v2048 = vadd.f32 0.0, %v2047
    %v2049 = vpop.f32.mrf.mxu0
    %v2050 = vadd.f32 0.0, %v2049
    %2051 = vdwg.mxu0
    %v2052 = vunpack.c.l.b16 %v1976
    %v2053 = vunpack.c.l.b16 %v1978
    %v2054 = vpack.c.b16 %v2053, %v2052
    %v2055 = vunpack.c.l.b16 %v1996
    %v2056 = vunpack.c.l.b16 %v1997
    %v2057 = vpack.c.b16 %v2056, %v2055
    %v2059 = vsel %vm411, %v2054, 0
    %v2062 = vsel %vm411, %v2057, 0
    %2064 = vmatpush.bf16.xpose.msra.mxu0 0
    %2065 = vmatpush.bf16.xpose.msra.mxu0 0
    %2066 = vmatpush.bf16.xpose.msra.mxu0 0
    %2067 = vmatpush.bf16.xpose.msra.mxu0 0
    %2068 = vmatpush.bf16.xpose.msra.mxu0 0
    %2069 = vmatpush.bf16.xpose.msra.mxu0 0
    %2070 = vmatpush.bf16.xpose.msra.mxu0 0
    %2071 = vmatpush.bf16.xpose.msra.mxu0 %v2062
    %2072 = vmatmul.bf16.gmra.mxu0 %v2059
    %v2073 = vpop.f32.mrf.mxu0
    %v2074 = vadd.f32 0.0, %v2073
    %v2075 = vpop.f32.mrf.mxu0
    %v2076 = vadd.f32 0.0, %v2075
    %2077 = vdwg.mxu0
    %v2078 = vunpack.c.l.b16 %v1980
    %v2079 = vunpack.c.l.b16 %v1982
    %v2080 = vpack.c.b16 %v2079, %v2078
    %v2081 = vunpack.c.l.b16 %v1998
    %v2082 = vunpack.c.l.b16 %v1999
    %v2083 = vpack.c.b16 %v2082, %v2081
    %v2085 = vsel %vm411, %v2080, 0
    %v2088 = vsel %vm411, %v2083, 0
    %2090 = vmatpush.bf16.xpose.msra.mxu0 0
    %2091 = vmatpush.bf16.xpose.msra.mxu0 0
    %2092 = vmatpush.bf16.xpose.msra.mxu0 0
    %2093 = vmatpush.bf16.xpose.msra.mxu0 0
    %2094 = vmatpush.bf16.xpose.msra.mxu0 0
    %2095 = vmatpush.bf16.xpose.msra.mxu0 0
    %2096 = vmatpush.bf16.xpose.msra.mxu0 0
    %2097 = vmatpush.bf16.xpose.msra.mxu0 %v2088
    %2098 = vmatmul.bf16.gmra.mxu0 %v2085
    %v2099 = vpop.f32.mrf.mxu0
    %v2100 = vadd.f32 0.0, %v2099
    %v2101 = vpop.f32.mrf.mxu0
    %v2102 = vadd.f32 0.0, %v2101
    %2103 = vdwg.mxu0
    %v2104 = vmul.f32 %v2022, 0.17677669
    %v2105 = vmul.f32 %v2024, 0.17677669
    %v2106 = vmul.f32 %v2048, 0.17677669
    %v2107 = vmul.f32 %v2050, 0.17677669
    %v2108 = vmul.f32 %v2074, 0.17677669
    %v2109 = vmul.f32 %v2076, 0.17677669
    %v2110 = vmul.f32 %v2100, 0.17677669
    %v2111 = vmul.f32 %v2102, 0.17677669
    %v2112 = vsel %vm518, %v2104, -inf
    %2113 = vmax.xlane.f32.xlu0 %v2112
    %v2114 = vpop.xlane.xlu0 %2113
    %v2115 = vsel %vm518, %v2105, -inf
    %2116 = vmax.xlane.f32.xlu0 %v2115
    %v2117 = vpop.xlane.xlu0 %2116
    %v2118 = vsel %vm518, %v2106, -inf
    %2119 = vmax.xlane.f32.xlu0 %v2118
    %v2120 = vpop.xlane.xlu0 %2119
    %v2121 = vsel %vm518, %v2107, -inf
    %2122 = vmax.xlane.f32.xlu0 %v2121
    %v2123 = vpop.xlane.xlu0 %2122
    %v2124 = vsel %vm518, %v2108, -inf
    %2125 = vmax.xlane.f32.xlu0 %v2124
    %v2126 = vpop.xlane.xlu0 %2125
    %v2127 = vsel %vm518, %v2109, -inf
    %2128 = vmax.xlane.f32.xlu0 %v2127
    %v2129 = vpop.xlane.xlu0 %2128
    %v2130 = vsel %vm518, %v2110, -inf
    %2131 = vmax.xlane.f32.xlu0 %v2130
    %v2132 = vpop.xlane.xlu0 %2131
    %v2133 = vsel %vm518, %v2111, -inf
    %2134 = vmax.xlane.f32.xlu0 %v2133
    %v2135 = vpop.xlane.xlu0 %2134
    %v2136 = vsub.f32 %v2104, %v2114
    %v2137 = vsub.f32 %v2105, %v2117
    %v2138 = vsub.f32 %v2106, %v2120
    %v2139 = vsub.f32 %v2107, %v2123
    %v2140 = vsub.f32 %v2108, %v2126
    %v2141 = vsub.f32 %v2109, %v2129
    %v2142 = vsub.f32 %v2110, %v2132
    %v2143 = vsub.f32 %v2111, %v2135
    %v2144 = vmul.f32 %v2136, 1.442695
    %v2145 = vpow.pop %v2144
    %v2146 = vmul.f32 %v2137, 1.442695
    %v2147 = vpow.pop %v2146
    %v2148 = vmul.f32 %v2138, 1.442695
    %v2149 = vpow.pop %v2148
    %v2150 = vmul.f32 %v2139, 1.442695
    %v2151 = vpow.pop %v2150
    %v2152 = vmul.f32 %v2140, 1.442695
    %v2153 = vpow.pop %v2152
    %v2154 = vmul.f32 %v2141, 1.442695
    %v2155 = vpow.pop %v2154
    %v2156 = vmul.f32 %v2142, 1.442695
    %v2157 = vpow.pop %v2156
    %v2158 = vmul.f32 %v2143, 1.442695
    %v2159 = vpow.pop %v2158
    %v2160 = vsel %vm518, %v2145, 0.0
    %2161 = vadd.xlane.f32.xlu0 %v2160
    %v2162 = vpop.xlane.xlu0 %2161
    %v2163 = vsel %vm518, %v2147, 0.0
    %2164 = vadd.xlane.f32.xlu0 %v2163
    %v2165 = vpop.xlane.xlu0 %2164
    %v2166 = vsel %vm518, %v2149, 0.0
    %2167 = vadd.xlane.f32.xlu0 %v2166
    %v2168 = vpop.xlane.xlu0 %2167
    %v2169 = vsel %vm518, %v2151, 0.0
    %2170 = vadd.xlane.f32.xlu0 %v2169
    %v2171 = vpop.xlane.xlu0 %2170
    %v2172 = vsel %vm518, %v2153, 0.0
    %2173 = vadd.xlane.f32.xlu0 %v2172
    %v2174 = vpop.xlane.xlu0 %2173
    %v2175 = vsel %vm518, %v2155, 0.0
    %2176 = vadd.xlane.f32.xlu0 %v2175
    %v2177 = vpop.xlane.xlu0 %2176
    %v2178 = vsel %vm518, %v2157, 0.0
    %2179 = vadd.xlane.f32.xlu0 %v2178
    %v2180 = vpop.xlane.xlu0 %2179
    %v2181 = vsel %vm518, %v2159, 0.0
    %2182 = vadd.xlane.f32.xlu0 %v2181
    %v2183 = vpop.xlane.xlu0 %2182
    %v2184 = vrcp.pop %v2162
    %v2185 = vrcp.pop %v2165
    %v2186 = vrcp.pop %v2168
    %v2187 = vrcp.pop %v2171
    %v2188 = vrcp.pop %v2174
    %v2189 = vrcp.pop %v2177
    %v2190 = vrcp.pop %v2180
    %v2191 = vrcp.pop %v2183
    %v2192 = vmul.f32 %v2145, %v2184
    %v2193 = vmul.f32 %v2147, %v2185
    %v2194 = vmul.f32 %v2149, %v2186
    %v2195 = vmul.f32 %v2151, %v2187
    %v2196 = vmul.f32 %v2153, %v2188
    %v2197 = vmul.f32 %v2155, %v2189
    %v2198 = vmul.f32 %v2157, %v2190
    %v2199 = vmul.f32 %v2159, %v2191
    %v2200 = vpack.c.bf16 %v2192, %v2192
    %v2201 = vpack.c.bf16 %v2193, %v2193
    %v2202 = vpack.c.bf16 %v2194, %v2194
    %v2203 = vpack.c.bf16 %v2195, %v2195
    %v2204 = vpack.c.bf16 %v2196, %v2196
    %v2205 = vpack.c.bf16 %v2197, %v2197
    %v2206 = vpack.c.bf16 %v2198, %v2198
    %v2207 = vpack.c.bf16 %v2199, %v2199
    %v2210 = vunpack.c.l.b16 %v2200
    %v2211 = vunpack.c.l.b16 %v2201
    %v2212 = vpack.c.b16 %v2211, %v2210
    %v2215 = vunpack.c.l.b16 %v1969
    %v2216 = vunpack.c.l.b16 %v1971
    %v2217 = vpack.c.b16 %v2216, %v2215
    %v2220 = vsel %vm518, %v2212, 0
    %2222 = vmatpush.bf16.msra.mxu0 0
    %2223 = vmatpush.bf16.msra.mxu0 0
    %2224 = vmatpush.bf16.msra.mxu0 0
    %2225 = vmatpush.bf16.msra.mxu0 0
    %2226 = vmatpush.bf16.msra.mxu0 0
    %2227 = vmatpush.bf16.msra.mxu0 0
    %2228 = vmatpush.bf16.msra.mxu0 0
    %2229 = vmatpush.bf16.msra.mxu0 %v2217
    %2230 = vmatmul.bf16.gmra.mxu0 %v2220
    %v2231 = vpop.f32.mrf.mxu0
    %v2232 = vadd.f32 0.0, %v2231
    %v2233 = vpop.f32.mrf.mxu0
    %v2234 = vadd.f32 0.0, %v2233
    %2235 = vdwg.mxu0
    %v2238 = vunpack.c.l.b16 %v2202
    %v2239 = vunpack.c.l.b16 %v2203
    %v2240 = vpack.c.b16 %v2239, %v2238
    %v2243 = vunpack.c.l.b16 %v1973
    %v2244 = vunpack.c.l.b16 %v1975
    %v2245 = vpack.c.b16 %v2244, %v2243
    %v2248 = vsel %vm518, %v2240, 0
    %2250 = vmatpush.bf16.msra.mxu0 0
    %2251 = vmatpush.bf16.msra.mxu0 0
    %2252 = vmatpush.bf16.msra.mxu0 0
    %2253 = vmatpush.bf16.msra.mxu0 0
    %2254 = vmatpush.bf16.msra.mxu0 0
    %2255 = vmatpush.bf16.msra.mxu0 0
    %2256 = vmatpush.bf16.msra.mxu0 0
    %2257 = vmatpush.bf16.msra.mxu0 %v2245
    %2258 = vmatmul.bf16.gmra.mxu0 %v2248
    %v2259 = vpop.f32.mrf.mxu0
    %v2260 = vadd.f32 0.0, %v2259
    %v2261 = vpop.f32.mrf.mxu0
    %v2262 = vadd.f32 0.0, %v2261
    %2263 = vdwg.mxu0
    %v2266 = vunpack.c.l.b16 %v2204
    %v2267 = vunpack.c.l.b16 %v2205
    %v2268 = vpack.c.b16 %v2267, %v2266
    %v2271 = vunpack.c.l.b16 %v1977
    %v2272 = vunpack.c.l.b16 %v1979
    %v2273 = vpack.c.b16 %v2272, %v2271
    %v2276 = vsel %vm518, %v2268, 0
    %2278 = vmatpush.bf16.msra.mxu0 0
    %2279 = vmatpush.bf16.msra.mxu0 0
    %2280 = vmatpush.bf16.msra.mxu0 0
    %2281 = vmatpush.bf16.msra.mxu0 0
    %2282 = vmatpush.bf16.msra.mxu0 0
    %2283 = vmatpush.bf16.msra.mxu0 0
    %2284 = vmatpush.bf16.msra.mxu0 0
    %2285 = vmatpush.bf16.msra.mxu0 %v2273
    %2286 = vmatmul.bf16.gmra.mxu0 %v2276
    %v2287 = vpop.f32.mrf.mxu0
    %v2288 = vadd.f32 0.0, %v2287
    %v2289 = vpop.f32.mrf.mxu0
    %v2290 = vadd.f32 0.0, %v2289
    %2291 = vdwg.mxu0
    %v2294 = vunpack.c.l.b16 %v2206
    %v2295 = vunpack.c.l.b16 %v2207
    %v2296 = vpack.c.b16 %v2295, %v2294
    %v2299 = vunpack.c.l.b16 %v1981
    %v2300 = vunpack.c.l.b16 %v1983
    %v2301 = vpack.c.b16 %v2300, %v2299
    %v2304 = vsel %vm518, %v2296, 0
    %2306 = vmatpush.bf16.msra.mxu0 0
    %2307 = vmatpush.bf16.msra.mxu0 0
    %2308 = vmatpush.bf16.msra.mxu0 0
    %2309 = vmatpush.bf16.msra.mxu0 0
    %2310 = vmatpush.bf16.msra.mxu0 0
    %2311 = vmatpush.bf16.msra.mxu0 0
    %2312 = vmatpush.bf16.msra.mxu0 0
    %2313 = vmatpush.bf16.msra.mxu0 %v2301
    %2314 = vmatmul.bf16.gmra.mxu0 %v2304
    %v2315 = vpop.f32.mrf.mxu0
    %v2316 = vadd.f32 0.0, %v2315
    %v2317 = vpop.f32.mrf.mxu0
    %v2318 = vadd.f32 0.0, %v2317
    %2319 = vdwg.mxu0
    %v2320 = vpack.c.bf16 %v2232, %v2232
    %v2321 = vpack.c.bf16 %v2234, %v2234
    %v2322 = vpack.c.bf16 %v2260, %v2260
    %v2323 = vpack.c.bf16 %v2262, %v2262
    %v2324 = vpack.c.bf16 %v2288, %v2288
    %v2325 = vpack.c.bf16 %v2290, %v2290
    %v2326 = vpack.c.bf16 %v2316, %v2316
    %v2327 = vpack.c.bf16 %v2318, %v2318
    %2328 = vrot.lane.b32.xlu0 %v2002, 96
    %v2329 = vpop.permute.xlu0 %2328
    %2330 = vrot.lane.b32.xlu0 %v2005, 96
    %v2331 = vpop.permute.xlu0 %2330
    %v2333 = vsel %vm411, %v2329, 0
    %v2336 = vsel %vm411, %v2331, 0
    %2338 = vmatpush.bf16.xpose.msra.mxu0 0
    %2339 = vmatpush.bf16.xpose.msra.mxu0 0
    %2340 = vmatpush.bf16.xpose.msra.mxu0 0
    %2341 = vmatpush.bf16.xpose.msra.mxu0 0
    %2342 = vmatpush.bf16.xpose.msra.mxu0 0
    %2343 = vmatpush.bf16.xpose.msra.mxu0 0
    %2344 = vmatpush.bf16.xpose.msra.mxu0 0
    %2345 = vmatpush.bf16.xpose.msra.mxu0 %v2336
    %2346 = vmatmul.bf16.gmra.mxu0 %v2333
    %v2347 = vpop.f32.mrf.mxu0
    %v2348 = vadd.f32 0.0, %v2347
    %v2349 = vpop.f32.mrf.mxu0
    %v2350 = vadd.f32 0.0, %v2349
    %2351 = vdwg.mxu0
    %2352 = vrot.lane.b32.xlu0 %v2028, 96
    %v2353 = vpop.permute.xlu0 %2352
    %2354 = vrot.lane.b32.xlu0 %v2031, 96
    %v2355 = vpop.permute.xlu0 %2354
    %v2357 = vsel %vm411, %v2353, 0
    %v2360 = vsel %vm411, %v2355, 0
    %2362 = vmatpush.bf16.xpose.msra.mxu0 0
    %2363 = vmatpush.bf16.xpose.msra.mxu0 0
    %2364 = vmatpush.bf16.xpose.msra.mxu0 0
    %2365 = vmatpush.bf16.xpose.msra.mxu0 0
    %2366 = vmatpush.bf16.xpose.msra.mxu0 0
    %2367 = vmatpush.bf16.xpose.msra.mxu0 0
    %2368 = vmatpush.bf16.xpose.msra.mxu0 0
    %2369 = vmatpush.bf16.xpose.msra.mxu0 %v2360
    %2370 = vmatmul.bf16.gmra.mxu0 %v2357
    %v2371 = vpop.f32.mrf.mxu0
    %v2372 = vadd.f32 0.0, %v2371
    %v2373 = vpop.f32.mrf.mxu0
    %v2374 = vadd.f32 0.0, %v2373
    %2375 = vdwg.mxu0
    %2376 = vrot.lane.b32.xlu0 %v2054, 96
    %v2377 = vpop.permute.xlu0 %2376
    %2378 = vrot.lane.b32.xlu0 %v2057, 96
    %v2379 = vpop.permute.xlu0 %2378
    %v2381 = vsel %vm411, %v2377, 0
    %v2384 = vsel %vm411, %v2379, 0
    %2386 = vmatpush.bf16.xpose.msra.mxu0 0
    %2387 = vmatpush.bf16.xpose.msra.mxu0 0
    %2388 = vmatpush.bf16.xpose.msra.mxu0 0
    %2389 = vmatpush.bf16.xpose.msra.mxu0 0
    %2390 = vmatpush.bf16.xpose.msra.mxu0 0
    %2391 = vmatpush.bf16.xpose.msra.mxu0 0
    %2392 = vmatpush.bf16.xpose.msra.mxu0 0
    %2393 = vmatpush.bf16.xpose.msra.mxu0 %v2384
    %2394 = vmatmul.bf16.gmra.mxu0 %v2381
    %v2395 = vpop.f32.mrf.mxu0
    %v2396 = vadd.f32 0.0, %v2395
    %v2397 = vpop.f32.mrf.mxu0
    %v2398 = vadd.f32 0.0, %v2397
    %2399 = vdwg.mxu0
    %2400 = vrot.lane.b32.xlu0 %v2080, 96
    %v2401 = vpop.permute.xlu0 %2400
    %2402 = vrot.lane.b32.xlu0 %v2083, 96
    %v2403 = vpop.permute.xlu0 %2402
    %v2405 = vsel %vm411, %v2401, 0
    %v2408 = vsel %vm411, %v2403, 0
    %2410 = vmatpush.bf16.xpose.msra.mxu0 0
    %2411 = vmatpush.bf16.xpose.msra.mxu0 0
    %2412 = vmatpush.bf16.xpose.msra.mxu0 0
    %2413 = vmatpush.bf16.xpose.msra.mxu0 0
    %2414 = vmatpush.bf16.xpose.msra.mxu0 0
    %2415 = vmatpush.bf16.xpose.msra.mxu0 0
    %2416 = vmatpush.bf16.xpose.msra.mxu0 0
    %2417 = vmatpush.bf16.xpose.msra.mxu0 %v2408
    %2418 = vmatmul.bf16.gmra.mxu0 %v2405
    %v2419 = vpop.f32.mrf.mxu0
    %v2420 = vadd.f32 0.0, %v2419
    %v2421 = vpop.f32.mrf.mxu0
    %v2422 = vadd.f32 0.0, %v2421
    %2423 = vdwg.mxu0
    %v2424 = vmul.f32 %v2348, 0.17677669
    %v2425 = vmul.f32 %v2350, 0.17677669
    %v2426 = vmul.f32 %v2372, 0.17677669
    %v2427 = vmul.f32 %v2374, 0.17677669
    %v2428 = vmul.f32 %v2396, 0.17677669
    %v2429 = vmul.f32 %v2398, 0.17677669
    %v2430 = vmul.f32 %v2420, 0.17677669
    %v2431 = vmul.f32 %v2422, 0.17677669
    %v2432 = vsel %vm518, %v2424, -inf
    %2433 = vmax.xlane.f32.xlu0 %v2432
    %v2434 = vpop.xlane.xlu0 %2433
    %v2435 = vsel %vm518, %v2425, -inf
    %2436 = vmax.xlane.f32.xlu0 %v2435
    %v2437 = vpop.xlane.xlu0 %2436
    %v2438 = vsel %vm518, %v2426, -inf
    %2439 = vmax.xlane.f32.xlu0 %v2438
    %v2440 = vpop.xlane.xlu0 %2439
    %v2441 = vsel %vm518, %v2427, -inf
    %2442 = vmax.xlane.f32.xlu0 %v2441
    %v2443 = vpop.xlane.xlu0 %2442
    %v2444 = vsel %vm518, %v2428, -inf
    %2445 = vmax.xlane.f32.xlu0 %v2444
    %v2446 = vpop.xlane.xlu0 %2445
    %v2447 = vsel %vm518, %v2429, -inf
    %2448 = vmax.xlane.f32.xlu0 %v2447
    %v2449 = vpop.xlane.xlu0 %2448
    %v2450 = vsel %vm518, %v2430, -inf
    %2451 = vmax.xlane.f32.xlu0 %v2450
    %v2452 = vpop.xlane.xlu0 %2451
    %v2453 = vsel %vm518, %v2431, -inf
    %2454 = vmax.xlane.f32.xlu0 %v2453
    %v2455 = vpop.xlane.xlu0 %2454
    %v2456 = vsub.f32 %v2424, %v2434
    %v2457 = vsub.f32 %v2425, %v2437
    %v2458 = vsub.f32 %v2426, %v2440
    %v2459 = vsub.f32 %v2427, %v2443
    %v2460 = vsub.f32 %v2428, %v2446
    %v2461 = vsub.f32 %v2429, %v2449
    %v2462 = vsub.f32 %v2430, %v2452
    %v2463 = vsub.f32 %v2431, %v2455
    %v2464 = vmul.f32 %v2456, 1.442695
    %v2465 = vpow.pop %v2464
    %v2466 = vmul.f32 %v2457, 1.442695
    %v2467 = vpow.pop %v2466
    %v2468 = vmul.f32 %v2458, 1.442695
    %v2469 = vpow.pop %v2468
    %v2470 = vmul.f32 %v2459, 1.442695
    %v2471 = vpow.pop %v2470
    %v2472 = vmul.f32 %v2460, 1.442695
    %v2473 = vpow.pop %v2472
    %v2474 = vmul.f32 %v2461, 1.442695
    %v2475 = vpow.pop %v2474
    %v2476 = vmul.f32 %v2462, 1.442695
    %v2477 = vpow.pop %v2476
    %v2478 = vmul.f32 %v2463, 1.442695
    %v2479 = vpow.pop %v2478
    %v2480 = vsel %vm518, %v2465, 0.0
    %2481 = vadd.xlane.f32.xlu0 %v2480
    %v2482 = vpop.xlane.xlu0 %2481
    %v2483 = vsel %vm518, %v2467, 0.0
    %2484 = vadd.xlane.f32.xlu0 %v2483
    %v2485 = vpop.xlane.xlu0 %2484
    %v2486 = vsel %vm518, %v2469, 0.0
    %2487 = vadd.xlane.f32.xlu0 %v2486
    %v2488 = vpop.xlane.xlu0 %2487
    %v2489 = vsel %vm518, %v2471, 0.0
    %2490 = vadd.xlane.f32.xlu0 %v2489
    %v2491 = vpop.xlane.xlu0 %2490
    %v2492 = vsel %vm518, %v2473, 0.0
    %2493 = vadd.xlane.f32.xlu0 %v2492
    %v2494 = vpop.xlane.xlu0 %2493
    %v2495 = vsel %vm518, %v2475, 0.0
    %2496 = vadd.xlane.f32.xlu0 %v2495
    %v2497 = vpop.xlane.xlu0 %2496
    %v2498 = vsel %vm518, %v2477, 0.0
    %2499 = vadd.xlane.f32.xlu0 %v2498
    %v2500 = vpop.xlane.xlu0 %2499
    %v2501 = vsel %vm518, %v2479, 0.0
    %2502 = vadd.xlane.f32.xlu0 %v2501
    %v2503 = vpop.xlane.xlu0 %2502
    %v2504 = vrcp.pop %v2482
    %v2505 = vrcp.pop %v2485
    %v2506 = vrcp.pop %v2488
    %v2507 = vrcp.pop %v2491
    %v2508 = vrcp.pop %v2494
    %v2509 = vrcp.pop %v2497
    %v2510 = vrcp.pop %v2500
    %v2511 = vrcp.pop %v2503
    %v2512 = vmul.f32 %v2465, %v2504
    %v2513 = vmul.f32 %v2467, %v2505
    %v2514 = vmul.f32 %v2469, %v2506
    %v2515 = vmul.f32 %v2471, %v2507
    %v2516 = vmul.f32 %v2473, %v2508
    %v2517 = vmul.f32 %v2475, %v2509
    %v2518 = vmul.f32 %v2477, %v2510
    %v2519 = vmul.f32 %v2479, %v2511
    %v2520 = vpack.c.bf16 %v2512, %v2512
    %v2521 = vpack.c.bf16 %v2513, %v2513
    %v2522 = vpack.c.bf16 %v2514, %v2514
    %v2523 = vpack.c.bf16 %v2515, %v2515
    %v2524 = vpack.c.bf16 %v2516, %v2516
    %v2525 = vpack.c.bf16 %v2517, %v2517
    %v2526 = vpack.c.bf16 %v2518, %v2518
    %v2527 = vpack.c.bf16 %v2519, %v2519
    %v2530 = vunpack.c.l.b16 %v2520
    %v2531 = vunpack.c.l.b16 %v2521
    %v2532 = vpack.c.b16 %v2531, %v2530
    %2533 = vrot.lane.b32.xlu0 %v2217, 96
    %v2534 = vpop.permute.xlu0 %2533
    %v2537 = vsel %vm518, %v2532, 0
    %2539 = vmatpush.bf16.msra.mxu0 0
    %2540 = vmatpush.bf16.msra.mxu0 0
    %2541 = vmatpush.bf16.msra.mxu0 0
    %2542 = vmatpush.bf16.msra.mxu0 0
    %2543 = vmatpush.bf16.msra.mxu0 0
    %2544 = vmatpush.bf16.msra.mxu0 0
    %2545 = vmatpush.bf16.msra.mxu0 0
    %2546 = vmatpush.bf16.msra.mxu0 %v2534
    %2547 = vmatmul.bf16.gmra.mxu0 %v2537
    %v2548 = vpop.f32.mrf.mxu0
    %v2549 = vadd.f32 0.0, %v2548
    %v2550 = vpop.f32.mrf.mxu0
    %v2551 = vadd.f32 0.0, %v2550
    %2552 = vdwg.mxu0
    %v2555 = vunpack.c.l.b16 %v2522
    %v2556 = vunpack.c.l.b16 %v2523
    %v2557 = vpack.c.b16 %v2556, %v2555
    %2558 = vrot.lane.b32.xlu0 %v2245, 96
    %v2559 = vpop.permute.xlu0 %2558
    %v2562 = vsel %vm518, %v2557, 0
    %2564 = vmatpush.bf16.msra.mxu0 0
    %2565 = vmatpush.bf16.msra.mxu0 0
    %2566 = vmatpush.bf16.msra.mxu0 0
    %2567 = vmatpush.bf16.msra.mxu0 0
    %2568 = vmatpush.bf16.msra.mxu0 0
    %2569 = vmatpush.bf16.msra.mxu0 0
    %2570 = vmatpush.bf16.msra.mxu0 0
    %2571 = vmatpush.bf16.msra.mxu0 %v2559
    %2572 = vmatmul.bf16.gmra.mxu0 %v2562
    %v2573 = vpop.f32.mrf.mxu0
    %v2574 = vadd.f32 0.0, %v2573
    %v2575 = vpop.f32.mrf.mxu0
    %v2576 = vadd.f32 0.0, %v2575
    %2577 = vdwg.mxu0
    %v2580 = vunpack.c.l.b16 %v2524
    %v2581 = vunpack.c.l.b16 %v2525
    %v2582 = vpack.c.b16 %v2581, %v2580
    %2583 = vrot.lane.b32.xlu0 %v2273, 96
    %v2584 = vpop.permute.xlu0 %2583
    %v2587 = vsel %vm518, %v2582, 0
    %2589 = vmatpush.bf16.msra.mxu0 0
    %2590 = vmatpush.bf16.msra.mxu0 0
    %2591 = vmatpush.bf16.msra.mxu0 0
    %2592 = vmatpush.bf16.msra.mxu0 0
    %2593 = vmatpush.bf16.msra.mxu0 0
    %2594 = vmatpush.bf16.msra.mxu0 0
    %2595 = vmatpush.bf16.msra.mxu0 0
    %2596 = vmatpush.bf16.msra.mxu0 %v2584
    %2597 = vmatmul.bf16.gmra.mxu0 %v2587
    %v2598 = vpop.f32.mrf.mxu0
    %v2599 = vadd.f32 0.0, %v2598
    %v2600 = vpop.f32.mrf.mxu0
    %v2601 = vadd.f32 0.0, %v2600
    %2602 = vdwg.mxu0
    %v2605 = vunpack.c.l.b16 %v2526
    %v2606 = vunpack.c.l.b16 %v2527
    %v2607 = vpack.c.b16 %v2606, %v2605
    %2608 = vrot.lane.b32.xlu0 %v2301, 96
    %v2609 = vpop.permute.xlu0 %2608
    %v2612 = vsel %vm518, %v2607, 0
    %2614 = vmatpush.bf16.msra.mxu0 0
    %2615 = vmatpush.bf16.msra.mxu0 0
    %2616 = vmatpush.bf16.msra.mxu0 0
    %2617 = vmatpush.bf16.msra.mxu0 0
    %2618 = vmatpush.bf16.msra.mxu0 0
    %2619 = vmatpush.bf16.msra.mxu0 0
    %2620 = vmatpush.bf16.msra.mxu0 0
    %2621 = vmatpush.bf16.msra.mxu0 %v2609
    %2622 = vmatmul.bf16.gmra.mxu0 %v2612
    %v2623 = vpop.f32.mrf.mxu0
    %v2624 = vadd.f32 0.0, %v2623
    %v2625 = vpop.f32.mrf.mxu0
    %v2626 = vadd.f32 0.0, %v2625
    %2627 = vdwg.mxu0
    %v2628 = vpack.c.bf16 %v2549, %v2549
    %v2629 = vpack.c.bf16 %v2551, %v2551
    %v2630 = vpack.c.bf16 %v2574, %v2574
    %v2631 = vpack.c.bf16 %v2576, %v2576
    %v2632 = vpack.c.bf16 %v2599, %v2599
    %v2633 = vpack.c.bf16 %v2601, %v2601
    %v2634 = vpack.c.bf16 %v2624, %v2624
    %v2635 = vpack.c.bf16 %v2626, %v2626
    %2636 = vrot.lane.b32.xlu0 %v2002, 64
    %v2637 = vpop.permute.xlu0 %2636
    %2638 = vrot.lane.b32.xlu0 %v2005, 64
    %v2639 = vpop.permute.xlu0 %2638
    %v2641 = vsel %vm411, %v2637, 0
    %v2644 = vsel %vm411, %v2639, 0
    %2646 = vmatpush.bf16.xpose.msra.mxu0 0
    %2647 = vmatpush.bf16.xpose.msra.mxu0 0
    %2648 = vmatpush.bf16.xpose.msra.mxu0 0
    %2649 = vmatpush.bf16.xpose.msra.mxu0 0
    %2650 = vmatpush.bf16.xpose.msra.mxu0 0
    %2651 = vmatpush.bf16.xpose.msra.mxu0 0
    %2652 = vmatpush.bf16.xpose.msra.mxu0 0
    %2653 = vmatpush.bf16.xpose.msra.mxu0 %v2644
    %2654 = vmatmul.bf16.gmra.mxu0 %v2641
    %v2655 = vpop.f32.mrf.mxu0
    %v2656 = vadd.f32 0.0, %v2655
    %v2657 = vpop.f32.mrf.mxu0
    %v2658 = vadd.f32 0.0, %v2657
    %2659 = vdwg.mxu0
    %2660 = vrot.lane.b32.xlu0 %v2028, 64
    %v2661 = vpop.permute.xlu0 %2660
    %2662 = vrot.lane.b32.xlu0 %v2031, 64
    %v2663 = vpop.permute.xlu0 %2662
    %v2665 = vsel %vm411, %v2661, 0
    %v2668 = vsel %vm411, %v2663, 0
    %2670 = vmatpush.bf16.xpose.msra.mxu0 0
    %2671 = vmatpush.bf16.xpose.msra.mxu0 0
    %2672 = vmatpush.bf16.xpose.msra.mxu0 0
    %2673 = vmatpush.bf16.xpose.msra.mxu0 0
    %2674 = vmatpush.bf16.xpose.msra.mxu0 0
    %2675 = vmatpush.bf16.xpose.msra.mxu0 0
    %2676 = vmatpush.bf16.xpose.msra.mxu0 0
    %2677 = vmatpush.bf16.xpose.msra.mxu0 %v2668
    %2678 = vmatmul.bf16.gmra.mxu0 %v2665
    %v2679 = vpop.f32.mrf.mxu0
    %v2680 = vadd.f32 0.0, %v2679
    %v2681 = vpop.f32.mrf.mxu0
    %v2682 = vadd.f32 0.0, %v2681
    %2683 = vdwg.mxu0
    %2684 = vrot.lane.b32.xlu0 %v2054, 64
    %v2685 = vpop.permute.xlu0 %2684
    %2686 = vrot.lane.b32.xlu0 %v2057, 64
    %v2687 = vpop.permute.xlu0 %2686
    %v2689 = vsel %vm411, %v2685, 0
    %v2692 = vsel %vm411, %v2687, 0
    %2694 = vmatpush.bf16.xpose.msra.mxu0 0
    %2695 = vmatpush.bf16.xpose.msra.mxu0 0
    %2696 = vmatpush.bf16.xpose.msra.mxu0 0
    %2697 = vmatpush.bf16.xpose.msra.mxu0 0
    %2698 = vmatpush.bf16.xpose.msra.mxu0 0
    %2699 = vmatpush.bf16.xpose.msra.mxu0 0
    %2700 = vmatpush.bf16.xpose.msra.mxu0 0
    %2701 = vmatpush.bf16.xpose.msra.mxu0 %v2692
    %2702 = vmatmul.bf16.gmra.mxu0 %v2689
    %v2703 = vpop.f32.mrf.mxu0
    %v2704 = vadd.f32 0.0, %v2703
    %v2705 = vpop.f32.mrf.mxu0
    %v2706 = vadd.f32 0.0, %v2705
    %2707 = vdwg.mxu0
    %2708 = vrot.lane.b32.xlu0 %v2080, 64
    %v2709 = vpop.permute.xlu0 %2708
    %2710 = vrot.lane.b32.xlu0 %v2083, 64
    %v2711 = vpop.permute.xlu0 %2710
    %v2713 = vsel %vm411, %v2709, 0
    %v2716 = vsel %vm411, %v2711, 0
    %2718 = vmatpush.bf16.xpose.msra.mxu0 0
    %2719 = vmatpush.bf16.xpose.msra.mxu0 0
    %2720 = vmatpush.bf16.xpose.msra.mxu0 0
    %2721 = vmatpush.bf16.xpose.msra.mxu0 0
    %2722 = vmatpush.bf16.xpose.msra.mxu0 0
    %2723 = vmatpush.bf16.xpose.msra.mxu0 0
    %2724 = vmatpush.bf16.xpose.msra.mxu0 0
    %2725 = vmatpush.bf16.xpose.msra.mxu0 %v2716
    %2726 = vmatmul.bf16.gmra.mxu0 %v2713
    %v2727 = vpop.f32.mrf.mxu0
    %v2728 = vadd.f32 0.0, %v2727
    %v2729 = vpop.f32.mrf.mxu0
    %v2730 = vadd.f32 0.0, %v2729
    %2731 = vdwg.mxu0
    %v2732 = vmul.f32 %v2656, 0.17677669
    %v2733 = vmul.f32 %v2658, 0.17677669
    %v2734 = vmul.f32 %v2680, 0.17677669
    %v2735 = vmul.f32 %v2682, 0.17677669
    %v2736 = vmul.f32 %v2704, 0.17677669
    %v2737 = vmul.f32 %v2706, 0.17677669
    %v2738 = vmul.f32 %v2728, 0.17677669
    %v2739 = vmul.f32 %v2730, 0.17677669
    %v2740 = vsel %vm518, %v2732, -inf
    %2741 = vmax.xlane.f32.xlu0 %v2740
    %v2742 = vpop.xlane.xlu0 %2741
    %v2743 = vsel %vm518, %v2733, -inf
    %2744 = vmax.xlane.f32.xlu0 %v2743
    %v2745 = vpop.xlane.xlu0 %2744
    %v2746 = vsel %vm518, %v2734, -inf
    %2747 = vmax.xlane.f32.xlu0 %v2746
    %v2748 = vpop.xlane.xlu0 %2747
    %v2749 = vsel %vm518, %v2735, -inf
    %2750 = vmax.xlane.f32.xlu0 %v2749
    %v2751 = vpop.xlane.xlu0 %2750
    %v2752 = vsel %vm518, %v2736, -inf
    %2753 = vmax.xlane.f32.xlu0 %v2752
    %v2754 = vpop.xlane.xlu0 %2753
    %v2755 = vsel %vm518, %v2737, -inf
    %2756 = vmax.xlane.f32.xlu0 %v2755
    %v2757 = vpop.xlane.xlu0 %2756
    %v2758 = vsel %vm518, %v2738, -inf
    %2759 = vmax.xlane.f32.xlu0 %v2758
    %v2760 = vpop.xlane.xlu0 %2759
    %v2761 = vsel %vm518, %v2739, -inf
    %2762 = vmax.xlane.f32.xlu0 %v2761
    %v2763 = vpop.xlane.xlu0 %2762
    %v2764 = vsub.f32 %v2732, %v2742
    %v2765 = vsub.f32 %v2733, %v2745
    %v2766 = vsub.f32 %v2734, %v2748
    %v2767 = vsub.f32 %v2735, %v2751
    %v2768 = vsub.f32 %v2736, %v2754
    %v2769 = vsub.f32 %v2737, %v2757
    %v2770 = vsub.f32 %v2738, %v2760
    %v2771 = vsub.f32 %v2739, %v2763
    %v2772 = vmul.f32 %v2764, 1.442695
    %v2773 = vpow.pop %v2772
    %v2774 = vmul.f32 %v2765, 1.442695
    %v2775 = vpow.pop %v2774
    %v2776 = vmul.f32 %v2766, 1.442695
    %v2777 = vpow.pop %v2776
    %v2778 = vmul.f32 %v2767, 1.442695
    %v2779 = vpow.pop %v2778
    %v2780 = vmul.f32 %v2768, 1.442695
    %v2781 = vpow.pop %v2780
    %v2782 = vmul.f32 %v2769, 1.442695
    %v2783 = vpow.pop %v2782
    %v2784 = vmul.f32 %v2770, 1.442695
    %v2785 = vpow.pop %v2784
    %v2786 = vmul.f32 %v2771, 1.442695
    %v2787 = vpow.pop %v2786
    %v2788 = vsel %vm518, %v2773, 0.0
    %2789 = vadd.xlane.f32.xlu0 %v2788
    %v2790 = vpop.xlane.xlu0 %2789
    %v2791 = vsel %vm518, %v2775, 0.0
    %2792 = vadd.xlane.f32.xlu0 %v2791
    %v2793 = vpop.xlane.xlu0 %2792
    %v2794 = vsel %vm518, %v2777, 0.0
    %2795 = vadd.xlane.f32.xlu0 %v2794
    %v2796 = vpop.xlane.xlu0 %2795
    %v2797 = vsel %vm518, %v2779, 0.0
    %2798 = vadd.xlane.f32.xlu0 %v2797
    %v2799 = vpop.xlane.xlu0 %2798
    %v2800 = vsel %vm518, %v2781, 0.0
    %2801 = vadd.xlane.f32.xlu0 %v2800
    %v2802 = vpop.xlane.xlu0 %2801
    %v2803 = vsel %vm518, %v2783, 0.0
    %2804 = vadd.xlane.f32.xlu0 %v2803
    %v2805 = vpop.xlane.xlu0 %2804
    %v2806 = vsel %vm518, %v2785, 0.0
    %2807 = vadd.xlane.f32.xlu0 %v2806
    %v2808 = vpop.xlane.xlu0 %2807
    %v2809 = vsel %vm518, %v2787, 0.0
    %2810 = vadd.xlane.f32.xlu0 %v2809
    %v2811 = vpop.xlane.xlu0 %2810
    %v2812 = vrcp.pop %v2790
    %v2813 = vrcp.pop %v2793
    %v2814 = vrcp.pop %v2796
    %v2815 = vrcp.pop %v2799
    %v2816 = vrcp.pop %v2802
    %v2817 = vrcp.pop %v2805
    %v2818 = vrcp.pop %v2808
    %v2819 = vrcp.pop %v2811
    %v2820 = vmul.f32 %v2773, %v2812
    %v2821 = vmul.f32 %v2775, %v2813
    %v2822 = vmul.f32 %v2777, %v2814
    %v2823 = vmul.f32 %v2779, %v2815
    %v2824 = vmul.f32 %v2781, %v2816
    %v2825 = vmul.f32 %v2783, %v2817
    %v2826 = vmul.f32 %v2785, %v2818
    %v2827 = vmul.f32 %v2787, %v2819
    %v2828 = vpack.c.bf16 %v2820, %v2820
    %v2829 = vpack.c.bf16 %v2821, %v2821
    %v2830 = vpack.c.bf16 %v2822, %v2822
    %v2831 = vpack.c.bf16 %v2823, %v2823
    %v2832 = vpack.c.bf16 %v2824, %v2824
    %v2833 = vpack.c.bf16 %v2825, %v2825
    %v2834 = vpack.c.bf16 %v2826, %v2826
    %v2835 = vpack.c.bf16 %v2827, %v2827
    %v2838 = vunpack.c.l.b16 %v2828
    %v2839 = vunpack.c.l.b16 %v2829
    %v2840 = vpack.c.b16 %v2839, %v2838
    %2841 = vrot.lane.b32.xlu0 %v2217, 64
    %v2842 = vpop.permute.xlu0 %2841
    %v2845 = vsel %vm518, %v2840, 0
    %2847 = vmatpush.bf16.msra.mxu0 0
    %2848 = vmatpush.bf16.msra.mxu0 0
    %2849 = vmatpush.bf16.msra.mxu0 0
    %2850 = vmatpush.bf16.msra.mxu0 0
    %2851 = vmatpush.bf16.msra.mxu0 0
    %2852 = vmatpush.bf16.msra.mxu0 0
    %2853 = vmatpush.bf16.msra.mxu0 0
    %2854 = vmatpush.bf16.msra.mxu0 %v2842
    %2855 = vmatmul.bf16.gmra.mxu0 %v2845
    %v2856 = vpop.f32.mrf.mxu0
    %v2857 = vadd.f32 0.0, %v2856
    %v2858 = vpop.f32.mrf.mxu0
    %v2859 = vadd.f32 0.0, %v2858
    %2860 = vdwg.mxu0
    %v2863 = vunpack.c.l.b16 %v2830
    %v2864 = vunpack.c.l.b16 %v2831
    %v2865 = vpack.c.b16 %v2864, %v2863
    %2866 = vrot.lane.b32.xlu0 %v2245, 64
    %v2867 = vpop.permute.xlu0 %2866
    %v2870 = vsel %vm518, %v2865, 0
    %2872 = vmatpush.bf16.msra.mxu0 0
    %2873 = vmatpush.bf16.msra.mxu0 0
    %2874 = vmatpush.bf16.msra.mxu0 0
    %2875 = vmatpush.bf16.msra.mxu0 0
    %2876 = vmatpush.bf16.msra.mxu0 0
    %2877 = vmatpush.bf16.msra.mxu0 0
    %2878 = vmatpush.bf16.msra.mxu0 0
    %2879 = vmatpush.bf16.msra.mxu0 %v2867
    %2880 = vmatmul.bf16.gmra.mxu0 %v2870
    %v2881 = vpop.f32.mrf.mxu0
    %v2882 = vadd.f32 0.0, %v2881
    %v2883 = vpop.f32.mrf.mxu0
    %v2884 = vadd.f32 0.0, %v2883
    %2885 = vdwg.mxu0
    %v2888 = vunpack.c.l.b16 %v2832
    %v2889 = vunpack.c.l.b16 %v2833
    %v2890 = vpack.c.b16 %v2889, %v2888
    %2891 = vrot.lane.b32.xlu0 %v2273, 64
    %v2892 = vpop.permute.xlu0 %2891
    %v2895 = vsel %vm518, %v2890, 0
    %2897 = vmatpush.bf16.msra.mxu0 0
    %2898 = vmatpush.bf16.msra.mxu0 0
    %2899 = vmatpush.bf16.msra.mxu0 0
    %2900 = vmatpush.bf16.msra.mxu0 0
    %2901 = vmatpush.bf16.msra.mxu0 0
    %2902 = vmatpush.bf16.msra.mxu0 0
    %2903 = vmatpush.bf16.msra.mxu0 0
    %2904 = vmatpush.bf16.msra.mxu0 %v2892
    %2905 = vmatmul.bf16.gmra.mxu0 %v2895
    %v2906 = vpop.f32.mrf.mxu0
    %v2907 = vadd.f32 0.0, %v2906
    %v2908 = vpop.f32.mrf.mxu0
    %v2909 = vadd.f32 0.0, %v2908
    %2910 = vdwg.mxu0
    %v2913 = vunpack.c.l.b16 %v2834
    %v2914 = vunpack.c.l.b16 %v2835
    %v2915 = vpack.c.b16 %v2914, %v2913
    %2916 = vrot.lane.b32.xlu0 %v2301, 64
    %v2917 = vpop.permute.xlu0 %2916
    %v2920 = vsel %vm518, %v2915, 0
    %2922 = vmatpush.bf16.msra.mxu0 0
    %2923 = vmatpush.bf16.msra.mxu0 0
    %2924 = vmatpush.bf16.msra.mxu0 0
    %2925 = vmatpush.bf16.msra.mxu0 0
    %2926 = vmatpush.bf16.msra.mxu0 0
    %2927 = vmatpush.bf16.msra.mxu0 0
    %2928 = vmatpush.bf16.msra.mxu0 0
    %2929 = vmatpush.bf16.msra.mxu0 %v2917
    %2930 = vmatmul.bf16.gmra.mxu0 %v2920
    %v2931 = vpop.f32.mrf.mxu0
    %v2932 = vadd.f32 0.0, %v2931
    %v2933 = vpop.f32.mrf.mxu0
    %v2934 = vadd.f32 0.0, %v2933
    %2935 = vdwg.mxu0
    %v2936 = vpack.c.bf16 %v2857, %v2857
    %v2937 = vpack.c.bf16 %v2859, %v2859
    %v2938 = vpack.c.bf16 %v2882, %v2882
    %v2939 = vpack.c.bf16 %v2884, %v2884
    %v2940 = vpack.c.bf16 %v2907, %v2907
    %v2941 = vpack.c.bf16 %v2909, %v2909
    %v2942 = vpack.c.bf16 %v2932, %v2932
    %v2943 = vpack.c.bf16 %v2934, %v2934
    %2944 = vrot.lane.b32.xlu0 %v2002, 32
    %v2945 = vpop.permute.xlu0 %2944
    %2946 = vrot.lane.b32.xlu0 %v2005, 32
    %v2947 = vpop.permute.xlu0 %2946
    %v2949 = vsel %vm411, %v2945, 0
    %v2952 = vsel %vm411, %v2947, 0
    %2954 = vmatpush.bf16.xpose.msra.mxu0 0
    %2955 = vmatpush.bf16.xpose.msra.mxu0 0
    %2956 = vmatpush.bf16.xpose.msra.mxu0 0
    %2957 = vmatpush.bf16.xpose.msra.mxu0 0
    %2958 = vmatpush.bf16.xpose.msra.mxu0 0
    %2959 = vmatpush.bf16.xpose.msra.mxu0 0
    %2960 = vmatpush.bf16.xpose.msra.mxu0 0
    %2961 = vmatpush.bf16.xpose.msra.mxu0 %v2952
    %2962 = vmatmul.bf16.gmra.mxu0 %v2949
    %v2963 = vpop.f32.mrf.mxu0
    %v2964 = vadd.f32 0.0, %v2963
    %v2965 = vpop.f32.mrf.mxu0
    %v2966 = vadd.f32 0.0, %v2965
    %2967 = vdwg.mxu0
    %2968 = vrot.lane.b32.xlu0 %v2028, 32
    %v2969 = vpop.permute.xlu0 %2968
    %2970 = vrot.lane.b32.xlu0 %v2031, 32
    %v2971 = vpop.permute.xlu0 %2970
    %v2973 = vsel %vm411, %v2969, 0
    %v2976 = vsel %vm411, %v2971, 0
    %2978 = vmatpush.bf16.xpose.msra.mxu0 0
    %2979 = vmatpush.bf16.xpose.msra.mxu0 0
    %2980 = vmatpush.bf16.xpose.msra.mxu0 0
    %2981 = vmatpush.bf16.xpose.msra.mxu0 0
    %2982 = vmatpush.bf16.xpose.msra.mxu0 0
    %2983 = vmatpush.bf16.xpose.msra.mxu0 0
    %2984 = vmatpush.bf16.xpose.msra.mxu0 0
    %2985 = vmatpush.bf16.xpose.msra.mxu0 %v2976
    %2986 = vmatmul.bf16.gmra.mxu0 %v2973
    %v2987 = vpop.f32.mrf.mxu0
    %v2988 = vadd.f32 0.0, %v2987
    %v2989 = vpop.f32.mrf.mxu0
    %v2990 = vadd.f32 0.0, %v2989
    %2991 = vdwg.mxu0
    %2992 = vrot.lane.b32.xlu0 %v2054, 32
    %v2993 = vpop.permute.xlu0 %2992
    %2994 = vrot.lane.b32.xlu0 %v2057, 32
    %v2995 = vpop.permute.xlu0 %2994
    %v2997 = vsel %vm411, %v2993, 0
    %v3000 = vsel %vm411, %v2995, 0
    %3002 = vmatpush.bf16.xpose.msra.mxu0 0
    %3003 = vmatpush.bf16.xpose.msra.mxu0 0
    %3004 = vmatpush.bf16.xpose.msra.mxu0 0
    %3005 = vmatpush.bf16.xpose.msra.mxu0 0
    %3006 = vmatpush.bf16.xpose.msra.mxu0 0
    %3007 = vmatpush.bf16.xpose.msra.mxu0 0
    %3008 = vmatpush.bf16.xpose.msra.mxu0 0
    %3009 = vmatpush.bf16.xpose.msra.mxu0 %v3000
    %3010 = vmatmul.bf16.gmra.mxu0 %v2997
    %v3011 = vpop.f32.mrf.mxu0
    %v3012 = vadd.f32 0.0, %v3011
    %v3013 = vpop.f32.mrf.mxu0
    %v3014 = vadd.f32 0.0, %v3013
    %3015 = vdwg.mxu0
    %3016 = vrot.lane.b32.xlu0 %v2080, 32
    %v3017 = vpop.permute.xlu0 %3016
    %3018 = vrot.lane.b32.xlu0 %v2083, 32
    %v3019 = vpop.permute.xlu0 %3018
    %v3021 = vsel %vm411, %v3017, 0
    %v3024 = vsel %vm411, %v3019, 0
    %3026 = vmatpush.bf16.xpose.msra.mxu0 0
    %3027 = vmatpush.bf16.xpose.msra.mxu0 0
    %3028 = vmatpush.bf16.xpose.msra.mxu0 0
    %3029 = vmatpush.bf16.xpose.msra.mxu0 0
    %3030 = vmatpush.bf16.xpose.msra.mxu0 0
    %3031 = vmatpush.bf16.xpose.msra.mxu0 0
    %3032 = vmatpush.bf16.xpose.msra.mxu0 0
    %3033 = vmatpush.bf16.xpose.msra.mxu0 %v3024
    %3034 = vmatmul.bf16.gmra.mxu0 %v3021
    %v3035 = vpop.f32.mrf.mxu0
    %v3036 = vadd.f32 0.0, %v3035
    %v3037 = vpop.f32.mrf.mxu0
    %v3038 = vadd.f32 0.0, %v3037
    %3039 = vdwg.mxu0
    %v3040 = vmul.f32 %v2964, 0.17677669
    %v3041 = vmul.f32 %v2966, 0.17677669
    %v3042 = vmul.f32 %v2988, 0.17677669
    %v3043 = vmul.f32 %v2990, 0.17677669
    %v3044 = vmul.f32 %v3012, 0.17677669
    %v3045 = vmul.f32 %v3014, 0.17677669
    %v3046 = vmul.f32 %v3036, 0.17677669
    %v3047 = vmul.f32 %v3038, 0.17677669
    %v3048 = vsel %vm518, %v3040, -inf
    %3049 = vmax.xlane.f32.xlu0 %v3048
    %v3050 = vpop.xlane.xlu0 %3049
    %v3051 = vsel %vm518, %v3041, -inf
    %3052 = vmax.xlane.f32.xlu0 %v3051
    %v3053 = vpop.xlane.xlu0 %3052
    %v3054 = vsel %vm518, %v3042, -inf
    %3055 = vmax.xlane.f32.xlu0 %v3054
    %v3056 = vpop.xlane.xlu0 %3055
    %v3057 = vsel %vm518, %v3043, -inf
    %3058 = vmax.xlane.f32.xlu0 %v3057
    %v3059 = vpop.xlane.xlu0 %3058
    %v3060 = vsel %vm518, %v3044, -inf
    %3061 = vmax.xlane.f32.xlu0 %v3060
    %v3062 = vpop.xlane.xlu0 %3061
    %v3063 = vsel %vm518, %v3045, -inf
    %3064 = vmax.xlane.f32.xlu0 %v3063
    %v3065 = vpop.xlane.xlu0 %3064
    %v3066 = vsel %vm518, %v3046, -inf
    %3067 = vmax.xlane.f32.xlu0 %v3066
    %v3068 = vpop.xlane.xlu0 %3067
    %v3069 = vsel %vm518, %v3047, -inf
    %3070 = vmax.xlane.f32.xlu0 %v3069
    %v3071 = vpop.xlane.xlu0 %3070
    %v3072 = vsub.f32 %v3040, %v3050
    %v3073 = vsub.f32 %v3041, %v3053
    %v3074 = vsub.f32 %v3042, %v3056
    %v3075 = vsub.f32 %v3043, %v3059
    %v3076 = vsub.f32 %v3044, %v3062
    %v3077 = vsub.f32 %v3045, %v3065
    %v3078 = vsub.f32 %v3046, %v3068
    %v3079 = vsub.f32 %v3047, %v3071
    %v3080 = vmul.f32 %v3072, 1.442695
    %v3081 = vpow.pop %v3080
    %v3082 = vmul.f32 %v3073, 1.442695
    %v3083 = vpow.pop %v3082
    %v3084 = vmul.f32 %v3074, 1.442695
    %v3085 = vpow.pop %v3084
    %v3086 = vmul.f32 %v3075, 1.442695
    %v3087 = vpow.pop %v3086
    %v3088 = vmul.f32 %v3076, 1.442695
    %v3089 = vpow.pop %v3088
    %v3090 = vmul.f32 %v3077, 1.442695
    %v3091 = vpow.pop %v3090
    %v3092 = vmul.f32 %v3078, 1.442695
    %v3093 = vpow.pop %v3092
    %v3094 = vmul.f32 %v3079, 1.442695
    %v3095 = vpow.pop %v3094
    %v3096 = vsel %vm518, %v3081, 0.0
    %3097 = vadd.xlane.f32.xlu0 %v3096
    %v3098 = vpop.xlane.xlu0 %3097
    %v3099 = vsel %vm518, %v3083, 0.0
    %3100 = vadd.xlane.f32.xlu0 %v3099
    %v3101 = vpop.xlane.xlu0 %3100
    %v3102 = vsel %vm518, %v3085, 0.0
    %3103 = vadd.xlane.f32.xlu0 %v3102
    %v3104 = vpop.xlane.xlu0 %3103
    %v3105 = vsel %vm518, %v3087, 0.0
    %3106 = vadd.xlane.f32.xlu0 %v3105
    %v3107 = vpop.xlane.xlu0 %3106
    %v3108 = vsel %vm518, %v3089, 0.0
    %3109 = vadd.xlane.f32.xlu0 %v3108
    %v3110 = vpop.xlane.xlu0 %3109
    %v3111 = vsel %vm518, %v3091, 0.0
    %3112 = vadd.xlane.f32.xlu0 %v3111
    %v3113 = vpop.xlane.xlu0 %3112
    %v3114 = vsel %vm518, %v3093, 0.0
    %3115 = vadd.xlane.f32.xlu0 %v3114
    %v3116 = vpop.xlane.xlu0 %3115
    %v3117 = vsel %vm518, %v3095, 0.0
    %3118 = vadd.xlane.f32.xlu0 %v3117
    %v3119 = vpop.xlane.xlu0 %3118
    %v3120 = vrcp.pop %v3098
    %v3121 = vrcp.pop %v3101
    %v3122 = vrcp.pop %v3104
    %v3123 = vrcp.pop %v3107
    %v3124 = vrcp.pop %v3110
    %v3125 = vrcp.pop %v3113
    %v3126 = vrcp.pop %v3116
    %v3127 = vrcp.pop %v3119
    %v3128 = vmul.f32 %v3081, %v3120
    %v3129 = vmul.f32 %v3083, %v3121
    %v3130 = vmul.f32 %v3085, %v3122
    %v3131 = vmul.f32 %v3087, %v3123
    %v3132 = vmul.f32 %v3089, %v3124
    %v3133 = vmul.f32 %v3091, %v3125
    %v3134 = vmul.f32 %v3093, %v3126
    %v3135 = vmul.f32 %v3095, %v3127
    %v3136 = vpack.c.bf16 %v3128, %v3128
    %v3137 = vpack.c.bf16 %v3129, %v3129
    %v3138 = vpack.c.bf16 %v3130, %v3130
    %v3139 = vpack.c.bf16 %v3131, %v3131
    %v3140 = vpack.c.bf16 %v3132, %v3132
    %v3141 = vpack.c.bf16 %v3133, %v3133
    %v3142 = vpack.c.bf16 %v3134, %v3134
    %v3143 = vpack.c.bf16 %v3135, %v3135
    %v3146 = vunpack.c.l.b16 %v3136
    %v3147 = vunpack.c.l.b16 %v3137
    %v3148 = vpack.c.b16 %v3147, %v3146
    %3149 = vrot.lane.b32.xlu0 %v2217, 32
    %v3150 = vpop.permute.xlu0 %3149
    %v3153 = vsel %vm518, %v3148, 0
    %3155 = vmatpush.bf16.msra.mxu0 0
    %3156 = vmatpush.bf16.msra.mxu0 0
    %3157 = vmatpush.bf16.msra.mxu0 0
    %3158 = vmatpush.bf16.msra.mxu0 0
    %3159 = vmatpush.bf16.msra.mxu0 0
    %3160 = vmatpush.bf16.msra.mxu0 0
    %3161 = vmatpush.bf16.msra.mxu0 0
    %3162 = vmatpush.bf16.msra.mxu0 %v3150
    %3163 = vmatmul.bf16.gmra.mxu0 %v3153
    %v3164 = vpop.f32.mrf.mxu0
    %v3165 = vadd.f32 0.0, %v3164
    %v3166 = vpop.f32.mrf.mxu0
    %v3167 = vadd.f32 0.0, %v3166
    %3168 = vdwg.mxu0
    %v3171 = vunpack.c.l.b16 %v3138
    %v3172 = vunpack.c.l.b16 %v3139
    %v3173 = vpack.c.b16 %v3172, %v3171
    %3174 = vrot.lane.b32.xlu0 %v2245, 32
    %v3175 = vpop.permute.xlu0 %3174
    %v3178 = vsel %vm518, %v3173, 0
    %3180 = vmatpush.bf16.msra.mxu0 0
    %3181 = vmatpush.bf16.msra.mxu0 0
    %3182 = vmatpush.bf16.msra.mxu0 0
    %3183 = vmatpush.bf16.msra.mxu0 0
    %3184 = vmatpush.bf16.msra.mxu0 0
    %3185 = vmatpush.bf16.msra.mxu0 0
    %3186 = vmatpush.bf16.msra.mxu0 0
    %3187 = vmatpush.bf16.msra.mxu0 %v3175
    %3188 = vmatmul.bf16.gmra.mxu0 %v3178
    %v3189 = vpop.f32.mrf.mxu0
    %v3190 = vadd.f32 0.0, %v3189
    %v3191 = vpop.f32.mrf.mxu0
    %v3192 = vadd.f32 0.0, %v3191
    %3193 = vdwg.mxu0
    %v3196 = vunpack.c.l.b16 %v3140
    %v3197 = vunpack.c.l.b16 %v3141
    %v3198 = vpack.c.b16 %v3197, %v3196
    %3199 = vrot.lane.b32.xlu0 %v2273, 32
    %v3200 = vpop.permute.xlu0 %3199
    %v3203 = vsel %vm518, %v3198, 0
    %3205 = vmatpush.bf16.msra.mxu0 0
    %3206 = vmatpush.bf16.msra.mxu0 0
    %3207 = vmatpush.bf16.msra.mxu0 0
    %3208 = vmatpush.bf16.msra.mxu0 0
    %3209 = vmatpush.bf16.msra.mxu0 0
    %3210 = vmatpush.bf16.msra.mxu0 0
    %3211 = vmatpush.bf16.msra.mxu0 0
    %3212 = vmatpush.bf16.msra.mxu0 %v3200
    %3213 = vmatmul.bf16.gmra.mxu0 %v3203
    %v3214 = vpop.f32.mrf.mxu0
    %v3215 = vadd.f32 0.0, %v3214
    %v3216 = vpop.f32.mrf.mxu0
    %v3217 = vadd.f32 0.0, %v3216
    %3218 = vdwg.mxu0
    %v3221 = vunpack.c.l.b16 %v3142
    %v3222 = vunpack.c.l.b16 %v3143
    %v3223 = vpack.c.b16 %v3222, %v3221
    %3224 = vrot.lane.b32.xlu0 %v2301, 32
    %v3225 = vpop.permute.xlu0 %3224
    %v3228 = vsel %vm518, %v3223, 0
    %3230 = vmatpush.bf16.msra.mxu0 0
    %3231 = vmatpush.bf16.msra.mxu0 0
    %3232 = vmatpush.bf16.msra.mxu0 0
    %3233 = vmatpush.bf16.msra.mxu0 0
    %3234 = vmatpush.bf16.msra.mxu0 0
    %3235 = vmatpush.bf16.msra.mxu0 0
    %3236 = vmatpush.bf16.msra.mxu0 0
    %3237 = vmatpush.bf16.msra.mxu0 %v3225
    %3238 = vmatmul.bf16.gmra.mxu0 %v3228
    %v3239 = vpop.f32.mrf.mxu0
    %v3240 = vadd.f32 0.0, %v3239
    %v3241 = vpop.f32.mrf.mxu0
    %v3242 = vadd.f32 0.0, %v3241
    %3243 = vdwg.mxu0
    %v3244 = vpack.c.bf16 %v3165, %v3165
    %v3245 = vpack.c.bf16 %v3167, %v3167
    %v3246 = vpack.c.bf16 %v3190, %v3190
    %v3247 = vpack.c.bf16 %v3192, %v3192
    %v3248 = vpack.c.bf16 %v3215, %v3215
    %v3249 = vpack.c.bf16 %v3217, %v3217
    %v3250 = vpack.c.bf16 %v3240, %v3240
    %v3251 = vpack.c.bf16 %v3242, %v3242
    %v3260 = vunpack.c.l.b16 %v2320
    %v3261 = vunpack.c.l.b16 %v2321
    %v3262 = vunpack.c.l.b16 %v2322
    %v3263 = vunpack.c.l.b16 %v2323
    %v3264 = vunpack.c.l.b16 %v2324
    %v3265 = vunpack.c.l.b16 %v2325
    %v3266 = vunpack.c.l.b16 %v2326
    %v3267 = vunpack.c.l.b16 %v2327
    %v3268 = vpack.c.b16 %v3261, %v3260
    %v3269 = vpack.c.b16 %v3263, %v3262
    %v3270 = vpack.c.b16 %v3265, %v3264
    %v3271 = vpack.c.b16 %v3267, %v3266
    %v3280 = vunpack.c.l.b16 %v2628
    %v3281 = vunpack.c.l.b16 %v2629
    %v3282 = vunpack.c.l.b16 %v2630
    %v3283 = vunpack.c.l.b16 %v2631
    %v3284 = vunpack.c.l.b16 %v2632
    %v3285 = vunpack.c.l.b16 %v2633
    %v3286 = vunpack.c.l.b16 %v2634
    %v3287 = vunpack.c.l.b16 %v2635
    %v3288 = vpack.c.b16 %v3281, %v3280
    %v3289 = vpack.c.b16 %v3283, %v3282
    %v3290 = vpack.c.b16 %v3285, %v3284
    %v3291 = vpack.c.b16 %v3287, %v3286
    %3292 = vrot.lane.b32.xlu0 %v3288, 32
    %v3293 = vpop.permute.xlu0 %3292
    %3294 = vrot.lane.b32.xlu0 %v3289, 32
    %v3295 = vpop.permute.xlu0 %3294
    %3296 = vrot.lane.b32.xlu0 %v3290, 32
    %v3297 = vpop.permute.xlu0 %3296
    %3298 = vrot.lane.b32.xlu0 %v3291, 32
    %v3299 = vpop.permute.xlu0 %3298
    %v3308 = vunpack.c.l.b16 %v2936
    %v3309 = vunpack.c.l.b16 %v2937
    %v3310 = vunpack.c.l.b16 %v2938
    %v3311 = vunpack.c.l.b16 %v2939
    %v3312 = vunpack.c.l.b16 %v2940
    %v3313 = vunpack.c.l.b16 %v2941
    %v3314 = vunpack.c.l.b16 %v2942
    %v3315 = vunpack.c.l.b16 %v2943
    %v3316 = vpack.c.b16 %v3309, %v3308
    %v3317 = vpack.c.b16 %v3311, %v3310
    %v3318 = vpack.c.b16 %v3313, %v3312
    %v3319 = vpack.c.b16 %v3315, %v3314
    %3320 = vrot.lane.b32.xlu0 %v3316, 64
    %v3321 = vpop.permute.xlu0 %3320
    %3322 = vrot.lane.b32.xlu0 %v3317, 64
    %v3323 = vpop.permute.xlu0 %3322
    %3324 = vrot.lane.b32.xlu0 %v3318, 64
    %v3325 = vpop.permute.xlu0 %3324
    %3326 = vrot.lane.b32.xlu0 %v3319, 64
    %v3327 = vpop.permute.xlu0 %3326
    %v3336 = vunpack.c.l.b16 %v3244
    %v3337 = vunpack.c.l.b16 %v3245
    %v3338 = vunpack.c.l.b16 %v3246
    %v3339 = vunpack.c.l.b16 %v3247
    %v3340 = vunpack.c.l.b16 %v3248
    %v3341 = vunpack.c.l.b16 %v3249
    %v3342 = vunpack.c.l.b16 %v3250
    %v3343 = vunpack.c.l.b16 %v3251
    %v3344 = vpack.c.b16 %v3337, %v3336
    %v3345 = vpack.c.b16 %v3339, %v3338
    %v3346 = vpack.c.b16 %v3341, %v3340
    %v3347 = vpack.c.b16 %v3343, %v3342
    %3348 = vrot.lane.b32.xlu0 %v3344, 96
    %v3349 = vpop.permute.xlu0 %3348
    %3350 = vrot.lane.b32.xlu0 %v3345, 96
    %v3351 = vpop.permute.xlu0 %3350
    %3352 = vrot.lane.b32.xlu0 %v3346, 96
    %v3353 = vpop.permute.xlu0 %3352
    %3354 = vrot.lane.b32.xlu0 %v3347, 96
    %v3355 = vpop.permute.xlu0 %3354
    %v3358 = vsel %vm411, %v3268, %v3293
    %v3361 = vsel %vm411, %v3269, %v3295
    %v3364 = vsel %vm411, %v3270, %v3297
    %v3367 = vsel %vm411, %v3271, %v3299
    %v3369 = vsel %vm1775, %v3358, %v3321
    %v3371 = vsel %vm1775, %v3361, %v3323
    %v3373 = vsel %vm1775, %v3364, %v3325
    %v3375 = vsel %vm1775, %v3367, %v3327
    %v3377 = vsel %vm1784, %v3369, %v3349
    %v3380 = vsel %vm1784, %v3371, %v3351
    %v3383 = vsel %vm1784, %v3373, %v3353
    %v3386 = vsel %vm1784, %v3375, %v3355
    %3388 = vmatpush.bf16.msra.mxu0 %v1839
    %3389 = vmatpush.bf16.msra.mxu0 %v1838
    %3390 = vmatpush.bf16.msra.mxu0 %v1837
    %3391 = vmatpush.bf16.msra.mxu0 %v1836
    %3392 = vmatpush.bf16.msra.mxu0 %v1835
    %3393 = vmatpush.bf16.msra.mxu0 %v1834
    %3394 = vmatpush.bf16.msra.mxu0 %v1833
    %3395 = vmatpush.bf16.msra.mxu0 %v1832
    %3396 = vmatmul.bf16.gmra.mxu0 %v3377
    %v3397 = vpop.f32.mrf.mxu0
    %v3398 = vadd.f32 %v1798, %v3397
    %v3399 = vpop.f32.mrf.mxu0
    %v3400 = vadd.f32 %v1798, %v3399
    %3401 = vmatmul.bf16.gmra.mxu0 %v3380
    %v3402 = vpop.f32.mrf.mxu0
    %v3403 = vadd.f32 %v1798, %v3402
    %v3404 = vpop.f32.mrf.mxu0
    %v3405 = vadd.f32 %v1798, %v3404
    %3406 = vmatmul.bf16.gmra.mxu0 %v3383
    %v3407 = vpop.f32.mrf.mxu0
    %v3408 = vadd.f32 %v1798, %v3407
    %v3409 = vpop.f32.mrf.mxu0
    %v3410 = vadd.f32 %v1798, %v3409
    %3411 = vmatmul.bf16.gmra.mxu0 %v3386
    %v3412 = vpop.f32.mrf.mxu0
    %v3413 = vadd.f32 %v1798, %v3412
    %v3414 = vpop.f32.mrf.mxu0
    %v3415 = vadd.f32 %v1798, %v3414
    %3416 = vdwg.mxu0
    %v3417 = vld [vmem:[%s5] sm:$0x1]
    %v3418 = vld [vmem:[%s6] sm:$0x1]
    %3419 = vadd.xlane.f32.xlu0 %v3398
    %v3420 = vpop.xlane.xlu0 %3419
    %3421 = vadd.xlane.f32.xlu0 %v3400
    %v3422 = vpop.xlane.xlu0 %3421
    %3423 = vadd.xlane.f32.xlu0 %v3403
    %v3424 = vpop.xlane.xlu0 %3423
    %3425 = vadd.xlane.f32.xlu0 %v3405
    %v3426 = vpop.xlane.xlu0 %3425
    %3427 = vadd.xlane.f32.xlu0 %v3408
    %v3428 = vpop.xlane.xlu0 %3427
    %3429 = vadd.xlane.f32.xlu0 %v3410
    %v3430 = vpop.xlane.xlu0 %3429
    %3431 = vadd.xlane.f32.xlu0 %v3413
    %v3432 = vpop.xlane.xlu0 %3431
    %3433 = vadd.xlane.f32.xlu0 %v3415
    %v3434 = vpop.xlane.xlu0 %3433
    %v3435 = vrcp.pop 128.0
    %v3436 = vmul.f32 128.0, %v3435
    %v3437 = vsub.f32 1.0, %v3436
    %v3438 = vmul.f32 %v3435, %v3437
    %v3439 = vadd.f32 %v3435, %v3438
    %vm3440 = vweird.f32 %v3435
    %v3441 = vsel %vm3440, %v3435, %v3439
    %v3442 = vmul.f32 %v3420, %v3441
    %v3443 = vmul.f32 %v3422, %v3441
    %v3444 = vmul.f32 %v3424, %v3441
    %v3445 = vmul.f32 %v3426, %v3441
    %v3446 = vmul.f32 %v3428, %v3441
    %v3447 = vmul.f32 %v3430, %v3441
    %v3448 = vmul.f32 %v3432, %v3441
    %v3449 = vmul.f32 %v3434, %v3441
    %v3450 = vsub.f32 %v3398, %v3442
    %v3451 = vsub.f32 %v3400, %v3443
    %v3452 = vsub.f32 %v3403, %v3444
    %v3453 = vsub.f32 %v3405, %v3445
    %v3454 = vsub.f32 %v3408, %v3446
    %v3455 = vsub.f32 %v3410, %v3447
    %v3456 = vsub.f32 %v3413, %v3448
    %v3457 = vsub.f32 %v3415, %v3449
    %v3458 = vmul.f32 %v3450, %v3450
    %v3459 = vmul.f32 %v3451, %v3451
    %v3460 = vmul.f32 %v3452, %v3452
    %v3461 = vmul.f32 %v3453, %v3453
    %v3462 = vmul.f32 %v3454, %v3454
    %v3463 = vmul.f32 %v3455, %v3455
    %v3464 = vmul.f32 %v3456, %v3456
    %v3465 = vmul.f32 %v3457, %v3457
    %3466 = vadd.xlane.f32.xlu0 %v3458
    %v3467 = vpop.xlane.xlu0 %3466
    %3468 = vadd.xlane.f32.xlu0 %v3459
    %v3469 = vpop.xlane.xlu0 %3468
    %3470 = vadd.xlane.f32.xlu0 %v3460
    %v3471 = vpop.xlane.xlu0 %3470
    %3472 = vadd.xlane.f32.xlu0 %v3461
    %v3473 = vpop.xlane.xlu0 %3472
    %3474 = vadd.xlane.f32.xlu0 %v3462
    %v3475 = vpop.xlane.xlu0 %3474
    %3476 = vadd.xlane.f32.xlu0 %v3463
    %v3477 = vpop.xlane.xlu0 %3476
    %3478 = vadd.xlane.f32.xlu0 %v3464
    %v3479 = vpop.xlane.xlu0 %3478
    %3480 = vadd.xlane.f32.xlu0 %v3465
    %v3481 = vpop.xlane.xlu0 %3480
    %v3482 = vrcp.pop 127.0
    %v3483 = vmul.f32 127.0, %v3482
    %v3484 = vsub.f32 1.0, %v3483
    %v3485 = vmul.f32 %v3482, %v3484
    %v3486 = vadd.f32 %v3482, %v3485
    %vm3487 = vweird.f32 %v3482
    %v3488 = vsel %vm3487, %v3482, %v3486
    %v3489 = vmul.f32 %v3467, %v3488
    %v3490 = vmul.f32 %v3469, %v3488
    %v3491 = vmul.f32 %v3471, %v3488
    %v3492 = vmul.f32 %v3473, %v3488
    %v3493 = vmul.f32 %v3475, %v3488
    %v3494 = vmul.f32 %v3477, %v3488
    %v3495 = vmul.f32 %v3479, %v3488
    %v3496 = vmul.f32 %v3481, %v3488
    %v3497 = vrsqrt.pop %v3489
    %v3498 = vmul.f32 %v3497, %v3489
    %v3499 = vmul.f32 %v3498, %v3497
    %v3500 = vmul.f32 0.5, %v3499
    %v3501 = vsub.f32 1.5, %v3500
    %v3502 = vmul.f32 %v3497, %v3501
    %v3503 = vmul.f32 %v3489, %v3502
    %vm3504 = vcmp.eq.f32.partialorder %v3489, inf
    %v3505 = vsel %vm3504, %v3489, %v3503
    %vm3506 = vcmp.eq.f32.partialorder %v3489, 0.0
    %v3507 = vand.u32 %v3489, 2147483648
    %v3508 = vsel %vm3506, %v3507, %v3505
    %v3509 = vrsqrt.pop %v3490
    %v3510 = vmul.f32 %v3509, %v3490
    %v3511 = vmul.f32 %v3510, %v3509
    %v3512 = vmul.f32 0.5, %v3511
    %v3513 = vsub.f32 1.5, %v3512
    %v3514 = vmul.f32 %v3509, %v3513
    %v3515 = vmul.f32 %v3490, %v3514
    %vm3516 = vcmp.eq.f32.partialorder %v3490, inf
    %v3517 = vsel %vm3516, %v3490, %v3515
    %vm3518 = vcmp.eq.f32.partialorder %v3490, 0.0
    %v3519 = vand.u32 %v3490, 2147483648
    %v3520 = vsel %vm3518, %v3519, %v3517
    %v3521 = vrsqrt.pop %v3491
    %v3522 = vmul.f32 %v3521, %v3491
    %v3523 = vmul.f32 %v3522, %v3521
    %v3524 = vmul.f32 0.5, %v3523
    %v3525 = vsub.f32 1.5, %v3524
    %v3526 = vmul.f32 %v3521, %v3525
    %v3527 = vmul.f32 %v3491, %v3526
    %vm3528 = vcmp.eq.f32.partialorder %v3491, inf
    %v3529 = vsel %vm3528, %v3491, %v3527
    %vm3530 = vcmp.eq.f32.partialorder %v3491, 0.0
    %v3531 = vand.u32 %v3491, 2147483648
    %v3532 = vsel %vm3530, %v3531, %v3529
    %v3533 = vrsqrt.pop %v3492
    %v3534 = vmul.f32 %v3533, %v3492
    %v3535 = vmul.f32 %v3534, %v3533
    %v3536 = vmul.f32 0.5, %v3535
    %v3537 = vsub.f32 1.5, %v3536
    %v3538 = vmul.f32 %v3533, %v3537
    %v3539 = vmul.f32 %v3492, %v3538
    %vm3540 = vcmp.eq.f32.partialorder %v3492, inf
    %v3541 = vsel %vm3540, %v3492, %v3539
    %vm3542 = vcmp.eq.f32.partialorder %v3492, 0.0
    %v3543 = vand.u32 %v3492, 2147483648
    %v3544 = vsel %vm3542, %v3543, %v3541
    %v3545 = vrsqrt.pop %v3493
    %v3546 = vmul.f32 %v3545, %v3493
    %v3547 = vmul.f32 %v3546, %v3545
    %v3548 = vmul.f32 0.5, %v3547
    %v3549 = vsub.f32 1.5, %v3548
    %v3550 = vmul.f32 %v3545, %v3549
    %v3551 = vmul.f32 %v3493, %v3550
    %vm3552 = vcmp.eq.f32.partialorder %v3493, inf
    %v3553 = vsel %vm3552, %v3493, %v3551
    %vm3554 = vcmp.eq.f32.partialorder %v3493, 0.0
    %v3555 = vand.u32 %v3493, 2147483648
    %v3556 = vsel %vm3554, %v3555, %v3553
    %v3557 = vrsqrt.pop %v3494
    %v3558 = vmul.f32 %v3557, %v3494
    %v3559 = vmul.f32 %v3558, %v3557
    %v3560 = vmul.f32 0.5, %v3559
    %v3561 = vsub.f32 1.5, %v3560
    %v3562 = vmul.f32 %v3557, %v3561
    %v3563 = vmul.f32 %v3494, %v3562
    %vm3564 = vcmp.eq.f32.partialorder %v3494, inf
    %v3565 = vsel %vm3564, %v3494, %v3563
    %vm3566 = vcmp.eq.f32.partialorder %v3494, 0.0
    %v3567 = vand.u32 %v3494, 2147483648
    %v3568 = vsel %vm3566, %v3567, %v3565
    %v3569 = vrsqrt.pop %v3495
    %v3570 = vmul.f32 %v3569, %v3495
    %v3571 = vmul.f32 %v3570, %v3569
    %v3572 = vmul.f32 0.5, %v3571
    %v3573 = vsub.f32 1.5, %v3572
    %v3574 = vmul.f32 %v3569, %v3573
    %v3575 = vmul.f32 %v3495, %v3574
    %vm3576 = vcmp.eq.f32.partialorder %v3495, inf
    %v3577 = vsel %vm3576, %v3495, %v3575
    %vm3578 = vcmp.eq.f32.partialorder %v3495, 0.0
    %v3579 = vand.u32 %v3495, 2147483648
    %v3580 = vsel %vm3578, %v3579, %v3577
    %v3581 = vrsqrt.pop %v3496
    %v3582 = vmul.f32 %v3581, %v3496
    %v3583 = vmul.f32 %v3582, %v3581
    %v3584 = vmul.f32 0.5, %v3583
    %v3585 = vsub.f32 1.5, %v3584
    %v3586 = vmul.f32 %v3581, %v3585
    %v3587 = vmul.f32 %v3496, %v3586
    %vm3588 = vcmp.eq.f32.partialorder %v3496, inf
    %v3589 = vsel %vm3588, %v3496, %v3587
    %vm3590 = vcmp.eq.f32.partialorder %v3496, 0.0
    %v3591 = vand.u32 %v3496, 2147483648
    %v3592 = vsel %vm3590, %v3591, %v3589
    %v3593 = vadd.f32 %v3508, 1e-06
    %v3594 = vadd.f32 %v3520, 1e-06
    %v3595 = vadd.f32 %v3532, 1e-06
    %v3596 = vadd.f32 %v3544, 1e-06
    %v3597 = vadd.f32 %v3556, 1e-06
    %v3598 = vadd.f32 %v3568, 1e-06
    %v3599 = vadd.f32 %v3580, 1e-06
    %v3600 = vadd.f32 %v3592, 1e-06
    %v3601 = vrcp.pop %v3593
    %v3602 = vmul.f32 %v3593, %v3601
    %v3603 = vsub.f32 1.0, %v3602
    %v3604 = vmul.f32 %v3601, %v3603
    %v3605 = vadd.f32 %v3601, %v3604
    %vm3606 = vweird.f32 %v3593
    %vm3607 = vweird.f32 %v3601
    %vm3608 = vmor %vm3606, %vm3607
    %v3609 = vsel %vm3608, %v3601, %v3605
    %v3610 = vand.u32 2147483647, %v3593
    %vm3611 = vcmp.eq.f32.partialorder %v3610, 8.507059e+37
    %v3612 = vand.u32 %v3593, 2147483648
    %v3613 = vor.u32 1.1754944e-38, %v3612
    %v3614 = vsel %vm3611, %v3613, %v3609
    %v3615 = vmul.f32 1.0, %v3614
    %v3616 = vrcp.pop %v3594
    %v3617 = vmul.f32 %v3594, %v3616
    %v3618 = vsub.f32 1.0, %v3617
    %v3619 = vmul.f32 %v3616, %v3618
    %v3620 = vadd.f32 %v3616, %v3619
    %vm3621 = vweird.f32 %v3594
    %vm3622 = vweird.f32 %v3616
    %vm3623 = vmor %vm3621, %vm3622
    %v3624 = vsel %vm3623, %v3616, %v3620
    %v3625 = vand.u32 2147483647, %v3594
    %vm3626 = vcmp.eq.f32.partialorder %v3625, 8.507059e+37
    %v3627 = vand.u32 %v3594, 2147483648
    %v3628 = vor.u32 1.1754944e-38, %v3627
    %v3629 = vsel %vm3626, %v3628, %v3624
    %v3630 = vmul.f32 1.0, %v3629
    %v3631 = vrcp.pop %v3595
    %v3632 = vmul.f32 %v3595, %v3631
    %v3633 = vsub.f32 1.0, %v3632
    %v3634 = vmul.f32 %v3631, %v3633
    %v3635 = vadd.f32 %v3631, %v3634
    %vm3636 = vweird.f32 %v3595
    %vm3637 = vweird.f32 %v3631
    %vm3638 = vmor %vm3636, %vm3637
    %v3639 = vsel %vm3638, %v3631, %v3635
    %v3640 = vand.u32 2147483647, %v3595
    %vm3641 = vcmp.eq.f32.partialorder %v3640, 8.507059e+37
    %v3642 = vand.u32 %v3595, 2147483648
    %v3643 = vor.u32 1.1754944e-38, %v3642
    %v3644 = vsel %vm3641, %v3643, %v3639
    %v3645 = vmul.f32 1.0, %v3644
    %v3646 = vrcp.pop %v3596
    %v3647 = vmul.f32 %v3596, %v3646
    %v3648 = vsub.f32 1.0, %v3647
    %v3649 = vmul.f32 %v3646, %v3648
    %v3650 = vadd.f32 %v3646, %v3649
    %vm3651 = vweird.f32 %v3596
    %vm3652 = vweird.f32 %v3646
    %vm3653 = vmor %vm3651, %vm3652
    %v3654 = vsel %vm3653, %v3646, %v3650
    %v3655 = vand.u32 2147483647, %v3596
    %vm3656 = vcmp.eq.f32.partialorder %v3655, 8.507059e+37
    %v3657 = vand.u32 %v3596, 2147483648
    %v3658 = vor.u32 1.1754944e-38, %v3657
    %v3659 = vsel %vm3656, %v3658, %v3654
    %v3660 = vmul.f32 1.0, %v3659
    %v3661 = vrcp.pop %v3597
    %v3662 = vmul.f32 %v3597, %v3661
    %v3663 = vsub.f32 1.0, %v3662
    %v3664 = vmul.f32 %v3661, %v3663
    %v3665 = vadd.f32 %v3661, %v3664
    %vm3666 = vweird.f32 %v3597
    %vm3667 = vweird.f32 %v3661
    %vm3668 = vmor %vm3666, %vm3667
    %v3669 = vsel %vm3668, %v3661, %v3665
    %v3670 = vand.u32 2147483647, %v3597
    %vm3671 = vcmp.eq.f32.partialorder %v3670, 8.507059e+37
    %v3672 = vand.u32 %v3597, 2147483648
    %v3673 = vor.u32 1.1754944e-38, %v3672
    %v3674 = vsel %vm3671, %v3673, %v3669
    %v3675 = vmul.f32 1.0, %v3674
    %v3676 = vrcp.pop %v3598
    %v3677 = vmul.f32 %v3598, %v3676
    %v3678 = vsub.f32 1.0, %v3677
    %v3679 = vmul.f32 %v3676, %v3678
    %v3680 = vadd.f32 %v3676, %v3679
    %vm3681 = vweird.f32 %v3598
    %vm3682 = vweird.f32 %v3676
    %vm3683 = vmor %vm3681, %vm3682
    %v3684 = vsel %vm3683, %v3676, %v3680
    %v3685 = vand.u32 2147483647, %v3598
    %vm3686 = vcmp.eq.f32.partialorder %v3685, 8.507059e+37
    %v3687 = vand.u32 %v3598, 2147483648
    %v3688 = vor.u32 1.1754944e-38, %v3687
    %v3689 = vsel %vm3686, %v3688, %v3684
    %v3690 = vmul.f32 1.0, %v3689
    %v3691 = vrcp.pop %v3599
    %v3692 = vmul.f32 %v3599, %v3691
    %v3693 = vsub.f32 1.0, %v3692
    %v3694 = vmul.f32 %v3691, %v3693
    %v3695 = vadd.f32 %v3691, %v3694
    %vm3696 = vweird.f32 %v3599
    %vm3697 = vweird.f32 %v3691
    %vm3698 = vmor %vm3696, %vm3697
    %v3699 = vsel %vm3698, %v3691, %v3695
    %v3700 = vand.u32 2147483647, %v3599
    %vm3701 = vcmp.eq.f32.partialorder %v3700, 8.507059e+37
    %v3702 = vand.u32 %v3599, 2147483648
    %v3703 = vor.u32 1.1754944e-38, %v3702
    %v3704 = vsel %vm3701, %v3703, %v3699
    %v3705 = vmul.f32 1.0, %v3704
    %v3706 = vrcp.pop %v3600
    %v3707 = vmul.f32 %v3600, %v3706
    %v3708 = vsub.f32 1.0, %v3707
    %v3709 = vmul.f32 %v3706, %v3708
    %v3710 = vadd.f32 %v3706, %v3709
    %vm3711 = vweird.f32 %v3600
    %vm3712 = vweird.f32 %v3706
    %vm3713 = vmor %vm3711, %vm3712
    %v3714 = vsel %vm3713, %v3706, %v3710
    %v3715 = vand.u32 2147483647, %v3600
    %vm3716 = vcmp.eq.f32.partialorder %v3715, 8.507059e+37
    %v3717 = vand.u32 %v3600, 2147483648
    %v3718 = vor.u32 1.1754944e-38, %v3717
    %v3719 = vsel %vm3716, %v3718, %v3714
    %v3720 = vmul.f32 1.0, %v3719
    %v3721 = vmul.f32 %v3450, %v3615
    %v3722 = vmul.f32 %v3451, %v3630
    %v3723 = vmul.f32 %v3452, %v3645
    %v3724 = vmul.f32 %v3453, %v3660
    %v3725 = vmul.f32 %v3454, %v3675
    %v3726 = vmul.f32 %v3455, %v3690
    %v3727 = vmul.f32 %v3456, %v3705
    %v3728 = vmul.f32 %v3457, %v3720
    %v3730 = vperm.slane %v3417, 0
    %v3732 = vmul.f32 %v3721, %v3730
    %v3733 = vmul.f32 %v3722, %v3730
    %v3734 = vmul.f32 %v3723, %v3730
    %v3735 = vmul.f32 %v3724, %v3730
    %v3736 = vmul.f32 %v3725, %v3730
    %v3737 = vmul.f32 %v3726, %v3730
    %v3738 = vmul.f32 %v3727, %v3730
    %v3739 = vmul.f32 %v3728, %v3730
    %v3741 = vperm.slane %v3418, 0
    %v3743 = vadd.f32 %v3732, %v3741
    %v3744 = vadd.f32 %v3733, %v3741
    %v3745 = vadd.f32 %v3734, %v3741
    %v3746 = vadd.f32 %v3735, %v3741
    %v3747 = vadd.f32 %v3736, %v3741
    %v3748 = vadd.f32 %v3737, %v3741
    %v3749 = vadd.f32 %v3738, %v3741
    %v3750 = vadd.f32 %v3739, %v3741
    %3751 = vst [vmem:[#allocation10] sm:$0xff] %v3743
    %3752 = vst [vmem:[#allocation10 + $0x8] sm:$0xff] %v3744
    %3753 = vst [vmem:[#allocation10 + $0x10] sm:$0xff] %v3745
    %3754 = vst [vmem:[#allocation10 + $0x18] sm:$0xff] %v3746
    %3755 = vst [vmem:[#allocation10 + $0x20] sm:$0xff] %v3747
    %3756 = vst [vmem:[#allocation10 + $0x28] sm:$0xff] %v3748
    %3757 = vst [vmem:[#allocation10 + $0x30] sm:$0xff] %v3749
    %3758 = vst [vmem:[#allocation10 + $0x38] sm:$0xff] %v3750
    // Predicated region
    $region46: #{tpu_custom_call.1} parent=1 // pred_check
      _
    $region47: #{tpu_custom_call.1} parent=1 // pred_check_branch
      %3760 = sbr.rel (0) target = $region49
    $region48: #{tpu_custom_call.1} parent=1 // pred_region
      %3762 = vsyncadd [#allocation4], 0
      %s3763 = sshll.u32 [#allocation10], 4
      %s3764 = int_to_ptr.vmem [resolvable:$true] %s3763
      %s3765 = sshll.u32 %s7, 4
      %s3766 = int_to_ptr.hbm [resolvable:$true] %s3765
      %3771 = dma.vmem_to_hbm [thread:$0]  %s3764, 1024, %s3766, [#allocation4], 128, 128, 8
    $region49: #{tpu_custom_call.1} parent=1 // pred_fallthru
      _
    // Predicated region
    $region50: #{tpu_custom_call.1} parent=1 // pred_check
      _
    $region51: #{tpu_custom_call.1} parent=1 // pred_check_branch
      %3773 = sbr.rel (0) target = $region53
    $region52: #{tpu_custom_call.1} parent=1 // pred_region
      %3775 = dma.done [#allocation4], 1024
    $region53: #{tpu_custom_call.1} parent=1 // pred_fallthru
      _
    %3776 = vsyncpa [#allocation3], 1
    %3777 = vsyncpa [#allocation6], 1
    %3778 = vsyncpa [#allocation9], 1
    %3779 = vsyncpa [#allocation4], 1

</llo_original>
